<compile_context>
chip_gen: v6e
topology: v6e:2x2x1
jax: 0.10.0
libtpu: 0.0.40
codegen_flags: <defaults>
</compile_context>

<pallas_src>
import functools

import jax
import jax.numpy as jnp
from jax import lax
from jax.experimental import pallas as pl
from jax.experimental.pallas import tpu as pltpu


def emonet_kernel(x_ref,
                  w0_ref, b0_ref,
                  wih_ref, bias_ref, whh_ref,
                  w_out_ref, b_out_ref,
                  out_ref,
                  y_ref, gx_ref,
                  *, T, B, H, depth):
    """Whole EmoNet forward, single invocation, everything in VMEM.

    x_ref:     (T*B, nIn)          input sequence, time-major rows (t*B + b)
    w0_ref:    (nIn, 8H)           fc_in folded into layer-0 input->gate weights
    b0_ref:    (1, 8H)             folded layer-0 gate bias
    wih_ref:   (max(depth-1,1), 2H, 8H)  layers 1.. input->gate weights [fwd|bwd]
    bias_ref:  (max(depth-1,1), 1, 8H)   layers 1.. folded gate bias
    whh_ref:   (depth, 2H, 8H)     block-diag [whh_fwd, 0; 0, whh_bwd] per layer
    w_out_ref: (2H, nOut)          fc_out weight (transposed); b_out_ref: (1, nOut)
    out_ref:   (B, nOut)           output = fc_out(last timestep activation)
    y_ref:     (T*B, 2H) VMEM      layer activations, [h_fwd | h_bwd]
    gx_ref:    (T*B, 8H) VMEM      per-layer hoisted input projection (both dirs)

    Gate column order per direction is (i, f, o, g).
    """
    H2, H3, H4, H8 = 2 * H, 3 * H, 4 * H, 8 * H

    def cell(gates, c):
        # one wide sigmoid over (i, f, o), one tanh over g
        sig = jax.nn.sigmoid(gates[:, 0:H3])
        g = jnp.tanh(gates[:, H3:H4])
        i = sig[:, 0:H]
        f = sig[:, H:H2]
        o = sig[:, H2:H3]
        c_new = f * c + i * g
        return o * jnp.tanh(c_new), c_new

    def run_layer(whh):
        # Serial bidirectional recurrence for one layer.  gx_ref must already
        # hold this layer's input->gate projection (bias folded in).
        z = jnp.zeros((B, H), jnp.float32)
        h_f, c_f, h_b, c_b = z, z, z, z
        for t in range(T):                      # static unroll; T is small
            tb = T - 1 - t
            # Both gx halves are 128-lane-aligned (4H = 128) static slices.
            gx_t = jnp.concatenate(
                [gx_ref[t * B:(t + 1) * B, 0:H4],
                 gx_ref[tb * B:(tb + 1) * B, H4:H8]], axis=1)
            h_cat = jnp.concatenate([h_f, h_b], axis=1)          # (B, 2H)
            # Single fused block-diagonal hidden matmul for both directions.
            gates = gx_t + jnp.dot(h_cat, whh,
                                   preferred_element_type=jnp.float32)
            h_f, c_f = cell(gates[:, 0:H4], c_f)
            h_b, c_b = cell(gates[:, H4:H8], c_b)
            # In-place activation writes are safe: this layer's gx is already
            # fully materialized in gx_ref before the recurrence starts.
            y_ref[t * B:(t + 1) * B, 0:H] = h_f
            y_ref[tb * B:(tb + 1) * B, H:H2] = h_b

    # ---- layer 0: fc_in folded into the input->gate projection (1 matmul) ---
    gx_ref[...] = jnp.dot(x_ref[...], w0_ref[...],
                          preferred_element_type=jnp.float32) + b0_ref[...]
    run_layer(whh_ref[0])

    # ---- layers 1..depth-1: one batched projection + recurrence each --------
    for l in range(1, depth):                   # static unroll over layers
        gx_ref[...] = jnp.dot(y_ref[...], wih_ref[l - 1],
                              preferred_element_type=jnp.float32) + bias_ref[l - 1]
        run_layer(whh_ref[l])

    # ---- fc_out on the last timestep's bidirectional activation -------------
    out_ref[...] = jnp.dot(y_ref[(T - 1) * B:T * B, :], w_out_ref[...],
                           preferred_element_type=jnp.float32) + b_out_ref[...]


@jax.jit
def emonet_forward(x, prep):
    """x: (T, B, nIn) float32; returns (B, nOut) float32."""
    T, B, n_in = x.shape
    depth, two_h, _ = prep["whh"].shape
    H = two_h // 2
    n_out = prep["w_out"].shape[1]
    x2d = x.reshape(T * B, n_in)

    kernel = functools.partial(emonet_kernel, T=T, B=B, H=H, depth=depth)
    vmem = pl.BlockSpec(memory_space=pltpu.MemorySpace.VMEM)

    return pl.pallas_call(
        kernel,
        out_shape=jax.ShapeDtypeStruct((B, n_out), jnp.float32),
        in_specs=[vmem] * 8,
        out_specs=vmem,
        scratch_shapes=[pltpu.VMEM((T * B, 2 * H), jnp.float32),
                        pltpu.VMEM((T * B, 8 * H), jnp.float32)],
    )(x2d, prep["w0"], prep["b0"],
      prep["wih_rest"], prep["bias_rest"], prep["whh"],
      prep["w_out"], prep["b_out"])


def _reorder_ifog(w, axis):
    """Reorder PyTorch gate blocks (i, f, g, o) -> (i, f, o, g) along `axis`."""
    i, f, g, o = jnp.split(w, 4, axis=axis)
    return jnp.concatenate([i, f, o, g], axis=axis)


def prepare_params(raw):
    """One-time weight layout prep: transpose, gate reorder, bias folding,
    fc_in fold into layer 0, block-diagonal hidden weights."""
    depth = len(raw["lstm"])
    assert depth >= 1
    H = raw["lstm"][0]["weight_hh_l0"].shape[1]

    w_in = raw["fc_in_w"].T                       # (nIn, 2H)
    b_in = raw["fc_in_b"][None, :]                # (1, 2H)

    wih_all, bias_all, whh_all = [], [], []
    for p in raw["lstm"]:
        wih_f = _reorder_ifog(p["weight_ih_l0"], 0).T                 # (2H, 4H)
        wih_b = _reorder_ifog(p["weight_ih_l0_reverse"], 0).T
        wih_all.append(jnp.concatenate([wih_f, wih_b], axis=1))       # (2H, 8H)

        b_f = _reorder_ifog(p["bias_ih_l0"] + p["bias_hh_l0"], 0)
        b_b = _reorder_ifog(p["bias_ih_l0_reverse"] + p["bias_hh_l0_reverse"], 0)
        bias_all.append(jnp.concatenate([b_f, b_b])[None, :])         # (1, 8H)

        whh_f = _reorder_ifog(p["weight_hh_l0"], 0).T                 # (H, 4H)
        whh_b = _reorder_ifog(p["weight_hh_l0_reverse"], 0).T
        zeros = jnp.zeros((H, 4 * H), jnp.float32)
        whh_all.append(jnp.concatenate(
            [jnp.concatenate([whh_f, zeros], axis=1),
             jnp.concatenate([zeros, whh_b], axis=1)], axis=0))       # (2H, 8H)

    # Fold fc_in into layer 0's input->gate projection (high precision, one-time).
    hi = jax.lax.Precision.HIGHEST
    w0 = jnp.dot(w_in, wih_all[0], precision=hi)                      # (nIn, 8H)
    b0 = jnp.dot(b_in, wih_all[0], precision=hi) + bias_all[0]        # (1, 8H)

    if depth > 1:
        wih_rest = jnp.stack(wih_all[1:])                             # (depth-1, 2H, 8H)
        bias_rest = jnp.stack(bias_all[1:])                           # (depth-1, 1, 8H)
    else:  # dummy (never read by the kernel when depth == 1)
        wih_rest = jnp.zeros((1, 2 * H, 8 * H), jnp.float32)
        bias_rest = jnp.zeros((1, 1, 8 * H), jnp.float32)

    return {
        "w0": w0, "b0": b0,
        "wih_rest": wih_rest, "bias_rest": bias_rest,
        "whh": jnp.stack(whh_all),                                    # (depth, 2H, 8H)
        "w_out": raw["fc_out_w"].T, "b_out": raw["fc_out_b"][None, :],
    }


# --------------- pure-JAX reference (for correctness check) ------------------
def _lstm_dir_ref(x, wih, whh, bias, reverse):
    T, B, _ = x.shape
    H = whh.shape[1]
    xs = x[::-1] if reverse else x

    def step(carry, xt):
        h, c = carry
        gates = xt @ wih.T + h @ whh.T + bias
        i, f, g, o = jnp.split(gates, 4, axis=-1)
        i = jax.nn.sigmoid(i); f = jax.nn.sigmoid(f)
        g = jnp.tanh(g); o = jax.nn.sigmoid(o)
        c = f * c + i * g
        h = o * jnp.tanh(c)
        return (h, c), h

    init = (jnp.zeros((B, H), jnp.float32), jnp.zeros((B, H), jnp.float32))
    _, hs = lax.scan(step, init, xs)
    return hs[::-1] if reverse else hs


def emonet_reference(x, raw):
    T, B, n_in = x.shape
    y = (x.reshape(T * B, n_in) @ raw["fc_in_w"].T + raw["fc_in_b"]).reshape(T, B, -1)
    for p in raw["lstm"]:
        fwd = _lstm_dir_ref(y, p["weight_ih_l0"], p["weight_hh_l0"],
                            p["bias_ih_l0"] + p["bias_hh_l0"], reverse=False)
        bwd = _lstm_dir_ref(y, p["weight_ih_l0_reverse"], p["weight_hh_l0_reverse"],
                            p["bias_ih_l0_reverse"] + p["bias_hh_l0_reverse"],
                            reverse=True)
        y = jnp.concatenate([fwd, bwd], axis=-1)
    return y[-1] @ raw["fc_out_w"].T + raw["fc_out_b"]


def init_emonet_params(key, n_in, H, n_out, depth):
    def u(k, shape, bound):
        return jax.random.uniform(k, shape, jnp.float32, -bound, bound)

    keys = iter(jax.random.split(key, 4 + 8 * depth))
    k_in = 1.0 / float(n_in) ** 0.5
    raw = {
        "fc_in_w": u(next(keys), (2 * H, n_in), k_in),
        "fc_in_b": u(next(keys), (2 * H,), k_in),
    }
    k_h = 1.0 / float(H) ** 0.5
    lstm = []
    for _ in range(depth):
        lstm.append({
            "weight_ih_l0": u(next(keys), (4 * H, 2 * H), k_h),
            "weight_hh_l0": u(next(keys), (4 * H, H), k_h),
            "bias_ih_l0": u(next(keys), (4 * H,), k_h),
            "bias_hh_l0": u(next(keys), (4 * H,), k_h),
            "weight_ih_l0_reverse": u(next(keys), (4 * H, 2 * H), k_h),
            "weight_hh_l0_reverse": u(next(keys), (4 * H, H), k_h),
            "bias_ih_l0_reverse": u(next(keys), (4 * H,), k_h),
            "bias_hh_l0_reverse": u(next(keys), (4 * H,), k_h),
        })
    raw["lstm"] = lstm
    k_out = 1.0 / float(2 * H) ** 0.5
    raw["fc_out_w"] = u(next(keys), (n_out, 2 * H), k_out)
    raw["fc_out_b"] = u(next(keys), (n_out,), k_out)
    return raw


if __name__ == "__main__":
    T, B, nIn, H, nOut, depth = 8, 2, 16, 32, 8, 2
    key = jax.random.PRNGKey(0)
    kx, kp = jax.random.split(key)
    x = jax.random.normal(kx, (T, B, nIn), jnp.float32)
    raw = init_emonet_params(kp, nIn, H, nOut, depth)
    prep = prepare_params(raw)

    out = jax.block_until_ready(emonet_forward(x, prep))
    ref = jax.block_until_ready(emonet_reference(x, raw))

    assert out.shape == (B, nOut), out.shape
    max_err = float(jnp.max(jnp.abs(out - ref)))
    # Loose enough for Mosaic-vs-XLA matmul pass/order differences (incl. the
    # fc_in fold), tight enough to catch any semantic error (gate order,
    # direction, layout).
    assert jnp.allclose(out, ref, atol=2e-4, rtol=2e-4), max_err
    print("KERNEL_OK")
</pallas_src>

<mosaic_0001>
module attributes {stable_mosaic.version = 11 : i64} {
  func.func @emonet_kernel(%arg0: memref<16x16xf32, #tpu.memory_space<vmem>>, %arg1: memref<16x256xf32, #tpu.memory_space<vmem>>, %arg2: memref<1x256xf32, #tpu.memory_space<vmem>>, %arg3: memref<1x64x256xf32, #tpu.memory_space<vmem>>, %arg4: memref<1x1x256xf32, #tpu.memory_space<vmem>>, %arg5: memref<2x64x256xf32, #tpu.memory_space<vmem>>, %arg6: memref<64x8xf32, #tpu.memory_space<vmem>>, %arg7: memref<1x8xf32, #tpu.memory_space<vmem>>, %arg8: memref<2x8xf32, #tpu.memory_space<vmem>>, %arg9: memref<16x64xf32, #tpu.memory_space<vmem>>, %arg10: memref<16x256xf32, #tpu.memory_space<vmem>>) attributes {dimension_semantics = [], scalar_prefetch = 0 : i64, scratch_operands = 2 : i64, tpu.core_type = #tpu.core_type<tc>} {
    %c0 = arith.constant 0 : index
    %c0_0 = arith.constant 0 : index
    %0 = vector.load %arg0[%c0, %c0_0] : memref<16x16xf32, #tpu.memory_space<vmem>>, vector<16x16xf32>
    %c0_1 = arith.constant 0 : index
    %c0_2 = arith.constant 0 : index
    %1 = vector.load %arg1[%c0_1, %c0_2] : memref<16x256xf32, #tpu.memory_space<vmem>>, vector<16x256xf32>
    %cst = arith.constant dense<0.000000e+00> : vector<16x256xf32>
    %2 = tpu.matmul %0, %1, %cst {dimension_numbers = #tpu.dot_dimension_numbers<[1], [0], [0], [1], [0, 0, 1, 1], [], []>} : vector<16x16xf32>, vector<16x256xf32>, vector<16x256xf32> -> vector<16x256xf32>
    %c0_3 = arith.constant 0 : index
    %c0_4 = arith.constant 0 : index
    %3 = vector.load %arg2[%c0_3, %c0_4] : memref<1x256xf32, #tpu.memory_space<vmem>>, vector<1x256xf32>
    %4 = vector.broadcast %3 : vector<1x256xf32> to vector<16x256xf32>
    %5 = arith.addf %2, %4 : vector<16x256xf32>
    %c0_5 = arith.constant 0 : index
    %c0_6 = arith.constant 0 : index
    %6 = vector.load %arg10[%c0_5, %c0_6] : memref<16x256xf32, #tpu.memory_space<vmem>>, vector<16x256xf32>
    tpu.vector_store %arg10[%c0_5, %c0_6], %5 {strides = array<i32>} : memref<16x256xf32, #tpu.memory_space<vmem>>, vector<16x256xf32>,
    %c0_7 = arith.constant 0 : index
    %c0_8 = arith.constant 0 : index
    %c0_9 = arith.constant 0 : index
    %7 = vector.load %arg5[%c0_7, %c0_8, %c0_9] : memref<2x64x256xf32, #tpu.memory_space<vmem>>, vector<1x64x256xf32>
    %8 = vector.shape_cast %7 : vector<1x64x256xf32> to vector<64x256xf32>
    %cst_10 = arith.constant 0.000000e+00 : f32
    %9 = vector.broadcast %cst_10 : f32 to vector<2x32xf32>
    %c0_11 = arith.constant 0 : index
    %c0_12 = arith.constant 0 : index
    %10 = vector.load %arg10[%c0_11, %c0_12] : memref<16x256xf32, #tpu.memory_space<vmem>>, vector<2x128xf32>
    %c14 = arith.constant 14 : index
    %c128 = arith.constant 128 : index
    %11 = vector.load %arg10[%c14, %c128] : memref<16x256xf32, #tpu.memory_space<vmem>>, vector<2x128xf32>
    %12 = tpu.concatenate %10, %11 in 1 : vector<2x128xf32>, vector<2x128xf32> -> vector<2x256xf32>
    %13 = tpu.concatenate %9, %9 in 1 : vector<2x32xf32>, vector<2x32xf32> -> vector<2x64xf32>
    %cst_13 = arith.constant dense<0.000000e+00> : vector<2x256xf32>
    %14 = tpu.matmul %13, %8, %cst_13 {dimension_numbers = #tpu.dot_dimension_numbers<[1], [0], [0], [1], [0, 0, 1, 1], [], []>} : vector<2x64xf32>, vector<64x256xf32>, vector<2x256xf32> -> vector<2x256xf32>
    %15 = arith.addf %12, %14 : vector<2x256xf32>
    %16 = vector.extract_strided_slice %15 {offsets = [0, 0], sizes = [2, 128], strides = [1, 1]} : vector<2x256xf32> to vector<2x128xf32>
    %17 = vector.extract_strided_slice %16 {offsets = [0, 0], sizes = [2, 96], strides = [1, 1]} : vector<2x128xf32> to vector<2x96xf32>
    %18 = arith.negf %17 : vector<2x96xf32>
    %19 = math.exp %18 : vector<2x96xf32>
    %cst_14 = arith.constant 1.000000e+00 : f32
    %20 = vector.broadcast %cst_14 : f32 to vector<2x96xf32>
    %21 = arith.addf %20, %19 : vector<2x96xf32>
    %22 = arith.divf %20, %21 : vector<2x96xf32>
    %23 = vector.extract_strided_slice %16 {offsets = [0, 96], sizes = [2, 32], strides = [1, 1]} : vector<2x128xf32> to vector<2x32xf32>
    %24 = math.tanh %23 : vector<2x32xf32>
    %25 = vector.extract_strided_slice %22 {offsets = [0, 0], sizes = [2, 32], strides = [1, 1]} : vector<2x96xf32> to vector<2x32xf32>
    %26 = vector.extract_strided_slice %22 {offsets = [0, 32], sizes = [2, 32], strides = [1, 1]} : vector<2x96xf32> to vector<2x32xf32>
    %27 = vector.extract_strided_slice %22 {offsets = [0, 64], sizes = [2, 32], strides = [1, 1]} : vector<2x96xf32> to vector<2x32xf32>
    %28 = arith.mulf %26, %9 : vector<2x32xf32>
    %29 = arith.mulf %25, %24 : vector<2x32xf32>
    %30 = arith.addf %28, %29 : vector<2x32xf32>
    %31 = math.tanh %30 : vector<2x32xf32>
    %32 = arith.mulf %27, %31 : vector<2x32xf32>
    %33 = vector.extract_strided_slice %15 {offsets = [0, 128], sizes = [2, 128], strides = [1, 1]} : vector<2x256xf32> to vector<2x128xf32>
    %34 = vector.extract_strided_slice %33 {offsets = [0, 0], sizes = [2, 96], strides = [1, 1]} : vector<2x128xf32> to vector<2x96xf32>
    %35 = arith.negf %34 : vector<2x96xf32>
    %36 = math.exp %35 : vector<2x96xf32>
    %cst_15 = arith.constant 1.000000e+00 : f32
    %37 = vector.broadcast %cst_15 : f32 to vector<2x96xf32>
    %38 = arith.addf %37, %36 : vector<2x96xf32>
    %39 = arith.divf %37, %38 : vector<2x96xf32>
    %40 = vector.extract_strided_slice %33 {offsets = [0, 96], sizes = [2, 32], strides = [1, 1]} : vector<2x128xf32> to vector<2x32xf32>
    %41 = math.tanh %40 : vector<2x32xf32>
    %42 = vector.extract_strided_slice %39 {offsets = [0, 0], sizes = [2, 32], strides = [1, 1]} : vector<2x96xf32> to vector<2x32xf32>
    %43 = vector.extract_strided_slice %39 {offsets = [0, 32], sizes = [2, 32], strides = [1, 1]} : vector<2x96xf32> to vector<2x32xf32>
    %44 = vector.extract_strided_slice %39 {offsets = [0, 64], sizes = [2, 32], strides = [1, 1]} : vector<2x96xf32> to vector<2x32xf32>
    %45 = arith.mulf %43, %9 : vector<2x32xf32>
    %46 = arith.mulf %42, %41 : vector<2x32xf32>
    %47 = arith.addf %45, %46 : vector<2x32xf32>
    %48 = math.tanh %47 : vector<2x32xf32>
    %49 = arith.mulf %44, %48 : vector<2x32xf32>
    %c0_16 = arith.constant 0 : index
    %c0_17 = arith.constant 0 : index
    %50 = vector.load %arg9[%c0_16, %c0_17] : memref<16x64xf32, #tpu.memory_space<vmem>>, vector<2x32xf32>
    tpu.vector_store %arg9[%c0_16, %c0_17], %32 {strides = array<i32>} : memref<16x64xf32, #tpu.memory_space<vmem>>, vector<2x32xf32>,
    %c14_18 = arith.constant 14 : index
    %c32 = arith.constant 32 : index
    %51 = vector.load %arg9[%c14_18, %c32] : memref<16x64xf32, #tpu.memory_space<vmem>>, vector<2x32xf32>
    tpu.vector_store %arg9[%c14_18, %c32], %49 {strides = array<i32>} : memref<16x64xf32, #tpu.memory_space<vmem>>, vector<2x32xf32>,
    %c2 = arith.constant 2 : index
    %c0_19 = arith.constant 0 : index
    %52 = vector.load %arg10[%c2, %c0_19] : memref<16x256xf32, #tpu.memory_space<vmem>>, vector<2x128xf32>
    %c12 = arith.constant 12 : index
    %c128_20 = arith.constant 128 : index
    %53 = vector.load %arg10[%c12, %c128_20] : memref<16x256xf32, #tpu.memory_space<vmem>>, vector<2x128xf32>
    %54 = tpu.concatenate %52, %53 in 1 : vector<2x128xf32>, vector<2x128xf32> -> vector<2x256xf32>
    %55 = tpu.concatenate %32, %49 in 1 : vector<2x32xf32>, vector<2x32xf32> -> vector<2x64xf32>
    %cst_21 = arith.constant dense<0.000000e+00> : vector<2x256xf32>
    %56 = tpu.matmul %55, %8, %cst_21 {dimension_numbers = #tpu.dot_dimension_numbers<[1], [0], [0], [1], [0, 0, 1, 1], [], []>} : vector<2x64xf32>, vector<64x256xf32>, vector<2x256xf32> -> vector<2x256xf32>
    %57 = arith.addf %54, %56 : vector<2x256xf32>
    %58 = vector.extract_strided_slice %57 {offsets = [0, 0], sizes = [2, 128], strides = [1, 1]} : vector<2x256xf32> to vector<2x128xf32>
    %59 = vector.extract_strided_slice %58 {offsets = [0, 0], sizes = [2, 96], strides = [1, 1]} : vector<2x128xf32> to vector<2x96xf32>
    %60 = arith.negf %59 : vector<2x96xf32>
    %61 = math.exp %60 : vector<2x96xf32>
    %cst_22 = arith.constant 1.000000e+00 : f32
    %62 = vector.broadcast %cst_22 : f32 to vector<2x96xf32>
    %63 = arith.addf %62, %61 : vector<2x96xf32>
    %64 = arith.divf %62, %63 : vector<2x96xf32>
    %65 = vector.extract_strided_slice %58 {offsets = [0, 96], sizes = [2, 32], strides = [1, 1]} : vector<2x128xf32> to vector<2x32xf32>
    %66 = math.tanh %65 : vector<2x32xf32>
    %67 = vector.extract_strided_slice %64 {offsets = [0, 0], sizes = [2, 32], strides = [1, 1]} : vector<2x96xf32> to vector<2x32xf32>
    %68 = vector.extract_strided_slice %64 {offsets = [0, 32], sizes = [2, 32], strides = [1, 1]} : vector<2x96xf32> to vector<2x32xf32>
    %69 = vector.extract_strided_slice %64 {offsets = [0, 64], sizes = [2, 32], strides = [1, 1]} : vector<2x96xf32> to vector<2x32xf32>
    %70 = arith.mulf %68, %30 : vector<2x32xf32>
    %71 = arith.mulf %67, %66 : vector<2x32xf32>
    %72 = arith.addf %70, %71 : vector<2x32xf32>
    %73 = math.tanh %72 : vector<2x32xf32>
    %74 = arith.mulf %69, %73 : vector<2x32xf32>
    %75 = vector.extract_strided_slice %57 {offsets = [0, 128], sizes = [2, 128], strides = [1, 1]} : vector<2x256xf32> to vector<2x128xf32>
    %76 = vector.extract_strided_slice %75 {offsets = [0, 0], sizes = [2, 96], strides = [1, 1]} : vector<2x128xf32> to vector<2x96xf32>
    %77 = arith.negf %76 : vector<2x96xf32>
    %78 = math.exp %77 : vector<2x96xf32>
    %cst_23 = arith.constant 1.000000e+00 : f32
    %79 = vector.broadcast %cst_23 : f32 to vector<2x96xf32>
    %80 = arith.addf %79, %78 : vector<2x96xf32>
    %81 = arith.divf %79, %80 : vector<2x96xf32>
    %82 = vector.extract_strided_slice %75 {offsets = [0, 96], sizes = [2, 32], strides = [1, 1]} : vector<2x128xf32> to vector<2x32xf32>
    %83 = math.tanh %82 : vector<2x32xf32>
    %84 = vector.extract_strided_slice %81 {offsets = [0, 0], sizes = [2, 32], strides = [1, 1]} : vector<2x96xf32> to vector<2x32xf32>
    %85 = vector.extract_strided_slice %81 {offsets = [0, 32], sizes = [2, 32], strides = [1, 1]} : vector<2x96xf32> to vector<2x32xf32>
    %86 = vector.extract_strided_slice %81 {offsets = [0, 64], sizes = [2, 32], strides = [1, 1]} : vector<2x96xf32> to vector<2x32xf32>
    %87 = arith.mulf %85, %47 : vector<2x32xf32>
    %88 = arith.mulf %84, %83 : vector<2x32xf32>
    %89 = arith.addf %87, %88 : vector<2x32xf32>
    %90 = math.tanh %89 : vector<2x32xf32>
    %91 = arith.mulf %86, %90 : vector<2x32xf32>
    %c2_24 = arith.constant 2 : index
    %c0_25 = arith.constant 0 : index
    %92 = vector.load %arg9[%c2_24, %c0_25] : memref<16x64xf32, #tpu.memory_space<vmem>>, vector<2x32xf32>
    tpu.vector_store %arg9[%c2_24, %c0_25], %74 {strides = array<i32>} : memref<16x64xf32, #tpu.memory_space<vmem>>, vector<2x32xf32>,
    %c12_26 = arith.constant 12 : index
    %c32_27 = arith.constant 32 : index
    %93 = vector.load %arg9[%c12_26, %c32_27] : memref<16x64xf32, #tpu.memory_space<vmem>>, vector<2x32xf32>
    tpu.vector_store %arg9[%c12_26, %c32_27], %91 {strides = array<i32>} : memref<16x64xf32, #tpu.memory_space<vmem>>, vector<2x32xf32>,
    %c4 = arith.constant 4 : index
    %c0_28 = arith.constant 0 : index
    %94 = vector.load %arg10[%c4, %c0_28] : memref<16x256xf32, #tpu.memory_space<vmem>>, vector<2x128xf32>
    %c10 = arith.constant 10 : index
    %c128_29 = arith.constant 128 : index
    %95 = vector.load %arg10[%c10, %c128_29] : memref<16x256xf32, #tpu.memory_space<vmem>>, vector<2x128xf32>
    %96 = tpu.concatenate %94, %95 in 1 : vector<2x128xf32>, vector<2x128xf32> -> vector<2x256xf32>
    %97 = tpu.concatenate %74, %91 in 1 : vector<2x32xf32>, vector<2x32xf32> -> vector<2x64xf32>
    %cst_30 = arith.constant dense<0.000000e+00> : vector<2x256xf32>
    %98 = tpu.matmul %97, %8, %cst_30 {dimension_numbers = #tpu.dot_dimension_numbers<[1], [0], [0], [1], [0, 0, 1, 1], [], []>} : vector<2x64xf32>, vector<64x256xf32>, vector<2x256xf32> -> vector<2x256xf32>
    %99 = arith.addf %96, %98 : vector<2x256xf32>
    %100 = vector.extract_strided_slice %99 {offsets = [0, 0], sizes = [2, 128], strides = [1, 1]} : vector<2x256xf32> to vector<2x128xf32>
    %101 = vector.extract_strided_slice %100 {offsets = [0, 0], sizes = [2, 96], strides = [1, 1]} : vector<2x128xf32> to vector<2x96xf32>
    %102 = arith.negf %101 : vector<2x96xf32>
    %103 = math.exp %102 : vector<2x96xf32>
    %cst_31 = arith.constant 1.000000e+00 : f32
    %104 = vector.broadcast %cst_31 : f32 to vector<2x96xf32>
    %105 = arith.addf %104, %103 : vector<2x96xf32>
    %106 = arith.divf %104, %105 : vector<2x96xf32>
    %107 = vector.extract_strided_slice %100 {offsets = [0, 96], sizes = [2, 32], strides = [1, 1]} : vector<2x128xf32> to vector<2x32xf32>
    %108 = math.tanh %107 : vector<2x32xf32>
    %109 = vector.extract_strided_slice %106 {offsets = [0, 0], sizes = [2, 32], strides = [1, 1]} : vector<2x96xf32> to vector<2x32xf32>
    %110 = vector.extract_strided_slice %106 {offsets = [0, 32], sizes = [2, 32], strides = [1, 1]} : vector<2x96xf32> to vector<2x32xf32>
    %111 = vector.extract_strided_slice %106 {offsets = [0, 64], sizes = [2, 32], strides = [1, 1]} : vector<2x96xf32> to vector<2x32xf32>
    %112 = arith.mulf %110, %72 : vector<2x32xf32>
    %113 = arith.mulf %109, %108 : vector<2x32xf32>
    %114 = arith.addf %112, %113 : vector<2x32xf32>
    %115 = math.tanh %114 : vector<2x32xf32>
    %116 = arith.mulf %111, %115 : vector<2x32xf32>
    %117 = vector.extract_strided_slice %99 {offsets = [0, 128], sizes = [2, 128], strides = [1, 1]} : vector<2x256xf32> to vector<2x128xf32>
    %118 = vector.extract_strided_slice %117 {offsets = [0, 0], sizes = [2, 96], strides = [1, 1]} : vector<2x128xf32> to vector<2x96xf32>
    %119 = arith.negf %118 : vector<2x96xf32>
    %120 = math.exp %119 : vector<2x96xf32>
    %cst_32 = arith.constant 1.000000e+00 : f32
    %121 = vector.broadcast %cst_32 : f32 to vector<2x96xf32>
    %122 = arith.addf %121, %120 : vector<2x96xf32>
    %123 = arith.divf %121, %122 : vector<2x96xf32>
    %124 = vector.extract_strided_slice %117 {offsets = [0, 96], sizes = [2, 32], strides = [1, 1]} : vector<2x128xf32> to vector<2x32xf32>
    %125 = math.tanh %124 : vector<2x32xf32>
    %126 = vector.extract_strided_slice %123 {offsets = [0, 0], sizes = [2, 32], strides = [1, 1]} : vector<2x96xf32> to vector<2x32xf32>
    %127 = vector.extract_strided_slice %123 {offsets = [0, 32], sizes = [2, 32], strides = [1, 1]} : vector<2x96xf32> to vector<2x32xf32>
    %128 = vector.extract_strided_slice %123 {offsets = [0, 64], sizes = [2, 32], strides = [1, 1]} : vector<2x96xf32> to vector<2x32xf32>
    %129 = arith.mulf %127, %89 : vector<2x32xf32>
    %130 = arith.mulf %126, %125 : vector<2x32xf32>
    %131 = arith.addf %129, %130 : vector<2x32xf32>
    %132 = math.tanh %131 : vector<2x32xf32>
    %133 = arith.mulf %128, %132 : vector<2x32xf32>
    %c4_33 = arith.constant 4 : index
    %c0_34 = arith.constant 0 : index
    %134 = vector.load %arg9[%c4_33, %c0_34] : memref<16x64xf32, #tpu.memory_space<vmem>>, vector<2x32xf32>
    tpu.vector_store %arg9[%c4_33, %c0_34], %116 {strides = array<i32>} : memref<16x64xf32, #tpu.memory_space<vmem>>, vector<2x32xf32>,
    %c10_35 = arith.constant 10 : index
    %c32_36 = arith.constant 32 : index
    %135 = vector.load %arg9[%c10_35, %c32_36] : memref<16x64xf32, #tpu.memory_space<vmem>>, vector<2x32xf32>
    tpu.vector_store %arg9[%c10_35, %c32_36], %133 {strides = array<i32>} : memref<16x64xf32, #tpu.memory_space<vmem>>, vector<2x32xf32>,
    %c6 = arith.constant 6 : index
    %c0_37 = arith.constant 0 : index
    %136 = vector.load %arg10[%c6, %c0_37] : memref<16x256xf32, #tpu.memory_space<vmem>>, vector<2x128xf32>
    %c8 = arith.constant 8 : index
    %c128_38 = arith.constant 128 : index
    %137 = vector.load %arg10[%c8, %c128_38] : memref<16x256xf32, #tpu.memory_space<vmem>>, vector<2x128xf32>
    %138 = tpu.concatenate %136, %137 in 1 : vector<2x128xf32>, vector<2x128xf32> -> vector<2x256xf32>
    %139 = tpu.concatenate %116, %133 in 1 : vector<2x32xf32>, vector<2x32xf32> -> vector<2x64xf32>
    %cst_39 = arith.constant dense<0.000000e+00> : vector<2x256xf32>
    %140 = tpu.matmul %139, %8, %cst_39 {dimension_numbers = #tpu.dot_dimension_numbers<[1], [0], [0], [1], [0, 0, 1, 1], [], []>} : vector<2x64xf32>, vector<64x256xf32>, vector<2x256xf32> -> vector<2x256xf32>
    %141 = arith.addf %138, %140 : vector<2x256xf32>
    %142 = vector.extract_strided_slice %141 {offsets = [0, 0], sizes = [2, 128], strides = [1, 1]} : vector<2x256xf32> to vector<2x128xf32>
    %143 = vector.extract_strided_slice %142 {offsets = [0, 0], sizes = [2, 96], strides = [1, 1]} : vector<2x128xf32> to vector<2x96xf32>
    %144 = arith.negf %143 : vector<2x96xf32>
    %145 = math.exp %144 : vector<2x96xf32>
    %cst_40 = arith.constant 1.000000e+00 : f32
    %146 = vector.broadcast %cst_40 : f32 to vector<2x96xf32>
    %147 = arith.addf %146, %145 : vector<2x96xf32>
    %148 = arith.divf %146, %147 : vector<2x96xf32>
    %149 = vector.extract_strided_slice %142 {offsets = [0, 96], sizes = [2, 32], strides = [1, 1]} : vector<2x128xf32> to vector<2x32xf32>
    %150 = math.tanh %149 : vector<2x32xf32>
    %151 = vector.extract_strided_slice %148 {offsets = [0, 0], sizes = [2, 32], strides = [1, 1]} : vector<2x96xf32> to vector<2x32xf32>
    %152 = vector.extract_strided_slice %148 {offsets = [0, 32], sizes = [2, 32], strides = [1, 1]} : vector<2x96xf32> to vector<2x32xf32>
    %153 = vector.extract_strided_slice %148 {offsets = [0, 64], sizes = [2, 32], strides = [1, 1]} : vector<2x96xf32> to vector<2x32xf32>
    %154 = arith.mulf %152, %114 : vector<2x32xf32>
    %155 = arith.mulf %151, %150 : vector<2x32xf32>
    %156 = arith.addf %154, %155 : vector<2x32xf32>
    %157 = math.tanh %156 : vector<2x32xf32>
    %158 = arith.mulf %153, %157 : vector<2x32xf32>
    %159 = vector.extract_strided_slice %141 {offsets = [0, 128], sizes = [2, 128], strides = [1, 1]} : vector<2x256xf32> to vector<2x128xf32>
    %160 = vector.extract_strided_slice %159 {offsets = [0, 0], sizes = [2, 96], strides = [1, 1]} : vector<2x128xf32> to vector<2x96xf32>
    %161 = arith.negf %160 : vector<2x96xf32>
    %162 = math.exp %161 : vector<2x96xf32>
    %cst_41 = arith.constant 1.000000e+00 : f32
    %163 = vector.broadcast %cst_41 : f32 to vector<2x96xf32>
    %164 = arith.addf %163, %162 : vector<2x96xf32>
    %165 = arith.divf %163, %164 : vector<2x96xf32>
    %166 = vector.extract_strided_slice %159 {offsets = [0, 96], sizes = [2, 32], strides = [1, 1]} : vector<2x128xf32> to vector<2x32xf32>
    %167 = math.tanh %166 : vector<2x32xf32>
    %168 = vector.extract_strided_slice %165 {offsets = [0, 0], sizes = [2, 32], strides = [1, 1]} : vector<2x96xf32> to vector<2x32xf32>
    %169 = vector.extract_strided_slice %165 {offsets = [0, 32], sizes = [2, 32], strides = [1, 1]} : vector<2x96xf32> to vector<2x32xf32>
    %170 = vector.extract_strided_slice %165 {offsets = [0, 64], sizes = [2, 32], strides = [1, 1]} : vector<2x96xf32> to vector<2x32xf32>
    %171 = arith.mulf %169, %131 : vector<2x32xf32>
    %172 = arith.mulf %168, %167 : vector<2x32xf32>
    %173 = arith.addf %171, %172 : vector<2x32xf32>
    %174 = math.tanh %173 : vector<2x32xf32>
    %175 = arith.mulf %170, %174 : vector<2x32xf32>
    %c6_42 = arith.constant 6 : index
    %c0_43 = arith.constant 0 : index
    %176 = vector.load %arg9[%c6_42, %c0_43] : memref<16x64xf32, #tpu.memory_space<vmem>>, vector<2x32xf32>
    tpu.vector_store %arg9[%c6_42, %c0_43], %158 {strides = array<i32>} : memref<16x64xf32, #tpu.memory_space<vmem>>, vector<2x32xf32>,
    %c8_44 = arith.constant 8 : index
    %c32_45 = arith.constant 32 : index
    %177 = vector.load %arg9[%c8_44, %c32_45] : memref<16x64xf32, #tpu.memory_space<vmem>>, vector<2x32xf32>
    tpu.vector_store %arg9[%c8_44, %c32_45], %175 {strides = array<i32>} : memref<16x64xf32, #tpu.memory_space<vmem>>, vector<2x32xf32>,
    %c8_46 = arith.constant 8 : index
    %c0_47 = arith.constant 0 : index
    %178 = vector.load %arg10[%c8_46, %c0_47] : memref<16x256xf32, #tpu.memory_space<vmem>>, vector<2x128xf32>
    %c6_48 = arith.constant 6 : index
    %c128_49 = arith.constant 128 : index
    %179 = vector.load %arg10[%c6_48, %c128_49] : memref<16x256xf32, #tpu.memory_space<vmem>>, vector<2x128xf32>
    %180 = tpu.concatenate %178, %179 in 1 : vector<2x128xf32>, vector<2x128xf32> -> vector<2x256xf32>
    %181 = tpu.concatenate %158, %175 in 1 : vector<2x32xf32>, vector<2x32xf32> -> vector<2x64xf32>
    %cst_50 = arith.constant dense<0.000000e+00> : vector<2x256xf32>
    %182 = tpu.matmul %181, %8, %cst_50 {dimension_numbers = #tpu.dot_dimension_numbers<[1], [0], [0], [1], [0, 0, 1, 1], [], []>} : vector<2x64xf32>, vector<64x256xf32>, vector<2x256xf32> -> vector<2x256xf32>
    %183 = arith.addf %180, %182 : vector<2x256xf32>
    %184 = vector.extract_strided_slice %183 {offsets = [0, 0], sizes = [2, 128], strides = [1, 1]} : vector<2x256xf32> to vector<2x128xf32>
    %185 = vector.extract_strided_slice %184 {offsets = [0, 0], sizes = [2, 96], strides = [1, 1]} : vector<2x128xf32> to vector<2x96xf32>
    %186 = arith.negf %185 : vector<2x96xf32>
    %187 = math.exp %186 : vector<2x96xf32>
    %cst_51 = arith.constant 1.000000e+00 : f32
    %188 = vector.broadcast %cst_51 : f32 to vector<2x96xf32>
    %189 = arith.addf %188, %187 : vector<2x96xf32>
    %190 = arith.divf %188, %189 : vector<2x96xf32>
    %191 = vector.extract_strided_slice %184 {offsets = [0, 96], sizes = [2, 32], strides = [1, 1]} : vector<2x128xf32> to vector<2x32xf32>
    %192 = math.tanh %191 : vector<2x32xf32>
    %193 = vector.extract_strided_slice %190 {offsets = [0, 0], sizes = [2, 32], strides = [1, 1]} : vector<2x96xf32> to vector<2x32xf32>
    %194 = vector.extract_strided_slice %190 {offsets = [0, 32], sizes = [2, 32], strides = [1, 1]} : vector<2x96xf32> to vector<2x32xf32>
    %195 = vector.extract_strided_slice %190 {offsets = [0, 64], sizes = [2, 32], strides = [1, 1]} : vector<2x96xf32> to vector<2x32xf32>
    %196 = arith.mulf %194, %156 : vector<2x32xf32>
    %197 = arith.mulf %193, %192 : vector<2x32xf32>
    %198 = arith.addf %196, %197 : vector<2x32xf32>
    %199 = math.tanh %198 : vector<2x32xf32>
    %200 = arith.mulf %195, %199 : vector<2x32xf32>
    %201 = vector.extract_strided_slice %183 {offsets = [0, 128], sizes = [2, 128], strides = [1, 1]} : vector<2x256xf32> to vector<2x128xf32>
    %202 = vector.extract_strided_slice %201 {offsets = [0, 0], sizes = [2, 96], strides = [1, 1]} : vector<2x128xf32> to vector<2x96xf32>
    %203 = arith.negf %202 : vector<2x96xf32>
    %204 = math.exp %203 : vector<2x96xf32>
    %cst_52 = arith.constant 1.000000e+00 : f32
    %205 = vector.broadcast %cst_52 : f32 to vector<2x96xf32>
    %206 = arith.addf %205, %204 : vector<2x96xf32>
    %207 = arith.divf %205, %206 : vector<2x96xf32>
    %208 = vector.extract_strided_slice %201 {offsets = [0, 96], sizes = [2, 32], strides = [1, 1]} : vector<2x128xf32> to vector<2x32xf32>
    %209 = math.tanh %208 : vector<2x32xf32>
    %210 = vector.extract_strided_slice %207 {offsets = [0, 0], sizes = [2, 32], strides = [1, 1]} : vector<2x96xf32> to vector<2x32xf32>
    %211 = vector.extract_strided_slice %207 {offsets = [0, 32], sizes = [2, 32], strides = [1, 1]} : vector<2x96xf32> to vector<2x32xf32>
    %212 = vector.extract_strided_slice %207 {offsets = [0, 64], sizes = [2, 32], strides = [1, 1]} : vector<2x96xf32> to vector<2x32xf32>
    %213 = arith.mulf %211, %173 : vector<2x32xf32>
    %214 = arith.mulf %210, %209 : vector<2x32xf32>
    %215 = arith.addf %213, %214 : vector<2x32xf32>
    %216 = math.tanh %215 : vector<2x32xf32>
    %217 = arith.mulf %212, %216 : vector<2x32xf32>
    %c8_53 = arith.constant 8 : index
    %c0_54 = arith.constant 0 : index
    %218 = vector.load %arg9[%c8_53, %c0_54] : memref<16x64xf32, #tpu.memory_space<vmem>>, vector<2x32xf32>
    tpu.vector_store %arg9[%c8_53, %c0_54], %200 {strides = array<i32>} : memref<16x64xf32, #tpu.memory_space<vmem>>, vector<2x32xf32>,
    %c6_55 = arith.constant 6 : index
    %c32_56 = arith.constant 32 : index
    %219 = vector.load %arg9[%c6_55, %c32_56] : memref<16x64xf32, #tpu.memory_space<vmem>>, vector<2x32xf32>
    tpu.vector_store %arg9[%c6_55, %c32_56], %217 {strides = array<i32>} : memref<16x64xf32, #tpu.memory_space<vmem>>, vector<2x32xf32>,
    %c10_57 = arith.constant 10 : index
    %c0_58 = arith.constant 0 : index
    %220 = vector.load %arg10[%c10_57, %c0_58] : memref<16x256xf32, #tpu.memory_space<vmem>>, vector<2x128xf32>
    %c4_59 = arith.constant 4 : index
    %c128_60 = arith.constant 128 : index
    %221 = vector.load %arg10[%c4_59, %c128_60] : memref<16x256xf32, #tpu.memory_space<vmem>>, vector<2x128xf32>
    %222 = tpu.concatenate %220, %221 in 1 : vector<2x128xf32>, vector<2x128xf32> -> vector<2x256xf32>
    %223 = tpu.concatenate %200, %217 in 1 : vector<2x32xf32>, vector<2x32xf32> -> vector<2x64xf32>
    %cst_61 = arith.constant dense<0.000000e+00> : vector<2x256xf32>
    %224 = tpu.matmul %223, %8, %cst_61 {dimension_numbers = #tpu.dot_dimension_numbers<[1], [0], [0], [1], [0, 0, 1, 1], [], []>} : vector<2x64xf32>, vector<64x256xf32>, vector<2x256xf32> -> vector<2x256xf32>
    %225 = arith.addf %222, %224 : vector<2x256xf32>
    %226 = vector.extract_strided_slice %225 {offsets = [0, 0], sizes = [2, 128], strides = [1, 1]} : vector<2x256xf32> to vector<2x128xf32>
    %227 = vector.extract_strided_slice %226 {offsets = [0, 0], sizes = [2, 96], strides = [1, 1]} : vector<2x128xf32> to vector<2x96xf32>
    %228 = arith.negf %227 : vector<2x96xf32>
    %229 = math.exp %228 : vector<2x96xf32>
    %cst_62 = arith.constant 1.000000e+00 : f32
    %230 = vector.broadcast %cst_62 : f32 to vector<2x96xf32>
    %231 = arith.addf %230, %229 : vector<2x96xf32>
    %232 = arith.divf %230, %231 : vector<2x96xf32>
    %233 = vector.extract_strided_slice %226 {offsets = [0, 96], sizes = [2, 32], strides = [1, 1]} : vector<2x128xf32> to vector<2x32xf32>
    %234 = math.tanh %233 : vector<2x32xf32>
    %235 = vector.extract_strided_slice %232 {offsets = [0, 0], sizes = [2, 32], strides = [1, 1]} : vector<2x96xf32> to vector<2x32xf32>
    %236 = vector.extract_strided_slice %232 {offsets = [0, 32], sizes = [2, 32], strides = [1, 1]} : vector<2x96xf32> to vector<2x32xf32>
    %237 = vector.extract_strided_slice %232 {offsets = [0, 64], sizes = [2, 32], strides = [1, 1]} : vector<2x96xf32> to vector<2x32xf32>
    %238 = arith.mulf %236, %198 : vector<2x32xf32>
    %239 = arith.mulf %235, %234 : vector<2x32xf32>
    %240 = arith.addf %238, %239 : vector<2x32xf32>
    %241 = math.tanh %240 : vector<2x32xf32>
    %242 = arith.mulf %237, %241 : vector<2x32xf32>
    %243 = vector.extract_strided_slice %225 {offsets = [0, 128], sizes = [2, 128], strides = [1, 1]} : vector<2x256xf32> to vector<2x128xf32>
    %244 = vector.extract_strided_slice %243 {offsets = [0, 0], sizes = [2, 96], strides = [1, 1]} : vector<2x128xf32> to vector<2x96xf32>
    %245 = arith.negf %244 : vector<2x96xf32>
    %246 = math.exp %245 : vector<2x96xf32>
    %cst_63 = arith.constant 1.000000e+00 : f32
    %247 = vector.broadcast %cst_63 : f32 to vector<2x96xf32>
    %248 = arith.addf %247, %246 : vector<2x96xf32>
    %249 = arith.divf %247, %248 : vector<2x96xf32>
    %250 = vector.extract_strided_slice %243 {offsets = [0, 96], sizes = [2, 32], strides = [1, 1]} : vector<2x128xf32> to vector<2x32xf32>
    %251 = math.tanh %250 : vector<2x32xf32>
    %252 = vector.extract_strided_slice %249 {offsets = [0, 0], sizes = [2, 32], strides = [1, 1]} : vector<2x96xf32> to vector<2x32xf32>
    %253 = vector.extract_strided_slice %249 {offsets = [0, 32], sizes = [2, 32], strides = [1, 1]} : vector<2x96xf32> to vector<2x32xf32>
    %254 = vector.extract_strided_slice %249 {offsets = [0, 64], sizes = [2, 32], strides = [1, 1]} : vector<2x96xf32> to vector<2x32xf32>
    %255 = arith.mulf %253, %215 : vector<2x32xf32>
    %256 = arith.mulf %252, %251 : vector<2x32xf32>
    %257 = arith.addf %255, %256 : vector<2x32xf32>
    %258 = math.tanh %257 : vector<2x32xf32>
    %259 = arith.mulf %254, %258 : vector<2x32xf32>
    %c10_64 = arith.constant 10 : index
    %c0_65 = arith.constant 0 : index
    %260 = vector.load %arg9[%c10_64, %c0_65] : memref<16x64xf32, #tpu.memory_space<vmem>>, vector<2x32xf32>
    tpu.vector_store %arg9[%c10_64, %c0_65], %242 {strides = array<i32>} : memref<16x64xf32, #tpu.memory_space<vmem>>, vector<2x32xf32>,
    %c4_66 = arith.constant 4 : index
    %c32_67 = arith.constant 32 : index
    %261 = vector.load %arg9[%c4_66, %c32_67] : memref<16x64xf32, #tpu.memory_space<vmem>>, vector<2x32xf32>
    tpu.vector_store %arg9[%c4_66, %c32_67], %259 {strides = array<i32>} : memref<16x64xf32, #tpu.memory_space<vmem>>, vector<2x32xf32>,
    %c12_68 = arith.constant 12 : index
    %c0_69 = arith.constant 0 : index
    %262 = vector.load %arg10[%c12_68, %c0_69] : memref<16x256xf32, #tpu.memory_space<vmem>>, vector<2x128xf32>
    %c2_70 = arith.constant 2 : index
    %c128_71 = arith.constant 128 : index
    %263 = vector.load %arg10[%c2_70, %c128_71] : memref<16x256xf32, #tpu.memory_space<vmem>>, vector<2x128xf32>
    %264 = tpu.concatenate %262, %263 in 1 : vector<2x128xf32>, vector<2x128xf32> -> vector<2x256xf32>
    %265 = tpu.concatenate %242, %259 in 1 : vector<2x32xf32>, vector<2x32xf32> -> vector<2x64xf32>
    %cst_72 = arith.constant dense<0.000000e+00> : vector<2x256xf32>
    %266 = tpu.matmul %265, %8, %cst_72 {dimension_numbers = #tpu.dot_dimension_numbers<[1], [0], [0], [1], [0, 0, 1, 1], [], []>} : vector<2x64xf32>, vector<64x256xf32>, vector<2x256xf32> -> vector<2x256xf32>
    %267 = arith.addf %264, %266 : vector<2x256xf32>
    %268 = vector.extract_strided_slice %267 {offsets = [0, 0], sizes = [2, 128], strides = [1, 1]} : vector<2x256xf32> to vector<2x128xf32>
    %269 = vector.extract_strided_slice %268 {offsets = [0, 0], sizes = [2, 96], strides = [1, 1]} : vector<2x128xf32> to vector<2x96xf32>
    %270 = arith.negf %269 : vector<2x96xf32>
    %271 = math.exp %270 : vector<2x96xf32>
    %cst_73 = arith.constant 1.000000e+00 : f32
    %272 = vector.broadcast %cst_73 : f32 to vector<2x96xf32>
    %273 = arith.addf %272, %271 : vector<2x96xf32>
    %274 = arith.divf %272, %273 : vector<2x96xf32>
    %275 = vector.extract_strided_slice %268 {offsets = [0, 96], sizes = [2, 32], strides = [1, 1]} : vector<2x128xf32> to vector<2x32xf32>
    %276 = math.tanh %275 : vector<2x32xf32>
    %277 = vector.extract_strided_slice %274 {offsets = [0, 0], sizes = [2, 32], strides = [1, 1]} : vector<2x96xf32> to vector<2x32xf32>
    %278 = vector.extract_strided_slice %274 {offsets = [0, 32], sizes = [2, 32], strides = [1, 1]} : vector<2x96xf32> to vector<2x32xf32>
    %279 = vector.extract_strided_slice %274 {offsets = [0, 64], sizes = [2, 32], strides = [1, 1]} : vector<2x96xf32> to vector<2x32xf32>
    %280 = arith.mulf %278, %240 : vector<2x32xf32>
    %281 = arith.mulf %277, %276 : vector<2x32xf32>
    %282 = arith.addf %280, %281 : vector<2x32xf32>
    %283 = math.tanh %282 : vector<2x32xf32>
    %284 = arith.mulf %279, %283 : vector<2x32xf32>
    %285 = vector.extract_strided_slice %267 {offsets = [0, 128], sizes = [2, 128], strides = [1, 1]} : vector<2x256xf32> to vector<2x128xf32>
    %286 = vector.extract_strided_slice %285 {offsets = [0, 0], sizes = [2, 96], strides = [1, 1]} : vector<2x128xf32> to vector<2x96xf32>
    %287 = arith.negf %286 : vector<2x96xf32>
    %288 = math.exp %287 : vector<2x96xf32>
    %cst_74 = arith.constant 1.000000e+00 : f32
    %289 = vector.broadcast %cst_74 : f32 to vector<2x96xf32>
    %290 = arith.addf %289, %288 : vector<2x96xf32>
    %291 = arith.divf %289, %290 : vector<2x96xf32>
    %292 = vector.extract_strided_slice %285 {offsets = [0, 96], sizes = [2, 32], strides = [1, 1]} : vector<2x128xf32> to vector<2x32xf32>
    %293 = math.tanh %292 : vector<2x32xf32>
    %294 = vector.extract_strided_slice %291 {offsets = [0, 0], sizes = [2, 32], strides = [1, 1]} : vector<2x96xf32> to vector<2x32xf32>
    %295 = vector.extract_strided_slice %291 {offsets = [0, 32], sizes = [2, 32], strides = [1, 1]} : vector<2x96xf32> to vector<2x32xf32>
    %296 = vector.extract_strided_slice %291 {offsets = [0, 64], sizes = [2, 32], strides = [1, 1]} : vector<2x96xf32> to vector<2x32xf32>
    %297 = arith.mulf %295, %257 : vector<2x32xf32>
    %298 = arith.mulf %294, %293 : vector<2x32xf32>
    %299 = arith.addf %297, %298 : vector<2x32xf32>
    %300 = math.tanh %299 : vector<2x32xf32>
    %301 = arith.mulf %296, %300 : vector<2x32xf32>
    %c12_75 = arith.constant 12 : index
    %c0_76 = arith.constant 0 : index
    %302 = vector.load %arg9[%c12_75, %c0_76] : memref<16x64xf32, #tpu.memory_space<vmem>>, vector<2x32xf32>
    tpu.vector_store %arg9[%c12_75, %c0_76], %284 {strides = array<i32>} : memref<16x64xf32, #tpu.memory_space<vmem>>, vector<2x32xf32>,
    %c2_77 = arith.constant 2 : index
    %c32_78 = arith.constant 32 : index
    %303 = vector.load %arg9[%c2_77, %c32_78] : memref<16x64xf32, #tpu.memory_space<vmem>>, vector<2x32xf32>
    tpu.vector_store %arg9[%c2_77, %c32_78], %301 {strides = array<i32>} : memref<16x64xf32, #tpu.memory_space<vmem>>, vector<2x32xf32>,
    %c14_79 = arith.constant 14 : index
    %c0_80 = arith.constant 0 : index
    %304 = vector.load %arg10[%c14_79, %c0_80] : memref<16x256xf32, #tpu.memory_space<vmem>>, vector<2x128xf32>
    %c0_81 = arith.constant 0 : index
    %c128_82 = arith.constant 128 : index
    %305 = vector.load %arg10[%c0_81, %c128_82] : memref<16x256xf32, #tpu.memory_space<vmem>>, vector<2x128xf32>
    %306 = tpu.concatenate %304, %305 in 1 : vector<2x128xf32>, vector<2x128xf32> -> vector<2x256xf32>
    %307 = tpu.concatenate %284, %301 in 1 : vector<2x32xf32>, vector<2x32xf32> -> vector<2x64xf32>
    %cst_83 = arith.constant dense<0.000000e+00> : vector<2x256xf32>
    %308 = tpu.matmul %307, %8, %cst_83 {dimension_numbers = #tpu.dot_dimension_numbers<[1], [0], [0], [1], [0, 0, 1, 1], [], []>} : vector<2x64xf32>, vector<64x256xf32>, vector<2x256xf32> -> vector<2x256xf32>
    %309 = arith.addf %306, %308 : vector<2x256xf32>
    %310 = vector.extract_strided_slice %309 {offsets = [0, 0], sizes = [2, 128], strides = [1, 1]} : vector<2x256xf32> to vector<2x128xf32>
    %311 = vector.extract_strided_slice %310 {offsets = [0, 0], sizes = [2, 96], strides = [1, 1]} : vector<2x128xf32> to vector<2x96xf32>
    %312 = arith.negf %311 : vector<2x96xf32>
    %313 = math.exp %312 : vector<2x96xf32>
    %cst_84 = arith.constant 1.000000e+00 : f32
    %314 = vector.broadcast %cst_84 : f32 to vector<2x96xf32>
    %315 = arith.addf %314, %313 : vector<2x96xf32>
    %316 = arith.divf %314, %315 : vector<2x96xf32>
    %317 = vector.extract_strided_slice %310 {offsets = [0, 96], sizes = [2, 32], strides = [1, 1]} : vector<2x128xf32> to vector<2x32xf32>
    %318 = math.tanh %317 : vector<2x32xf32>
    %319 = vector.extract_strided_slice %316 {offsets = [0, 0], sizes = [2, 32], strides = [1, 1]} : vector<2x96xf32> to vector<2x32xf32>
    %320 = vector.extract_strided_slice %316 {offsets = [0, 32], sizes = [2, 32], strides = [1, 1]} : vector<2x96xf32> to vector<2x32xf32>
    %321 = vector.extract_strided_slice %316 {offsets = [0, 64], sizes = [2, 32], strides = [1, 1]} : vector<2x96xf32> to vector<2x32xf32>
    %322 = arith.mulf %320, %282 : vector<2x32xf32>
    %323 = arith.mulf %319, %318 : vector<2x32xf32>
    %324 = arith.addf %322, %323 : vector<2x32xf32>
    %325 = math.tanh %324 : vector<2x32xf32>
    %326 = arith.mulf %321, %325 : vector<2x32xf32>
    %327 = vector.extract_strided_slice %309 {offsets = [0, 128], sizes = [2, 128], strides = [1, 1]} : vector<2x256xf32> to vector<2x128xf32>
    %328 = vector.extract_strided_slice %327 {offsets = [0, 0], sizes = [2, 96], strides = [1, 1]} : vector<2x128xf32> to vector<2x96xf32>
    %329 = arith.negf %328 : vector<2x96xf32>
    %330 = math.exp %329 : vector<2x96xf32>
    %cst_85 = arith.constant 1.000000e+00 : f32
    %331 = vector.broadcast %cst_85 : f32 to vector<2x96xf32>
    %332 = arith.addf %331, %330 : vector<2x96xf32>
    %333 = arith.divf %331, %332 : vector<2x96xf32>
    %334 = vector.extract_strided_slice %327 {offsets = [0, 96], sizes = [2, 32], strides = [1, 1]} : vector<2x128xf32> to vector<2x32xf32>
    %335 = math.tanh %334 : vector<2x32xf32>
    %336 = vector.extract_strided_slice %333 {offsets = [0, 0], sizes = [2, 32], strides = [1, 1]} : vector<2x96xf32> to vector<2x32xf32>
    %337 = vector.extract_strided_slice %333 {offsets = [0, 32], sizes = [2, 32], strides = [1, 1]} : vector<2x96xf32> to vector<2x32xf32>
    %338 = vector.extract_strided_slice %333 {offsets = [0, 64], sizes = [2, 32], strides = [1, 1]} : vector<2x96xf32> to vector<2x32xf32>
    %339 = arith.mulf %337, %299 : vector<2x32xf32>
    %340 = arith.mulf %336, %335 : vector<2x32xf32>
    %341 = arith.addf %339, %340 : vector<2x32xf32>
    %342 = math.tanh %341 : vector<2x32xf32>
    %343 = arith.mulf %338, %342 : vector<2x32xf32>
    %c14_86 = arith.constant 14 : index
    %c0_87 = arith.constant 0 : index
    %344 = vector.load %arg9[%c14_86, %c0_87] : memref<16x64xf32, #tpu.memory_space<vmem>>, vector<2x32xf32>
    tpu.vector_store %arg9[%c14_86, %c0_87], %326 {strides = array<i32>} : memref<16x64xf32, #tpu.memory_space<vmem>>, vector<2x32xf32>,
    %c0_88 = arith.constant 0 : index
    %c32_89 = arith.constant 32 : index
    %345 = vector.load %arg9[%c0_88, %c32_89] : memref<16x64xf32, #tpu.memory_space<vmem>>, vector<2x32xf32>
    tpu.vector_store %arg9[%c0_88, %c32_89], %343 {strides = array<i32>} : memref<16x64xf32, #tpu.memory_space<vmem>>, vector<2x32xf32>,
    %c0_90 = arith.constant 0 : index
    %c0_91 = arith.constant 0 : index
    %346 = vector.load %arg9[%c0_90, %c0_91] : memref<16x64xf32, #tpu.memory_space<vmem>>, vector<16x64xf32>
    %c0_92 = arith.constant 0 : index
    %c0_93 = arith.constant 0 : index
    %c0_94 = arith.constant 0 : index
    %347 = vector.load %arg3[%c0_92, %c0_93, %c0_94] : memref<1x64x256xf32, #tpu.memory_space<vmem>>, vector<1x64x256xf32>
    %348 = vector.shape_cast %347 : vector<1x64x256xf32> to vector<64x256xf32>
    %cst_95 = arith.constant dense<0.000000e+00> : vector<16x256xf32>
    %349 = tpu.matmul %346, %348, %cst_95 {dimension_numbers = #tpu.dot_dimension_numbers<[1], [0], [0], [1], [0, 0, 1, 1], [], []>} : vector<16x64xf32>, vector<64x256xf32>, vector<16x256xf32> -> vector<16x256xf32>
    %c0_96 = arith.constant 0 : index
    %c0_97 = arith.constant 0 : index
    %c0_98 = arith.constant 0 : index
    %350 = vector.load %arg4[%c0_96, %c0_97, %c0_98] : memref<1x1x256xf32, #tpu.memory_space<vmem>>, vector<1x1x256xf32>
    %351 = vector.shape_cast %350 : vector<1x1x256xf32> to vector<1x256xf32>
    %352 = vector.broadcast %351 : vector<1x256xf32> to vector<16x256xf32>
    %353 = arith.addf %349, %352 : vector<16x256xf32>
    %c0_99 = arith.constant 0 : index
    %c0_100 = arith.constant 0 : index
    %354 = vector.load %arg10[%c0_99, %c0_100] : memref<16x256xf32, #tpu.memory_space<vmem>>, vector<16x256xf32>
    tpu.vector_store %arg10[%c0_99, %c0_100], %353 {strides = array<i32>} : memref<16x256xf32, #tpu.memory_space<vmem>>, vector<16x256xf32>,
    %c1 = arith.constant 1 : index
    %c0_101 = arith.constant 0 : index
    %c0_102 = arith.constant 0 : index
    %355 = vector.load %arg5[%c1, %c0_101, %c0_102] : memref<2x64x256xf32, #tpu.memory_space<vmem>>, vector<1x64x256xf32>
    %356 = vector.shape_cast %355 : vector<1x64x256xf32> to vector<64x256xf32>
    %cst_103 = arith.constant 0.000000e+00 : f32
    %357 = vector.broadcast %cst_103 : f32 to vector<2x32xf32>
    %c0_104 = arith.constant 0 : index
    %c0_105 = arith.constant 0 : index
    %358 = vector.load %arg10[%c0_104, %c0_105] : memref<16x256xf32, #tpu.memory_space<vmem>>, vector<2x128xf32>
    %c14_106 = arith.constant 14 : index
    %c128_107 = arith.constant 128 : index
    %359 = vector.load %arg10[%c14_106, %c128_107] : memref<16x256xf32, #tpu.memory_space<vmem>>, vector<2x128xf32>
    %360 = tpu.concatenate %358, %359 in 1 : vector<2x128xf32>, vector<2x128xf32> -> vector<2x256xf32>
    %361 = tpu.concatenate %357, %357 in 1 : vector<2x32xf32>, vector<2x32xf32> -> vector<2x64xf32>
    %cst_108 = arith.constant dense<0.000000e+00> : vector<2x256xf32>
    %362 = tpu.matmul %361, %356, %cst_108 {dimension_numbers = #tpu.dot_dimension_numbers<[1], [0], [0], [1], [0, 0, 1, 1], [], []>} : vector<2x64xf32>, vector<64x256xf32>, vector<2x256xf32> -> vector<2x256xf32>
    %363 = arith.addf %360, %362 : vector<2x256xf32>
    %364 = vector.extract_strided_slice %363 {offsets = [0, 0], sizes = [2, 128], strides = [1, 1]} : vector<2x256xf32> to vector<2x128xf32>
    %365 = vector.extract_strided_slice %364 {offsets = [0, 0], sizes = [2, 96], strides = [1, 1]} : vector<2x128xf32> to vector<2x96xf32>
    %366 = arith.negf %365 : vector<2x96xf32>
    %367 = math.exp %366 : vector<2x96xf32>
    %cst_109 = arith.constant 1.000000e+00 : f32
    %368 = vector.broadcast %cst_109 : f32 to vector<2x96xf32>
    %369 = arith.addf %368, %367 : vector<2x96xf32>
    %370 = arith.divf %368, %369 : vector<2x96xf32>
    %371 = vector.extract_strided_slice %364 {offsets = [0, 96], sizes = [2, 32], strides = [1, 1]} : vector<2x128xf32> to vector<2x32xf32>
    %372 = math.tanh %371 : vector<2x32xf32>
    %373 = vector.extract_strided_slice %370 {offsets = [0, 0], sizes = [2, 32], strides = [1, 1]} : vector<2x96xf32> to vector<2x32xf32>
    %374 = vector.extract_strided_slice %370 {offsets = [0, 32], sizes = [2, 32], strides = [1, 1]} : vector<2x96xf32> to vector<2x32xf32>
    %375 = vector.extract_strided_slice %370 {offsets = [0, 64], sizes = [2, 32], strides = [1, 1]} : vector<2x96xf32> to vector<2x32xf32>
    %376 = arith.mulf %374, %357 : vector<2x32xf32>
    %377 = arith.mulf %373, %372 : vector<2x32xf32>
    %378 = arith.addf %376, %377 : vector<2x32xf32>
    %379 = math.tanh %378 : vector<2x32xf32>
    %380 = arith.mulf %375, %379 : vector<2x32xf32>
    %381 = vector.extract_strided_slice %363 {offsets = [0, 128], sizes = [2, 128], strides = [1, 1]} : vector<2x256xf32> to vector<2x128xf32>
    %382 = vector.extract_strided_slice %381 {offsets = [0, 0], sizes = [2, 96], strides = [1, 1]} : vector<2x128xf32> to vector<2x96xf32>
    %383 = arith.negf %382 : vector<2x96xf32>
    %384 = math.exp %383 : vector<2x96xf32>
    %cst_110 = arith.constant 1.000000e+00 : f32
    %385 = vector.broadcast %cst_110 : f32 to vector<2x96xf32>
    %386 = arith.addf %385, %384 : vector<2x96xf32>
    %387 = arith.divf %385, %386 : vector<2x96xf32>
    %388 = vector.extract_strided_slice %381 {offsets = [0, 96], sizes = [2, 32], strides = [1, 1]} : vector<2x128xf32> to vector<2x32xf32>
    %389 = math.tanh %388 : vector<2x32xf32>
    %390 = vector.extract_strided_slice %387 {offsets = [0, 0], sizes = [2, 32], strides = [1, 1]} : vector<2x96xf32> to vector<2x32xf32>
    %391 = vector.extract_strided_slice %387 {offsets = [0, 32], sizes = [2, 32], strides = [1, 1]} : vector<2x96xf32> to vector<2x32xf32>
    %392 = vector.extract_strided_slice %387 {offsets = [0, 64], sizes = [2, 32], strides = [1, 1]} : vector<2x96xf32> to vector<2x32xf32>
    %393 = arith.mulf %391, %357 : vector<2x32xf32>
    %394 = arith.mulf %390, %389 : vector<2x32xf32>
    %395 = arith.addf %393, %394 : vector<2x32xf32>
    %396 = math.tanh %395 : vector<2x32xf32>
    %397 = arith.mulf %392, %396 : vector<2x32xf32>
    %c0_111 = arith.constant 0 : index
    %c0_112 = arith.constant 0 : index
    %398 = vector.load %arg9[%c0_111, %c0_112] : memref<16x64xf32, #tpu.memory_space<vmem>>, vector<2x32xf32>
    tpu.vector_store %arg9[%c0_111, %c0_112], %380 {strides = array<i32>} : memref<16x64xf32, #tpu.memory_space<vmem>>, vector<2x32xf32>,
    %c14_113 = arith.constant 14 : index
    %c32_114 = arith.constant 32 : index
    %399 = vector.load %arg9[%c14_113, %c32_114] : memref<16x64xf32, #tpu.memory_space<vmem>>, vector<2x32xf32>
    tpu.vector_store %arg9[%c14_113, %c32_114], %397 {strides = array<i32>} : memref<16x64xf32, #tpu.memory_space<vmem>>, vector<2x32xf32>,
    %c2_115 = arith.constant 2 : index
    %c0_116 = arith.constant 0 : index
    %400 = vector.load %arg10[%c2_115, %c0_116] : memref<16x256xf32, #tpu.memory_space<vmem>>, vector<2x128xf32>
    %c12_117 = arith.constant 12 : index
    %c128_118 = arith.constant 128 : index
    %401 = vector.load %arg10[%c12_117, %c128_118] : memref<16x256xf32, #tpu.memory_space<vmem>>, vector<2x128xf32>
    %402 = tpu.concatenate %400, %401 in 1 : vector<2x128xf32>, vector<2x128xf32> -> vector<2x256xf32>
    %403 = tpu.concatenate %380, %397 in 1 : vector<2x32xf32>, vector<2x32xf32> -> vector<2x64xf32>
    %cst_119 = arith.constant dense<0.000000e+00> : vector<2x256xf32>
    %404 = tpu.matmul %403, %356, %cst_119 {dimension_numbers = #tpu.dot_dimension_numbers<[1], [0], [0], [1], [0, 0, 1, 1], [], []>} : vector<2x64xf32>, vector<64x256xf32>, vector<2x256xf32> -> vector<2x256xf32>
    %405 = arith.addf %402, %404 : vector<2x256xf32>
    %406 = vector.extract_strided_slice %405 {offsets = [0, 0], sizes = [2, 128], strides = [1, 1]} : vector<2x256xf32> to vector<2x128xf32>
    %407 = vector.extract_strided_slice %406 {offsets = [0, 0], sizes = [2, 96], strides = [1, 1]} : vector<2x128xf32> to vector<2x96xf32>
    %408 = arith.negf %407 : vector<2x96xf32>
    %409 = math.exp %408 : vector<2x96xf32>
    %cst_120 = arith.constant 1.000000e+00 : f32
    %410 = vector.broadcast %cst_120 : f32 to vector<2x96xf32>
    %411 = arith.addf %410, %409 : vector<2x96xf32>
    %412 = arith.divf %410, %411 : vector<2x96xf32>
    %413 = vector.extract_strided_slice %406 {offsets = [0, 96], sizes = [2, 32], strides = [1, 1]} : vector<2x128xf32> to vector<2x32xf32>
    %414 = math.tanh %413 : vector<2x32xf32>
    %415 = vector.extract_strided_slice %412 {offsets = [0, 0], sizes = [2, 32], strides = [1, 1]} : vector<2x96xf32> to vector<2x32xf32>
    %416 = vector.extract_strided_slice %412 {offsets = [0, 32], sizes = [2, 32], strides = [1, 1]} : vector<2x96xf32> to vector<2x32xf32>
    %417 = vector.extract_strided_slice %412 {offsets = [0, 64], sizes = [2, 32], strides = [1, 1]} : vector<2x96xf32> to vector<2x32xf32>
    %418 = arith.mulf %416, %378 : vector<2x32xf32>
    %419 = arith.mulf %415, %414 : vector<2x32xf32>
    %420 = arith.addf %418, %419 : vector<2x32xf32>
    %421 = math.tanh %420 : vector<2x32xf32>
    %422 = arith.mulf %417, %421 : vector<2x32xf32>
    %423 = vector.extract_strided_slice %405 {offsets = [0, 128], sizes = [2, 128], strides = [1, 1]} : vector<2x256xf32> to vector<2x128xf32>
    %424 = vector.extract_strided_slice %423 {offsets = [0, 0], sizes = [2, 96], strides = [1, 1]} : vector<2x128xf32> to vector<2x96xf32>
    %425 = arith.negf %424 : vector<2x96xf32>
    %426 = math.exp %425 : vector<2x96xf32>
    %cst_121 = arith.constant 1.000000e+00 : f32
    %427 = vector.broadcast %cst_121 : f32 to vector<2x96xf32>
    %428 = arith.addf %427, %426 : vector<2x96xf32>
    %429 = arith.divf %427, %428 : vector<2x96xf32>
    %430 = vector.extract_strided_slice %423 {offsets = [0, 96], sizes = [2, 32], strides = [1, 1]} : vector<2x128xf32> to vector<2x32xf32>
    %431 = math.tanh %430 : vector<2x32xf32>
    %432 = vector.extract_strided_slice %429 {offsets = [0, 0], sizes = [2, 32], strides = [1, 1]} : vector<2x96xf32> to vector<2x32xf32>
    %433 = vector.extract_strided_slice %429 {offsets = [0, 32], sizes = [2, 32], strides = [1, 1]} : vector<2x96xf32> to vector<2x32xf32>
    %434 = vector.extract_strided_slice %429 {offsets = [0, 64], sizes = [2, 32], strides = [1, 1]} : vector<2x96xf32> to vector<2x32xf32>
    %435 = arith.mulf %433, %395 : vector<2x32xf32>
    %436 = arith.mulf %432, %431 : vector<2x32xf32>
    %437 = arith.addf %435, %436 : vector<2x32xf32>
    %438 = math.tanh %437 : vector<2x32xf32>
    %439 = arith.mulf %434, %438 : vector<2x32xf32>
    %c2_122 = arith.constant 2 : index
    %c0_123 = arith.constant 0 : index
    %440 = vector.load %arg9[%c2_122, %c0_123] : memref<16x64xf32, #tpu.memory_space<vmem>>, vector<2x32xf32>
    tpu.vector_store %arg9[%c2_122, %c0_123], %422 {strides = array<i32>} : memref<16x64xf32, #tpu.memory_space<vmem>>, vector<2x32xf32>,
    %c12_124 = arith.constant 12 : index
    %c32_125 = arith.constant 32 : index
    %441 = vector.load %arg9[%c12_124, %c32_125] : memref<16x64xf32, #tpu.memory_space<vmem>>, vector<2x32xf32>
    tpu.vector_store %arg9[%c12_124, %c32_125], %439 {strides = array<i32>} : memref<16x64xf32, #tpu.memory_space<vmem>>, vector<2x32xf32>,
    %c4_126 = arith.constant 4 : index
    %c0_127 = arith.constant 0 : index
    %442 = vector.load %arg10[%c4_126, %c0_127] : memref<16x256xf32, #tpu.memory_space<vmem>>, vector<2x128xf32>
    %c10_128 = arith.constant 10 : index
    %c128_129 = arith.constant 128 : index
    %443 = vector.load %arg10[%c10_128, %c128_129] : memref<16x256xf32, #tpu.memory_space<vmem>>, vector<2x128xf32>
    %444 = tpu.concatenate %442, %443 in 1 : vector<2x128xf32>, vector<2x128xf32> -> vector<2x256xf32>
    %445 = tpu.concatenate %422, %439 in 1 : vector<2x32xf32>, vector<2x32xf32> -> vector<2x64xf32>
    %cst_130 = arith.constant dense<0.000000e+00> : vector<2x256xf32>
    %446 = tpu.matmul %445, %356, %cst_130 {dimension_numbers = #tpu.dot_dimension_numbers<[1], [0], [0], [1], [0, 0, 1, 1], [], []>} : vector<2x64xf32>, vector<64x256xf32>, vector<2x256xf32> -> vector<2x256xf32>
    %447 = arith.addf %444, %446 : vector<2x256xf32>
    %448 = vector.extract_strided_slice %447 {offsets = [0, 0], sizes = [2, 128], strides = [1, 1]} : vector<2x256xf32> to vector<2x128xf32>
    %449 = vector.extract_strided_slice %448 {offsets = [0, 0], sizes = [2, 96], strides = [1, 1]} : vector<2x128xf32> to vector<2x96xf32>
    %450 = arith.negf %449 : vector<2x96xf32>
    %451 = math.exp %450 : vector<2x96xf32>
    %cst_131 = arith.constant 1.000000e+00 : f32
    %452 = vector.broadcast %cst_131 : f32 to vector<2x96xf32>
    %453 = arith.addf %452, %451 : vector<2x96xf32>
    %454 = arith.divf %452, %453 : vector<2x96xf32>
    %455 = vector.extract_strided_slice %448 {offsets = [0, 96], sizes = [2, 32], strides = [1, 1]} : vector<2x128xf32> to vector<2x32xf32>
    %456 = math.tanh %455 : vector<2x32xf32>
    %457 = vector.extract_strided_slice %454 {offsets = [0, 0], sizes = [2, 32], strides = [1, 1]} : vector<2x96xf32> to vector<2x32xf32>
    %458 = vector.extract_strided_slice %454 {offsets = [0, 32], sizes = [2, 32], strides = [1, 1]} : vector<2x96xf32> to vector<2x32xf32>
    %459 = vector.extract_strided_slice %454 {offsets = [0, 64], sizes = [2, 32], strides = [1, 1]} : vector<2x96xf32> to vector<2x32xf32>
    %460 = arith.mulf %458, %420 : vector<2x32xf32>
    %461 = arith.mulf %457, %456 : vector<2x32xf32>
    %462 = arith.addf %460, %461 : vector<2x32xf32>
    %463 = math.tanh %462 : vector<2x32xf32>
    %464 = arith.mulf %459, %463 : vector<2x32xf32>
    %465 = vector.extract_strided_slice %447 {offsets = [0, 128], sizes = [2, 128], strides = [1, 1]} : vector<2x256xf32> to vector<2x128xf32>
    %466 = vector.extract_strided_slice %465 {offsets = [0, 0], sizes = [2, 96], strides = [1, 1]} : vector<2x128xf32> to vector<2x96xf32>
    %467 = arith.negf %466 : vector<2x96xf32>
    %468 = math.exp %467 : vector<2x96xf32>
    %cst_132 = arith.constant 1.000000e+00 : f32
    %469 = vector.broadcast %cst_132 : f32 to vector<2x96xf32>
    %470 = arith.addf %469, %468 : vector<2x96xf32>
    %471 = arith.divf %469, %470 : vector<2x96xf32>
    %472 = vector.extract_strided_slice %465 {offsets = [0, 96], sizes = [2, 32], strides = [1, 1]} : vector<2x128xf32> to vector<2x32xf32>
    %473 = math.tanh %472 : vector<2x32xf32>
    %474 = vector.extract_strided_slice %471 {offsets = [0, 0], sizes = [2, 32], strides = [1, 1]} : vector<2x96xf32> to vector<2x32xf32>
    %475 = vector.extract_strided_slice %471 {offsets = [0, 32], sizes = [2, 32], strides = [1, 1]} : vector<2x96xf32> to vector<2x32xf32>
    %476 = vector.extract_strided_slice %471 {offsets = [0, 64], sizes = [2, 32], strides = [1, 1]} : vector<2x96xf32> to vector<2x32xf32>
    %477 = arith.mulf %475, %437 : vector<2x32xf32>
    %478 = arith.mulf %474, %473 : vector<2x32xf32>
    %479 = arith.addf %477, %478 : vector<2x32xf32>
    %480 = math.tanh %479 : vector<2x32xf32>
    %481 = arith.mulf %476, %480 : vector<2x32xf32>
    %c4_133 = arith.constant 4 : index
    %c0_134 = arith.constant 0 : index
    %482 = vector.load %arg9[%c4_133, %c0_134] : memref<16x64xf32, #tpu.memory_space<vmem>>, vector<2x32xf32>
    tpu.vector_store %arg9[%c4_133, %c0_134], %464 {strides = array<i32>} : memref<16x64xf32, #tpu.memory_space<vmem>>, vector<2x32xf32>,
    %c10_135 = arith.constant 10 : index
    %c32_136 = arith.constant 32 : index
    %483 = vector.load %arg9[%c10_135, %c32_136] : memref<16x64xf32, #tpu.memory_space<vmem>>, vector<2x32xf32>
    tpu.vector_store %arg9[%c10_135, %c32_136], %481 {strides = array<i32>} : memref<16x64xf32, #tpu.memory_space<vmem>>, vector<2x32xf32>,
    %c6_137 = arith.constant 6 : index
    %c0_138 = arith.constant 0 : index
    %484 = vector.load %arg10[%c6_137, %c0_138] : memref<16x256xf32, #tpu.memory_space<vmem>>, vector<2x128xf32>
    %c8_139 = arith.constant 8 : index
    %c128_140 = arith.constant 128 : index
    %485 = vector.load %arg10[%c8_139, %c128_140] : memref<16x256xf32, #tpu.memory_space<vmem>>, vector<2x128xf32>
    %486 = tpu.concatenate %484, %485 in 1 : vector<2x128xf32>, vector<2x128xf32> -> vector<2x256xf32>
    %487 = tpu.concatenate %464, %481 in 1 : vector<2x32xf32>, vector<2x32xf32> -> vector<2x64xf32>
    %cst_141 = arith.constant dense<0.000000e+00> : vector<2x256xf32>
    %488 = tpu.matmul %487, %356, %cst_141 {dimension_numbers = #tpu.dot_dimension_numbers<[1], [0], [0], [1], [0, 0, 1, 1], [], []>} : vector<2x64xf32>, vector<64x256xf32>, vector<2x256xf32> -> vector<2x256xf32>
    %489 = arith.addf %486, %488 : vector<2x256xf32>
    %490 = vector.extract_strided_slice %489 {offsets = [0, 0], sizes = [2, 128], strides = [1, 1]} : vector<2x256xf32> to vector<2x128xf32>
    %491 = vector.extract_strided_slice %490 {offsets = [0, 0], sizes = [2, 96], strides = [1, 1]} : vector<2x128xf32> to vector<2x96xf32>
    %492 = arith.negf %491 : vector<2x96xf32>
    %493 = math.exp %492 : vector<2x96xf32>
    %cst_142 = arith.constant 1.000000e+00 : f32
    %494 = vector.broadcast %cst_142 : f32 to vector<2x96xf32>
    %495 = arith.addf %494, %493 : vector<2x96xf32>
    %496 = arith.divf %494, %495 : vector<2x96xf32>
    %497 = vector.extract_strided_slice %490 {offsets = [0, 96], sizes = [2, 32], strides = [1, 1]} : vector<2x128xf32> to vector<2x32xf32>
    %498 = math.tanh %497 : vector<2x32xf32>
    %499 = vector.extract_strided_slice %496 {offsets = [0, 0], sizes = [2, 32], strides = [1, 1]} : vector<2x96xf32> to vector<2x32xf32>
    %500 = vector.extract_strided_slice %496 {offsets = [0, 32], sizes = [2, 32], strides = [1, 1]} : vector<2x96xf32> to vector<2x32xf32>
    %501 = vector.extract_strided_slice %496 {offsets = [0, 64], sizes = [2, 32], strides = [1, 1]} : vector<2x96xf32> to vector<2x32xf32>
    %502 = arith.mulf %500, %462 : vector<2x32xf32>
    %503 = arith.mulf %499, %498 : vector<2x32xf32>
    %504 = arith.addf %502, %503 : vector<2x32xf32>
    %505 = math.tanh %504 : vector<2x32xf32>
    %506 = arith.mulf %501, %505 : vector<2x32xf32>
    %507 = vector.extract_strided_slice %489 {offsets = [0, 128], sizes = [2, 128], strides = [1, 1]} : vector<2x256xf32> to vector<2x128xf32>
    %508 = vector.extract_strided_slice %507 {offsets = [0, 0], sizes = [2, 96], strides = [1, 1]} : vector<2x128xf32> to vector<2x96xf32>
    %509 = arith.negf %508 : vector<2x96xf32>
    %510 = math.exp %509 : vector<2x96xf32>
    %cst_143 = arith.constant 1.000000e+00 : f32
    %511 = vector.broadcast %cst_143 : f32 to vector<2x96xf32>
    %512 = arith.addf %511, %510 : vector<2x96xf32>
    %513 = arith.divf %511, %512 : vector<2x96xf32>
    %514 = vector.extract_strided_slice %507 {offsets = [0, 96], sizes = [2, 32], strides = [1, 1]} : vector<2x128xf32> to vector<2x32xf32>
    %515 = math.tanh %514 : vector<2x32xf32>
    %516 = vector.extract_strided_slice %513 {offsets = [0, 0], sizes = [2, 32], strides = [1, 1]} : vector<2x96xf32> to vector<2x32xf32>
    %517 = vector.extract_strided_slice %513 {offsets = [0, 32], sizes = [2, 32], strides = [1, 1]} : vector<2x96xf32> to vector<2x32xf32>
    %518 = vector.extract_strided_slice %513 {offsets = [0, 64], sizes = [2, 32], strides = [1, 1]} : vector<2x96xf32> to vector<2x32xf32>
    %519 = arith.mulf %517, %479 : vector<2x32xf32>
    %520 = arith.mulf %516, %515 : vector<2x32xf32>
    %521 = arith.addf %519, %520 : vector<2x32xf32>
    %522 = math.tanh %521 : vector<2x32xf32>
    %523 = arith.mulf %518, %522 : vector<2x32xf32>
    %c6_144 = arith.constant 6 : index
    %c0_145 = arith.constant 0 : index
    %524 = vector.load %arg9[%c6_144, %c0_145] : memref<16x64xf32, #tpu.memory_space<vmem>>, vector<2x32xf32>
    tpu.vector_store %arg9[%c6_144, %c0_145], %506 {strides = array<i32>} : memref<16x64xf32, #tpu.memory_space<vmem>>, vector<2x32xf32>,
    %c8_146 = arith.constant 8 : index
    %c32_147 = arith.constant 32 : index
    %525 = vector.load %arg9[%c8_146, %c32_147] : memref<16x64xf32, #tpu.memory_space<vmem>>, vector<2x32xf32>
    tpu.vector_store %arg9[%c8_146, %c32_147], %523 {strides = array<i32>} : memref<16x64xf32, #tpu.memory_space<vmem>>, vector<2x32xf32>,
    %c8_148 = arith.constant 8 : index
    %c0_149 = arith.constant 0 : index
    %526 = vector.load %arg10[%c8_148, %c0_149] : memref<16x256xf32, #tpu.memory_space<vmem>>, vector<2x128xf32>
    %c6_150 = arith.constant 6 : index
    %c128_151 = arith.constant 128 : index
    %527 = vector.load %arg10[%c6_150, %c128_151] : memref<16x256xf32, #tpu.memory_space<vmem>>, vector<2x128xf32>
    %528 = tpu.concatenate %526, %527 in 1 : vector<2x128xf32>, vector<2x128xf32> -> vector<2x256xf32>
    %529 = tpu.concatenate %506, %523 in 1 : vector<2x32xf32>, vector<2x32xf32> -> vector<2x64xf32>
    %cst_152 = arith.constant dense<0.000000e+00> : vector<2x256xf32>
    %530 = tpu.matmul %529, %356, %cst_152 {dimension_numbers = #tpu.dot_dimension_numbers<[1], [0], [0], [1], [0, 0, 1, 1], [], []>} : vector<2x64xf32>, vector<64x256xf32>, vector<2x256xf32> -> vector<2x256xf32>
    %531 = arith.addf %528, %530 : vector<2x256xf32>
    %532 = vector.extract_strided_slice %531 {offsets = [0, 0], sizes = [2, 128], strides = [1, 1]} : vector<2x256xf32> to vector<2x128xf32>
    %533 = vector.extract_strided_slice %532 {offsets = [0, 0], sizes = [2, 96], strides = [1, 1]} : vector<2x128xf32> to vector<2x96xf32>
    %534 = arith.negf %533 : vector<2x96xf32>
    %535 = math.exp %534 : vector<2x96xf32>
    %cst_153 = arith.constant 1.000000e+00 : f32
    %536 = vector.broadcast %cst_153 : f32 to vector<2x96xf32>
    %537 = arith.addf %536, %535 : vector<2x96xf32>
    %538 = arith.divf %536, %537 : vector<2x96xf32>
    %539 = vector.extract_strided_slice %532 {offsets = [0, 96], sizes = [2, 32], strides = [1, 1]} : vector<2x128xf32> to vector<2x32xf32>
    %540 = math.tanh %539 : vector<2x32xf32>
    %541 = vector.extract_strided_slice %538 {offsets = [0, 0], sizes = [2, 32], strides = [1, 1]} : vector<2x96xf32> to vector<2x32xf32>
    %542 = vector.extract_strided_slice %538 {offsets = [0, 32], sizes = [2, 32], strides = [1, 1]} : vector<2x96xf32> to vector<2x32xf32>
    %543 = vector.extract_strided_slice %538 {offsets = [0, 64], sizes = [2, 32], strides = [1, 1]} : vector<2x96xf32> to vector<2x32xf32>
    %544 = arith.mulf %542, %504 : vector<2x32xf32>
    %545 = arith.mulf %541, %540 : vector<2x32xf32>
    %546 = arith.addf %544, %545 : vector<2x32xf32>
    %547 = math.tanh %546 : vector<2x32xf32>
    %548 = arith.mulf %543, %547 : vector<2x32xf32>
    %549 = vector.extract_strided_slice %531 {offsets = [0, 128], sizes = [2, 128], strides = [1, 1]} : vector<2x256xf32> to vector<2x128xf32>
    %550 = vector.extract_strided_slice %549 {offsets = [0, 0], sizes = [2, 96], strides = [1, 1]} : vector<2x128xf32> to vector<2x96xf32>
    %551 = arith.negf %550 : vector<2x96xf32>
    %552 = math.exp %551 : vector<2x96xf32>
    %cst_154 = arith.constant 1.000000e+00 : f32
    %553 = vector.broadcast %cst_154 : f32 to vector<2x96xf32>
    %554 = arith.addf %553, %552 : vector<2x96xf32>
    %555 = arith.divf %553, %554 : vector<2x96xf32>
    %556 = vector.extract_strided_slice %549 {offsets = [0, 96], sizes = [2, 32], strides = [1, 1]} : vector<2x128xf32> to vector<2x32xf32>
    %557 = math.tanh %556 : vector<2x32xf32>
    %558 = vector.extract_strided_slice %555 {offsets = [0, 0], sizes = [2, 32], strides = [1, 1]} : vector<2x96xf32> to vector<2x32xf32>
    %559 = vector.extract_strided_slice %555 {offsets = [0, 32], sizes = [2, 32], strides = [1, 1]} : vector<2x96xf32> to vector<2x32xf32>
    %560 = vector.extract_strided_slice %555 {offsets = [0, 64], sizes = [2, 32], strides = [1, 1]} : vector<2x96xf32> to vector<2x32xf32>
    %561 = arith.mulf %559, %521 : vector<2x32xf32>
    %562 = arith.mulf %558, %557 : vector<2x32xf32>
    %563 = arith.addf %561, %562 : vector<2x32xf32>
    %564 = math.tanh %563 : vector<2x32xf32>
    %565 = arith.mulf %560, %564 : vector<2x32xf32>
    %c8_155 = arith.constant 8 : index
    %c0_156 = arith.constant 0 : index
    %566 = vector.load %arg9[%c8_155, %c0_156] : memref<16x64xf32, #tpu.memory_space<vmem>>, vector<2x32xf32>
    tpu.vector_store %arg9[%c8_155, %c0_156], %548 {strides = array<i32>} : memref<16x64xf32, #tpu.memory_space<vmem>>, vector<2x32xf32>,
    %c6_157 = arith.constant 6 : index
    %c32_158 = arith.constant 32 : index
    %567 = vector.load %arg9[%c6_157, %c32_158] : memref<16x64xf32, #tpu.memory_space<vmem>>, vector<2x32xf32>
    tpu.vector_store %arg9[%c6_157, %c32_158], %565 {strides = array<i32>} : memref<16x64xf32, #tpu.memory_space<vmem>>, vector<2x32xf32>,
    %c10_159 = arith.constant 10 : index
    %c0_160 = arith.constant 0 : index
    %568 = vector.load %arg10[%c10_159, %c0_160] : memref<16x256xf32, #tpu.memory_space<vmem>>, vector<2x128xf32>
    %c4_161 = arith.constant 4 : index
    %c128_162 = arith.constant 128 : index
    %569 = vector.load %arg10[%c4_161, %c128_162] : memref<16x256xf32, #tpu.memory_space<vmem>>, vector<2x128xf32>
    %570 = tpu.concatenate %568, %569 in 1 : vector<2x128xf32>, vector<2x128xf32> -> vector<2x256xf32>
    %571 = tpu.concatenate %548, %565 in 1 : vector<2x32xf32>, vector<2x32xf32> -> vector<2x64xf32>
    %cst_163 = arith.constant dense<0.000000e+00> : vector<2x256xf32>
    %572 = tpu.matmul %571, %356, %cst_163 {dimension_numbers = #tpu.dot_dimension_numbers<[1], [0], [0], [1], [0, 0, 1, 1], [], []>} : vector<2x64xf32>, vector<64x256xf32>, vector<2x256xf32> -> vector<2x256xf32>
    %573 = arith.addf %570, %572 : vector<2x256xf32>
    %574 = vector.extract_strided_slice %573 {offsets = [0, 0], sizes = [2, 128], strides = [1, 1]} : vector<2x256xf32> to vector<2x128xf32>
    %575 = vector.extract_strided_slice %574 {offsets = [0, 0], sizes = [2, 96], strides = [1, 1]} : vector<2x128xf32> to vector<2x96xf32>
    %576 = arith.negf %575 : vector<2x96xf32>
    %577 = math.exp %576 : vector<2x96xf32>
    %cst_164 = arith.constant 1.000000e+00 : f32
    %578 = vector.broadcast %cst_164 : f32 to vector<2x96xf32>
    %579 = arith.addf %578, %577 : vector<2x96xf32>
    %580 = arith.divf %578, %579 : vector<2x96xf32>
    %581 = vector.extract_strided_slice %574 {offsets = [0, 96], sizes = [2, 32], strides = [1, 1]} : vector<2x128xf32> to vector<2x32xf32>
    %582 = math.tanh %581 : vector<2x32xf32>
    %583 = vector.extract_strided_slice %580 {offsets = [0, 0], sizes = [2, 32], strides = [1, 1]} : vector<2x96xf32> to vector<2x32xf32>
    %584 = vector.extract_strided_slice %580 {offsets = [0, 32], sizes = [2, 32], strides = [1, 1]} : vector<2x96xf32> to vector<2x32xf32>
    %585 = vector.extract_strided_slice %580 {offsets = [0, 64], sizes = [2, 32], strides = [1, 1]} : vector<2x96xf32> to vector<2x32xf32>
    %586 = arith.mulf %584, %546 : vector<2x32xf32>
    %587 = arith.mulf %583, %582 : vector<2x32xf32>
    %588 = arith.addf %586, %587 : vector<2x32xf32>
    %589 = math.tanh %588 : vector<2x32xf32>
    %590 = arith.mulf %585, %589 : vector<2x32xf32>
    %591 = vector.extract_strided_slice %573 {offsets = [0, 128], sizes = [2, 128], strides = [1, 1]} : vector<2x256xf32> to vector<2x128xf32>
    %592 = vector.extract_strided_slice %591 {offsets = [0, 0], sizes = [2, 96], strides = [1, 1]} : vector<2x128xf32> to vector<2x96xf32>
    %593 = arith.negf %592 : vector<2x96xf32>
    %594 = math.exp %593 : vector<2x96xf32>
    %cst_165 = arith.constant 1.000000e+00 : f32
    %595 = vector.broadcast %cst_165 : f32 to vector<2x96xf32>
    %596 = arith.addf %595, %594 : vector<2x96xf32>
    %597 = arith.divf %595, %596 : vector<2x96xf32>
    %598 = vector.extract_strided_slice %591 {offsets = [0, 96], sizes = [2, 32], strides = [1, 1]} : vector<2x128xf32> to vector<2x32xf32>
    %599 = math.tanh %598 : vector<2x32xf32>
    %600 = vector.extract_strided_slice %597 {offsets = [0, 0], sizes = [2, 32], strides = [1, 1]} : vector<2x96xf32> to vector<2x32xf32>
    %601 = vector.extract_strided_slice %597 {offsets = [0, 32], sizes = [2, 32], strides = [1, 1]} : vector<2x96xf32> to vector<2x32xf32>
    %602 = vector.extract_strided_slice %597 {offsets = [0, 64], sizes = [2, 32], strides = [1, 1]} : vector<2x96xf32> to vector<2x32xf32>
    %603 = arith.mulf %601, %563 : vector<2x32xf32>
    %604 = arith.mulf %600, %599 : vector<2x32xf32>
    %605 = arith.addf %603, %604 : vector<2x32xf32>
    %606 = math.tanh %605 : vector<2x32xf32>
    %607 = arith.mulf %602, %606 : vector<2x32xf32>
    %c10_166 = arith.constant 10 : index
    %c0_167 = arith.constant 0 : index
    %608 = vector.load %arg9[%c10_166, %c0_167] : memref<16x64xf32, #tpu.memory_space<vmem>>, vector<2x32xf32>
    tpu.vector_store %arg9[%c10_166, %c0_167], %590 {strides = array<i32>} : memref<16x64xf32, #tpu.memory_space<vmem>>, vector<2x32xf32>,
    %c4_168 = arith.constant 4 : index
    %c32_169 = arith.constant 32 : index
    %609 = vector.load %arg9[%c4_168, %c32_169] : memref<16x64xf32, #tpu.memory_space<vmem>>, vector<2x32xf32>
    tpu.vector_store %arg9[%c4_168, %c32_169], %607 {strides = array<i32>} : memref<16x64xf32, #tpu.memory_space<vmem>>, vector<2x32xf32>,
    %c12_170 = arith.constant 12 : index
    %c0_171 = arith.constant 0 : index
    %610 = vector.load %arg10[%c12_170, %c0_171] : memref<16x256xf32, #tpu.memory_space<vmem>>, vector<2x128xf32>
    %c2_172 = arith.constant 2 : index
    %c128_173 = arith.constant 128 : index
    %611 = vector.load %arg10[%c2_172, %c128_173] : memref<16x256xf32, #tpu.memory_space<vmem>>, vector<2x128xf32>
    %612 = tpu.concatenate %610, %611 in 1 : vector<2x128xf32>, vector<2x128xf32> -> vector<2x256xf32>
    %613 = tpu.concatenate %590, %607 in 1 : vector<2x32xf32>, vector<2x32xf32> -> vector<2x64xf32>
    %cst_174 = arith.constant dense<0.000000e+00> : vector<2x256xf32>
    %614 = tpu.matmul %613, %356, %cst_174 {dimension_numbers = #tpu.dot_dimension_numbers<[1], [0], [0], [1], [0, 0, 1, 1], [], []>} : vector<2x64xf32>, vector<64x256xf32>, vector<2x256xf32> -> vector<2x256xf32>
    %615 = arith.addf %612, %614 : vector<2x256xf32>
    %616 = vector.extract_strided_slice %615 {offsets = [0, 0], sizes = [2, 128], strides = [1, 1]} : vector<2x256xf32> to vector<2x128xf32>
    %617 = vector.extract_strided_slice %616 {offsets = [0, 0], sizes = [2, 96], strides = [1, 1]} : vector<2x128xf32> to vector<2x96xf32>
    %618 = arith.negf %617 : vector<2x96xf32>
    %619 = math.exp %618 : vector<2x96xf32>
    %cst_175 = arith.constant 1.000000e+00 : f32
    %620 = vector.broadcast %cst_175 : f32 to vector<2x96xf32>
    %621 = arith.addf %620, %619 : vector<2x96xf32>
    %622 = arith.divf %620, %621 : vector<2x96xf32>
    %623 = vector.extract_strided_slice %616 {offsets = [0, 96], sizes = [2, 32], strides = [1, 1]} : vector<2x128xf32> to vector<2x32xf32>
    %624 = math.tanh %623 : vector<2x32xf32>
    %625 = vector.extract_strided_slice %622 {offsets = [0, 0], sizes = [2, 32], strides = [1, 1]} : vector<2x96xf32> to vector<2x32xf32>
    %626 = vector.extract_strided_slice %622 {offsets = [0, 32], sizes = [2, 32], strides = [1, 1]} : vector<2x96xf32> to vector<2x32xf32>
    %627 = vector.extract_strided_slice %622 {offsets = [0, 64], sizes = [2, 32], strides = [1, 1]} : vector<2x96xf32> to vector<2x32xf32>
    %628 = arith.mulf %626, %588 : vector<2x32xf32>
    %629 = arith.mulf %625, %624 : vector<2x32xf32>
    %630 = arith.addf %628, %629 : vector<2x32xf32>
    %631 = math.tanh %630 : vector<2x32xf32>
    %632 = arith.mulf %627, %631 : vector<2x32xf32>
    %633 = vector.extract_strided_slice %615 {offsets = [0, 128], sizes = [2, 128], strides = [1, 1]} : vector<2x256xf32> to vector<2x128xf32>
    %634 = vector.extract_strided_slice %633 {offsets = [0, 0], sizes = [2, 96], strides = [1, 1]} : vector<2x128xf32> to vector<2x96xf32>
    %635 = arith.negf %634 : vector<2x96xf32>
    %636 = math.exp %635 : vector<2x96xf32>
    %cst_176 = arith.constant 1.000000e+00 : f32
    %637 = vector.broadcast %cst_176 : f32 to vector<2x96xf32>
    %638 = arith.addf %637, %636 : vector<2x96xf32>
    %639 = arith.divf %637, %638 : vector<2x96xf32>
    %640 = vector.extract_strided_slice %633 {offsets = [0, 96], sizes = [2, 32], strides = [1, 1]} : vector<2x128xf32> to vector<2x32xf32>
    %641 = math.tanh %640 : vector<2x32xf32>
    %642 = vector.extract_strided_slice %639 {offsets = [0, 0], sizes = [2, 32], strides = [1, 1]} : vector<2x96xf32> to vector<2x32xf32>
    %643 = vector.extract_strided_slice %639 {offsets = [0, 32], sizes = [2, 32], strides = [1, 1]} : vector<2x96xf32> to vector<2x32xf32>
    %644 = vector.extract_strided_slice %639 {offsets = [0, 64], sizes = [2, 32], strides = [1, 1]} : vector<2x96xf32> to vector<2x32xf32>
    %645 = arith.mulf %643, %605 : vector<2x32xf32>
    %646 = arith.mulf %642, %641 : vector<2x32xf32>
    %647 = arith.addf %645, %646 : vector<2x32xf32>
    %648 = math.tanh %647 : vector<2x32xf32>
    %649 = arith.mulf %644, %648 : vector<2x32xf32>
    %c12_177 = arith.constant 12 : index
    %c0_178 = arith.constant 0 : index
    %650 = vector.load %arg9[%c12_177, %c0_178] : memref<16x64xf32, #tpu.memory_space<vmem>>, vector<2x32xf32>
    tpu.vector_store %arg9[%c12_177, %c0_178], %632 {strides = array<i32>} : memref<16x64xf32, #tpu.memory_space<vmem>>, vector<2x32xf32>,
    %c2_179 = arith.constant 2 : index
    %c32_180 = arith.constant 32 : index
    %651 = vector.load %arg9[%c2_179, %c32_180] : memref<16x64xf32, #tpu.memory_space<vmem>>, vector<2x32xf32>
    tpu.vector_store %arg9[%c2_179, %c32_180], %649 {strides = array<i32>} : memref<16x64xf32, #tpu.memory_space<vmem>>, vector<2x32xf32>,
    %c14_181 = arith.constant 14 : index
    %c0_182 = arith.constant 0 : index
    %652 = vector.load %arg10[%c14_181, %c0_182] : memref<16x256xf32, #tpu.memory_space<vmem>>, vector<2x128xf32>
    %c0_183 = arith.constant 0 : index
    %c128_184 = arith.constant 128 : index
    %653 = vector.load %arg10[%c0_183, %c128_184] : memref<16x256xf32, #tpu.memory_space<vmem>>, vector<2x128xf32>
    %654 = tpu.concatenate %652, %653 in 1 : vector<2x128xf32>, vector<2x128xf32> -> vector<2x256xf32>
    %655 = tpu.concatenate %632, %649 in 1 : vector<2x32xf32>, vector<2x32xf32> -> vector<2x64xf32>
    %cst_185 = arith.constant dense<0.000000e+00> : vector<2x256xf32>
    %656 = tpu.matmul %655, %356, %cst_185 {dimension_numbers = #tpu.dot_dimension_numbers<[1], [0], [0], [1], [0, 0, 1, 1], [], []>} : vector<2x64xf32>, vector<64x256xf32>, vector<2x256xf32> -> vector<2x256xf32>
    %657 = arith.addf %654, %656 : vector<2x256xf32>
    %658 = vector.extract_strided_slice %657 {offsets = [0, 0], sizes = [2, 128], strides = [1, 1]} : vector<2x256xf32> to vector<2x128xf32>
    %659 = vector.extract_strided_slice %658 {offsets = [0, 0], sizes = [2, 96], strides = [1, 1]} : vector<2x128xf32> to vector<2x96xf32>
    %660 = arith.negf %659 : vector<2x96xf32>
    %661 = math.exp %660 : vector<2x96xf32>
    %cst_186 = arith.constant 1.000000e+00 : f32
    %662 = vector.broadcast %cst_186 : f32 to vector<2x96xf32>
    %663 = arith.addf %662, %661 : vector<2x96xf32>
    %664 = arith.divf %662, %663 : vector<2x96xf32>
    %665 = vector.extract_strided_slice %658 {offsets = [0, 96], sizes = [2, 32], strides = [1, 1]} : vector<2x128xf32> to vector<2x32xf32>
    %666 = math.tanh %665 : vector<2x32xf32>
    %667 = vector.extract_strided_slice %664 {offsets = [0, 0], sizes = [2, 32], strides = [1, 1]} : vector<2x96xf32> to vector<2x32xf32>
    %668 = vector.extract_strided_slice %664 {offsets = [0, 32], sizes = [2, 32], strides = [1, 1]} : vector<2x96xf32> to vector<2x32xf32>
    %669 = vector.extract_strided_slice %664 {offsets = [0, 64], sizes = [2, 32], strides = [1, 1]} : vector<2x96xf32> to vector<2x32xf32>
    %670 = arith.mulf %668, %630 : vector<2x32xf32>
    %671 = arith.mulf %667, %666 : vector<2x32xf32>
    %672 = arith.addf %670, %671 : vector<2x32xf32>
    %673 = math.tanh %672 : vector<2x32xf32>
    %674 = arith.mulf %669, %673 : vector<2x32xf32>
    %675 = vector.extract_strided_slice %657 {offsets = [0, 128], sizes = [2, 128], strides = [1, 1]} : vector<2x256xf32> to vector<2x128xf32>
    %676 = vector.extract_strided_slice %675 {offsets = [0, 0], sizes = [2, 96], strides = [1, 1]} : vector<2x128xf32> to vector<2x96xf32>
    %677 = arith.negf %676 : vector<2x96xf32>
    %678 = math.exp %677 : vector<2x96xf32>
    %cst_187 = arith.constant 1.000000e+00 : f32
    %679 = vector.broadcast %cst_187 : f32 to vector<2x96xf32>
    %680 = arith.addf %679, %678 : vector<2x96xf32>
    %681 = arith.divf %679, %680 : vector<2x96xf32>
    %682 = vector.extract_strided_slice %675 {offsets = [0, 96], sizes = [2, 32], strides = [1, 1]} : vector<2x128xf32> to vector<2x32xf32>
    %683 = math.tanh %682 : vector<2x32xf32>
    %684 = vector.extract_strided_slice %681 {offsets = [0, 0], sizes = [2, 32], strides = [1, 1]} : vector<2x96xf32> to vector<2x32xf32>
    %685 = vector.extract_strided_slice %681 {offsets = [0, 32], sizes = [2, 32], strides = [1, 1]} : vector<2x96xf32> to vector<2x32xf32>
    %686 = vector.extract_strided_slice %681 {offsets = [0, 64], sizes = [2, 32], strides = [1, 1]} : vector<2x96xf32> to vector<2x32xf32>
    %687 = arith.mulf %685, %647 : vector<2x32xf32>
    %688 = arith.mulf %684, %683 : vector<2x32xf32>
    %689 = arith.addf %687, %688 : vector<2x32xf32>
    %690 = math.tanh %689 : vector<2x32xf32>
    %691 = arith.mulf %686, %690 : vector<2x32xf32>
    %c14_188 = arith.constant 14 : index
    %c0_189 = arith.constant 0 : index
    %692 = vector.load %arg9[%c14_188, %c0_189] : memref<16x64xf32, #tpu.memory_space<vmem>>, vector<2x32xf32>
    tpu.vector_store %arg9[%c14_188, %c0_189], %674 {strides = array<i32>} : memref<16x64xf32, #tpu.memory_space<vmem>>, vector<2x32xf32>,
    %c0_190 = arith.constant 0 : index
    %c32_191 = arith.constant 32 : index
    %693 = vector.load %arg9[%c0_190, %c32_191] : memref<16x64xf32, #tpu.memory_space<vmem>>, vector<2x32xf32>
    tpu.vector_store %arg9[%c0_190, %c32_191], %691 {strides = array<i32>} : memref<16x64xf32, #tpu.memory_space<vmem>>, vector<2x32xf32>,
    %c14_192 = arith.constant 14 : index
    %c0_193 = arith.constant 0 : index
    %694 = vector.load %arg9[%c14_192, %c0_193] : memref<16x64xf32, #tpu.memory_space<vmem>>, vector<2x64xf32>
    %c0_194 = arith.constant 0 : index
    %c0_195 = arith.constant 0 : index
    %695 = vector.load %arg6[%c0_194, %c0_195] : memref<64x8xf32, #tpu.memory_space<vmem>>, vector<64x8xf32>
    %cst_196 = arith.constant dense<0.000000e+00> : vector<2x8xf32>
    %696 = tpu.matmul %694, %695, %cst_196 {dimension_numbers = #tpu.dot_dimension_numbers<[1], [0], [0], [1], [0, 0, 1, 1], [], []>} : vector<2x64xf32>, vector<64x8xf32>, vector<2x8xf32> -> vector<2x8xf32>
    %c0_197 = arith.constant 0 : index
    %c0_198 = arith.constant 0 : index
    %697 = vector.load %arg7[%c0_197, %c0_198] : memref<1x8xf32, #tpu.memory_space<vmem>>, vector<1x8xf32>
    %698 = vector.broadcast %697 : vector<1x8xf32> to vector<2x8xf32>
    %699 = arith.addf %696, %698 : vector<2x8xf32>
    %c0_199 = arith.constant 0 : index
    %c0_200 = arith.constant 0 : index
    %700 = vector.load %arg8[%c0_199, %c0_200] : memref<2x8xf32, #tpu.memory_space<vmem>>, vector<2x8xf32>
    tpu.vector_store %arg8[%c0_199, %c0_200], %699 {strides = array<i32>} : memref<2x8xf32, #tpu.memory_space<vmem>>, vector<2x8xf32>,
    return
  }
}

</mosaic_0001>

<llo_original>
// kernel: emonet_forward.1
$region0: #{emonet_forward.1}
  #allocation0 [shape = 'u32[]', space=smem, size = 0x4, offset = 0x4, fixed_abs, tag = 'smem constant byte address 0x4 - core index']
  #allocation1 [shape = 'u32[144,128]{1,0:T(1,128)}', space=vmem, size = 0x12000, scoped, tag = 'internal scratch']
  #allocation2 [shape = 'f32[16,64]{1,0:T(8,128)}', space=vmem, size = 0x2000, scoped, tag = 'scratch operand']
  #allocation3 [shape = 'f32[16,256]{1,0:T(8,128)}', space=vmem, size = 0x4000, scoped, tag = 'scratch operand']
  %s0 = inlined_call_operand.vmem [shape: f32[16,16], index: 0, kind: input, shape index: {}]
  %s1 = inlined_call_operand.vmem [shape: f32[16,256], index: 1, kind: input, shape index: {}]
  %s2 = inlined_call_operand.vmem [shape: f32[1,256], index: 2, kind: input, shape index: {}]
  %s3 = inlined_call_operand.hbm [shape: f32[1,64,256], index: 3, kind: input, shape index: {}]
  %s4 = inlined_call_operand.vmem [shape: f32[1,1,256], index: 4, kind: input, shape index: {}]
  %s5 = inlined_call_operand.hbm [shape: f32[2,64,256], index: 5, kind: input, shape index: {}]
  %s6 = inlined_call_operand.vmem [shape: f32[64,8], index: 6, kind: input, shape index: {}]
  %s7 = inlined_call_operand.vmem [shape: f32[1,8], index: 7, kind: input, shape index: {}]
  %s8 = inlined_call_operand.hbm [shape: f32[2,8], index: 8, kind: output, shape index: {}]
  %s9 = sld [smem:[#allocation0]]
  $region50: #{emonet_forward.1} parent=0
    _
  %s11 = ssub.s32 1, %s9
  %s12 = scalar_select 0, %s11, %s9
  $region1: #{emonet_forward.1} parent=0
    #allocation4 [shape = 'u8[65536]{0}', space=vmem, size = 0x10000, scoped, tag = 'input window, operand 3, single buffered']
    #allocation5 [shape = 's32[1]{0}', space=sflag, size = 0x4, scoped, tag = 'scoped memory for emonet_forward.1']
    #allocation6 [shape = 's32[1]{0}', space=sflag, size = 0x4, scoped, tag = 'scoped memory for emonet_forward.1']
    #allocation7 [shape = 'u8[131072]{0}', space=vmem, size = 0x20000, scoped, tag = 'input window, operand 5, single buffered']
    #allocation8 [shape = 's32[1]{0}', space=sflag, size = 0x4, scoped, tag = 'scoped memory for emonet_forward.1']
    #allocation9 [shape = 'u8[1024]{0}', space=vmem, size = 0x400, scoped, tag = 'output window, operand 0, single buffered']
    %13 = vsyncpa [#allocation5], 0
    %14 = vsyncpa [#allocation8], 0
    %15 = vsyncpa [#allocation6], 0
    // Predicated region
    $region2: #{emonet_forward.1} parent=1 // pred_check
      _
    $region3: #{emonet_forward.1} parent=1 // pred_check_branch
      %17 = sbr.rel (0) target = $region5
    $region4: #{emonet_forward.1} parent=1 // pred_region
      _
    $region5: #{emonet_forward.1} parent=1 // pred_fallthru
      _
    // Predicated region
    $region6: #{emonet_forward.1} parent=1 // pred_check
      _
    $region7: #{emonet_forward.1} parent=1 // pred_check_branch
      %19 = sbr.rel (0) target = $region9
    $region8: #{emonet_forward.1} parent=1 // pred_region
      _
    $region9: #{emonet_forward.1} parent=1 // pred_fallthru
      _
    // Predicated region
    $region10: #{emonet_forward.1} parent=1 // pred_check
      _
    $region11: #{emonet_forward.1} parent=1 // pred_check_branch
      %21 = sbr.rel (0) target = $region13
    $region12: #{emonet_forward.1} parent=1 // pred_region
      _
    $region13: #{emonet_forward.1} parent=1 // pred_fallthru
      _
    // Predicated region
    $region14: #{emonet_forward.1} parent=1 // pred_check
      _
    $region15: #{emonet_forward.1} parent=1 // pred_check_branch
      %23 = sbr.rel (0) target = $region17
    $region16: #{emonet_forward.1} parent=1 // pred_region
      %s25 = ssub.s32 2048, 2048
      %26 = vsyncadd [#allocation5], %s25
      %s27 = sshll.u32 [#allocation4], 4
      %s28 = int_to_ptr.vmem [resolvable:$true] %s27
      %33 = dma.hbm_to_vmem [thread:$0]  %s3, 2048, %s28, [#allocation5], 256, 256, 16
    $region17: #{emonet_forward.1} parent=1 // pred_fallthru
      _
    // Predicated region
    $region18: #{emonet_forward.1} parent=1 // pred_check
      _
    $region19: #{emonet_forward.1} parent=1 // pred_check_branch
      %35 = sbr.rel (0) target = $region21
    $region20: #{emonet_forward.1} parent=1 // pred_region
      _
    $region21: #{emonet_forward.1} parent=1 // pred_fallthru
      _
    // Predicated region
    $region22: #{emonet_forward.1} parent=1 // pred_check
      _
    $region23: #{emonet_forward.1} parent=1 // pred_check_branch
      %37 = sbr.rel (0) target = $region25
    $region24: #{emonet_forward.1} parent=1 // pred_region
      %s39 = ssub.s32 4096, 4096
      %40 = vsyncadd [#allocation8], %s39
      %s41 = sshll.u32 [#allocation7], 4
      %s42 = int_to_ptr.vmem [resolvable:$true] %s41
      %47 = dma.hbm_to_vmem [thread:$0]  %s5, 4096, %s42, [#allocation8], 256, 256, 16
    $region25: #{emonet_forward.1} parent=1 // pred_fallthru
      _
    // Predicated region
    $region26: #{emonet_forward.1} parent=1 // pred_check
      _
    $region27: #{emonet_forward.1} parent=1 // pred_check_branch
      %49 = sbr.rel (0) target = $region29
    $region28: #{emonet_forward.1} parent=1 // pred_region
      _
    $region29: #{emonet_forward.1} parent=1 // pred_fallthru
      _
    // Predicated region
    $region30: #{emonet_forward.1} parent=1 // pred_check
      _
    $region31: #{emonet_forward.1} parent=1 // pred_check_branch
      %51 = sbr.rel (0) target = $region33
    $region32: #{emonet_forward.1} parent=1 // pred_region
      _
    $region33: #{emonet_forward.1} parent=1 // pred_fallthru
      _
    // Predicated region
    $region34: #{emonet_forward.1} parent=1 // pred_check
      _
    $region35: #{emonet_forward.1} parent=1 // pred_check_branch
      %53 = sbr.rel (0) target = $region37
    $region36: #{emonet_forward.1} parent=1 // pred_region
      %54 = dma.done [#allocation5], 2048
    $region37: #{emonet_forward.1} parent=1 // pred_fallthru
      _
    // Predicated region
    $region38: #{emonet_forward.1} parent=1 // pred_check
      _
    $region39: #{emonet_forward.1} parent=1 // pred_check_branch
      %56 = sbr.rel (0) target = $region41
    $region40: #{emonet_forward.1} parent=1 // pred_region
      %57 = dma.done [#allocation8], 4096
    $region41: #{emonet_forward.1} parent=1 // pred_fallthru
      _
    %v58 = vld [vmem:[%s0] sm:$0xff]
    %v59 = vld [vmem:[%s0 + $0x8] sm:$0xff]
    %v60 = vld [vmem:[%s1] sm:$0xff]
    %v61 = vld [vmem:[%s1 + $0x8] sm:$0xff]
    %v62 = vld [vmem:[%s1 + $0x10] sm:$0xff]
    %v63 = vld [vmem:[%s1 + $0x18] sm:$0xff]
    %v64 = vld [vmem:[%s2] sm:$0x3]
    %v66 = vlaneseq
    %v67 = vshrl.u32 %v66, 7
    %v68 = vsub.s32 0, %v67
    %v69 = vrot.slane %v64, %v68
    %v70 = vlaneseq
    %v71 = vshrl.u32 %v70, 7
    %v72 = vsub.s32 1, %v71
    %v73 = vrot.slane %v64, %v72
    %vm76 = vcmask 130048
    %v78 = vsel %vm76, %v58, 0
    %v81 = vsel %vm76, %v59, 0
    %83 = vmatprep.subr.mxu0 0.0
    %84 = vmatpush1.msra.mxu0 0.0
    %85 = vmatprep.subr.mxu0 0.0
    %86 = vmatpush1.msra.mxu0 0.0
    %87 = vmatprep.subr.mxu0 0.0
    %88 = vmatpush1.msra.mxu0 0.0
    %89 = vmatprep.subr.mxu0 0.0
    %90 = vmatpush1.msra.mxu0 0.0
    %91 = vmatprep.subr.mxu0 0.0
    %92 = vmatpush1.msra.mxu0 0.0
    %93 = vmatprep.subr.mxu0 0.0
    %94 = vmatpush1.msra.mxu0 0.0
    %95 = vmatprep.subr.mxu0 0.0
    %96 = vmatpush1.msra.mxu0 0.0
    %97 = vmatprep.subr.mxu0 0.0
    %98 = vmatpush1.msra.mxu0 0.0
    %99 = vmatprep.subr.mxu0 0.0
    %100 = vmatpush1.msra.mxu0 0.0
    %101 = vmatprep.subr.mxu0 0.0
    %102 = vmatpush1.msra.mxu0 0.0
    %103 = vmatprep.subr.mxu0 0.0
    %104 = vmatpush1.msra.mxu0 0.0
    %105 = vmatprep.subr.mxu0 0.0
    %106 = vmatpush1.msra.mxu0 0.0
    %107 = vmatprep.subr.mxu0 0.0
    %108 = vmatpush1.msra.mxu0 0.0
    %109 = vmatprep.subr.mxu0 0.0
    %110 = vmatpush1.msra.mxu0 0.0
    %111 = vmatprep.subr.mxu0 %v63
    %112 = vmatpush1.msra.mxu0 %v62
    %113 = vmatprep.subr.mxu0 %v61
    %114 = vmatpush1.msra.mxu0 %v60
    %115 = vmatprep.subr.mxu0 0.0
    %116 = vmatpush2.msra.mxu0 0.0
    %117 = vmatprep.subr.mxu0 0.0
    %118 = vmatpush2.msra.mxu0 0.0
    %119 = vmatprep.subr.mxu0 0.0
    %120 = vmatpush2.msra.mxu0 0.0
    %121 = vmatprep.subr.mxu0 0.0
    %122 = vmatpush2.msra.mxu0 0.0
    %123 = vmatprep.subr.mxu0 0.0
    %124 = vmatpush2.msra.mxu0 0.0
    %125 = vmatprep.subr.mxu0 0.0
    %126 = vmatpush2.msra.mxu0 0.0
    %127 = vmatprep.subr.mxu0 0.0
    %128 = vmatpush2.msra.mxu0 0.0
    %129 = vmatprep.subr.mxu0 0.0
    %130 = vmatpush2.msra.mxu0 0.0
    %131 = vmatprep.subr.mxu0 0.0
    %132 = vmatpush2.msra.mxu0 0.0
    %133 = vmatprep.subr.mxu0 0.0
    %134 = vmatpush2.msra.mxu0 0.0
    %135 = vmatprep.subr.mxu0 0.0
    %136 = vmatpush2.msra.mxu0 0.0
    %137 = vmatprep.subr.mxu0 0.0
    %138 = vmatpush2.msra.mxu0 0.0
    %139 = vmatprep.subr.mxu0 0.0
    %140 = vmatpush2.msra.mxu0 0.0
    %141 = vmatprep.subr.mxu0 0.0
    %142 = vmatpush2.msra.mxu0 0.0
    %143 = vmatprep.subr.mxu0 0.0
    %144 = vmatpush2.msra.mxu0 0.0
    %145 = vmatprep.subr.mxu0 0.0
    %146 = vmatpush2.msra.mxu0 0.0
    %147 = vmatprep.mubr.f32.mxu0 0.0
    %148 = vmatmul.mubr.f32.gmra.mxu0 %v78
    %v149 = vpop.f32.mrf.mxu0
    %v150 = vadd.f32 %v69, %v149
    %v151 = vpop.f32.mrf.mxu0
    %v152 = vadd.f32 %v73, %v151
    %153 = vmatprep.mubr.f32.mxu0 0.0
    %154 = vmatmul.mubr.f32.gmra.mxu0 %v81
    %v155 = vpop.f32.mrf.mxu0
    %v156 = vadd.f32 %v69, %v155
    %v157 = vpop.f32.mrf.mxu0
    %v158 = vadd.f32 %v73, %v157
    %159 = vdwg.mxu0
    %160 = vst [vmem:[#allocation3] sm:$0xff] %v150
    %161 = vst [vmem:[#allocation3 + $0x8] sm:$0xff] %v152
    %162 = vst [vmem:[#allocation3 + $0x10] sm:$0xff] %v156
    %163 = vst [vmem:[#allocation3 + $0x18] sm:$0xff] %v158
    %v164 = vld [vmem:[#allocation7] sm:$0xff]
    %v165 = vld [vmem:[#allocation7 + $0x8] sm:$0xff]
    %v166 = vld [vmem:[#allocation7 + $0x10] sm:$0xff]
    %v167 = vld [vmem:[#allocation7 + $0x18] sm:$0xff]
    %v168 = vld [vmem:[#allocation7 + $0x20] sm:$0xff]
    %v169 = vld [vmem:[#allocation7 + $0x28] sm:$0xff]
    %v170 = vld [vmem:[#allocation7 + $0x30] sm:$0xff]
    %v171 = vld [vmem:[#allocation7 + $0x38] sm:$0xff]
    %v172 = vld [vmem:[#allocation7 + $0x40] sm:$0xff]
    %v173 = vld [vmem:[#allocation7 + $0x48] sm:$0xff]
    %v174 = vld [vmem:[#allocation7 + $0x50] sm:$0xff]
    %v175 = vld [vmem:[#allocation7 + $0x58] sm:$0xff]
    %v176 = vld [vmem:[#allocation7 + $0x60] sm:$0xff]
    %v177 = vld [vmem:[#allocation7 + $0x68] sm:$0xff]
    %v178 = vld [vmem:[#allocation7 + $0x70] sm:$0xff]
    %v179 = vld [vmem:[#allocation7 + $0x78] sm:$0xff]
    %v180 = vld [vmem:[#allocation3] sm:$0x3]
    %v181 = vld [vmem:[#allocation3 + $0x18] sm:$0xc0]
    %v183 = vrot.slane %v181, 6
    %vm185 = vcmask 523264
    %v187 = vsel %vm185, 0.0, 0
    %189 = vmatprep.subr.mxu0 0.0
    %190 = vmatpush1.msra.mxu0 0.0
    %191 = vmatprep.subr.mxu0 0.0
    %192 = vmatpush1.msra.mxu0 0.0
    %193 = vmatprep.subr.mxu0 0.0
    %194 = vmatpush1.msra.mxu0 0.0
    %195 = vmatprep.subr.mxu0 0.0
    %196 = vmatpush1.msra.mxu0 0.0
    %197 = vmatprep.subr.mxu0 0.0
    %198 = vmatpush1.msra.mxu0 0.0
    %199 = vmatprep.subr.mxu0 0.0
    %200 = vmatpush1.msra.mxu0 0.0
    %201 = vmatprep.subr.mxu0 0.0
    %202 = vmatpush1.msra.mxu0 0.0
    %203 = vmatprep.subr.mxu0 0.0
    %204 = vmatpush1.msra.mxu0 0.0
    %205 = vmatprep.subr.mxu0 %v179
    %206 = vmatpush1.msra.mxu0 %v178
    %207 = vmatprep.subr.mxu0 %v177
    %208 = vmatpush1.msra.mxu0 %v176
    %209 = vmatprep.subr.mxu0 %v175
    %210 = vmatpush1.msra.mxu0 %v174
    %211 = vmatprep.subr.mxu0 %v173
    %212 = vmatpush1.msra.mxu0 %v172
    %213 = vmatprep.subr.mxu0 %v171
    %214 = vmatpush1.msra.mxu0 %v170
    %215 = vmatprep.subr.mxu0 %v169
    %216 = vmatpush1.msra.mxu0 %v168
    %217 = vmatprep.subr.mxu0 %v167
    %218 = vmatpush1.msra.mxu0 %v166
    %219 = vmatprep.subr.mxu0 %v165
    %220 = vmatpush1.msra.mxu0 %v164
    %221 = vmatprep.subr.mxu0 0.0
    %222 = vmatpush2.msra.mxu0 0.0
    %223 = vmatprep.subr.mxu0 0.0
    %224 = vmatpush2.msra.mxu0 0.0
    %225 = vmatprep.subr.mxu0 0.0
    %226 = vmatpush2.msra.mxu0 0.0
    %227 = vmatprep.subr.mxu0 0.0
    %228 = vmatpush2.msra.mxu0 0.0
    %229 = vmatprep.subr.mxu0 0.0
    %230 = vmatpush2.msra.mxu0 0.0
    %231 = vmatprep.subr.mxu0 0.0
    %232 = vmatpush2.msra.mxu0 0.0
    %233 = vmatprep.subr.mxu0 0.0
    %234 = vmatpush2.msra.mxu0 0.0
    %235 = vmatprep.subr.mxu0 0.0
    %236 = vmatpush2.msra.mxu0 0.0
    %237 = vmatprep.subr.mxu0 0.0
    %238 = vmatpush2.msra.mxu0 0.0
    %239 = vmatprep.subr.mxu0 0.0
    %240 = vmatpush2.msra.mxu0 0.0
    %241 = vmatprep.subr.mxu0 0.0
    %242 = vmatpush2.msra.mxu0 0.0
    %243 = vmatprep.subr.mxu0 0.0
    %244 = vmatpush2.msra.mxu0 0.0
    %245 = vmatprep.subr.mxu0 0.0
    %246 = vmatpush2.msra.mxu0 0.0
    %247 = vmatprep.subr.mxu0 0.0
    %248 = vmatpush2.msra.mxu0 0.0
    %249 = vmatprep.subr.mxu0 0.0
    %250 = vmatpush2.msra.mxu0 0.0
    %251 = vmatprep.subr.mxu0 0.0
    %252 = vmatpush2.msra.mxu0 0.0
    %253 = vmatprep.mubr.f32.mxu0 0.0
    %254 = vmatmul.mubr.f32.gmra.mxu0 %v187
    %v255 = vpop.f32.mrf.mxu0
    %v256 = vadd.f32 0.0, %v255
    %v257 = vpop.f32.mrf.mxu0
    %v258 = vadd.f32 0.0, %v257
    %259 = vdwg.mxu0
    %v260 = vadd.f32 %v180, %v256
    %v261 = vadd.f32 %v183, %v258
    %v262 = vxor.u32 %v260, 2147483648
    %v263 = vmul.f32 %v262, 1.442695
    %v264 = vpow.pop %v263
    %v265 = vadd.f32 %v264, 1.0
    %v266 = vrcp.pop %v265
    %v267 = vmul.f32 1.0, %v266
    %v268 = vtanh.pop %v260
    %v269 = vmul.f32 %v267, 0.0
    %271 = vrot.lane.b32.xlu0 %v268, 32
    %v272 = vpop.permute.xlu0 %271
    %v274 = vmul.f32 %v267, %v272
    %276 = vrot.lane.b32.xlu0 %v274, 32
    %v277 = vpop.permute.xlu0 %276
    %v279 = vadd.f32 %v269, %v277
    %v280 = vtanh.pop %v279
    %282 = vrot.lane.b32.xlu0 %v280, 32
    %v283 = vpop.permute.xlu0 %282
    %v285 = vmul.f32 %v267, %v283
    %v286 = vxor.u32 %v261, 2147483648
    %v287 = vmul.f32 %v286, 1.442695
    %v288 = vpow.pop %v287
    %v289 = vadd.f32 %v288, 1.0
    %v290 = vrcp.pop %v289
    %v291 = vmul.f32 1.0, %v290
    %v292 = vtanh.pop %v261
    %v293 = vmul.f32 %v291, 0.0
    %295 = vrot.lane.b32.xlu0 %v292, 32
    %v296 = vpop.permute.xlu0 %295
    %v298 = vmul.f32 %v291, %v296
    %300 = vrot.lane.b32.xlu0 %v298, 32
    %v301 = vpop.permute.xlu0 %300
    %v303 = vadd.f32 %v293, %v301
    %v304 = vtanh.pop %v303
    %306 = vrot.lane.b32.xlu0 %v304, 32
    %v307 = vpop.permute.xlu0 %306
    %v309 = vmul.f32 %v291, %v307
    %311 = vrot.lane.b32.xlu0 %v285, 64
    %v312 = vpop.permute.xlu0 %311
    %vm314 = vcmask 254976
    %315 = vst.msk [vmem:[#allocation2] sm:$0x3] %vm314, %v312
    %317 = vrot.lane.b32.xlu0 %v309, 96
    %v318 = vpop.permute.xlu0 %317
    %vm320 = vcmask 517376
    %321 = vst.msk [vmem:[#allocation2 + $0xe] sm:$0x3] %vm320, %v318
    %v322 = vld [vmem:[#allocation3] sm:$0xc]
    %v323 = vld [vmem:[#allocation3 + $0x18] sm:$0x30]
    %v325 = vrot.slane %v323, 2
    %vm327 = vcmask 261120
    %v328 = vsel %vm327, %v312, %v318
    %v330 = vsel %vm185, %v328, 0
    %332 = vmatprep.subr.mxu0 0.0
    %333 = vmatpush1.msra.mxu0 0.0
    %334 = vmatprep.subr.mxu0 0.0
    %335 = vmatpush1.msra.mxu0 0.0
    %336 = vmatprep.subr.mxu0 0.0
    %337 = vmatpush1.msra.mxu0 0.0
    %338 = vmatprep.subr.mxu0 0.0
    %339 = vmatpush1.msra.mxu0 0.0
    %340 = vmatprep.subr.mxu0 0.0
    %341 = vmatpush1.msra.mxu0 0.0
    %342 = vmatprep.subr.mxu0 0.0
    %343 = vmatpush1.msra.mxu0 0.0
    %344 = vmatprep.subr.mxu0 0.0
    %345 = vmatpush1.msra.mxu0 0.0
    %346 = vmatprep.subr.mxu0 0.0
    %347 = vmatpush1.msra.mxu0 0.0
    %348 = vmatprep.subr.mxu0 %v179
    %349 = vmatpush1.msra.mxu0 %v178
    %350 = vmatprep.subr.mxu0 %v177
    %351 = vmatpush1.msra.mxu0 %v176
    %352 = vmatprep.subr.mxu0 %v175
    %353 = vmatpush1.msra.mxu0 %v174
    %354 = vmatprep.subr.mxu0 %v173
    %355 = vmatpush1.msra.mxu0 %v172
    %356 = vmatprep.subr.mxu0 %v171
    %357 = vmatpush1.msra.mxu0 %v170
    %358 = vmatprep.subr.mxu0 %v169
    %359 = vmatpush1.msra.mxu0 %v168
    %360 = vmatprep.subr.mxu0 %v167
    %361 = vmatpush1.msra.mxu0 %v166
    %362 = vmatprep.subr.mxu0 %v165
    %363 = vmatpush1.msra.mxu0 %v164
    %364 = vmatprep.subr.mxu0 0.0
    %365 = vmatpush2.msra.mxu0 0.0
    %366 = vmatprep.subr.mxu0 0.0
    %367 = vmatpush2.msra.mxu0 0.0
    %368 = vmatprep.subr.mxu0 0.0
    %369 = vmatpush2.msra.mxu0 0.0
    %370 = vmatprep.subr.mxu0 0.0
    %371 = vmatpush2.msra.mxu0 0.0
    %372 = vmatprep.subr.mxu0 0.0
    %373 = vmatpush2.msra.mxu0 0.0
    %374 = vmatprep.subr.mxu0 0.0
    %375 = vmatpush2.msra.mxu0 0.0
    %376 = vmatprep.subr.mxu0 0.0
    %377 = vmatpush2.msra.mxu0 0.0
    %378 = vmatprep.subr.mxu0 0.0
    %379 = vmatpush2.msra.mxu0 0.0
    %380 = vmatprep.subr.mxu0 0.0
    %381 = vmatpush2.msra.mxu0 0.0
    %382 = vmatprep.subr.mxu0 0.0
    %383 = vmatpush2.msra.mxu0 0.0
    %384 = vmatprep.subr.mxu0 0.0
    %385 = vmatpush2.msra.mxu0 0.0
    %386 = vmatprep.subr.mxu0 0.0
    %387 = vmatpush2.msra.mxu0 0.0
    %388 = vmatprep.subr.mxu0 0.0
    %389 = vmatpush2.msra.mxu0 0.0
    %390 = vmatprep.subr.mxu0 0.0
    %391 = vmatpush2.msra.mxu0 0.0
    %392 = vmatprep.subr.mxu0 0.0
    %393 = vmatpush2.msra.mxu0 0.0
    %394 = vmatprep.subr.mxu0 0.0
    %395 = vmatpush2.msra.mxu0 0.0
    %396 = vmatprep.mubr.f32.mxu0 0.0
    %397 = vmatmul.mubr.f32.gmra.mxu0 %v330
    %v398 = vpop.f32.mrf.mxu0
    %v399 = vadd.f32 0.0, %v398
    %v400 = vpop.f32.mrf.mxu0
    %v401 = vadd.f32 0.0, %v400
    %402 = vdwg.mxu0
    %v405 = vrot.slane %v399, 6
    %v406 = vrot.slane %v401, 6
    %v409 = vadd.f32 %v322, %v405
    %v410 = vadd.f32 %v325, %v406
    %v411 = vxor.u32 %v409, 2147483648
    %v412 = vmul.f32 %v411, 1.442695
    %v413 = vpow.pop %v412
    %v414 = vadd.f32 %v413, 1.0
    %v415 = vrcp.pop %v414
    %v416 = vmul.f32 1.0, %v415
    %v417 = vtanh.pop %v409
    %v419 = vrot.slane %v279, 6
    %v421 = vmul.f32 %v416, %v419
    %423 = vrot.lane.b32.xlu0 %v417, 32
    %v424 = vpop.permute.xlu0 %423
    %v426 = vmul.f32 %v416, %v424
    %428 = vrot.lane.b32.xlu0 %v426, 32
    %v429 = vpop.permute.xlu0 %428
    %v431 = vadd.f32 %v421, %v429
    %v432 = vtanh.pop %v431
    %434 = vrot.lane.b32.xlu0 %v432, 32
    %v435 = vpop.permute.xlu0 %434
    %v437 = vmul.f32 %v416, %v435
    %v438 = vxor.u32 %v410, 2147483648
    %v439 = vmul.f32 %v438, 1.442695
    %v440 = vpow.pop %v439
    %v441 = vadd.f32 %v440, 1.0
    %v442 = vrcp.pop %v441
    %v443 = vmul.f32 1.0, %v442
    %v444 = vtanh.pop %v410
    %v446 = vrot.slane %v303, 6
    %v448 = vmul.f32 %v443, %v446
    %450 = vrot.lane.b32.xlu0 %v444, 32
    %v451 = vpop.permute.xlu0 %450
    %v453 = vmul.f32 %v443, %v451
    %455 = vrot.lane.b32.xlu0 %v453, 32
    %v456 = vpop.permute.xlu0 %455
    %v458 = vadd.f32 %v448, %v456
    %v459 = vtanh.pop %v458
    %461 = vrot.lane.b32.xlu0 %v459, 32
    %v462 = vpop.permute.xlu0 %461
    %v464 = vmul.f32 %v443, %v462
    %466 = vrot.lane.b32.xlu0 %v437, 64
    %v467 = vpop.permute.xlu0 %466
    %vm469 = vcmask 257026
    %470 = vst.msk [vmem:[#allocation2] sm:$0xc] %vm469, %v467
    %472 = vrot.lane.b32.xlu0 %v464, 96
    %v473 = vpop.permute.xlu0 %472
    %vm475 = vcmask 519426
    %476 = vst.msk [vmem:[#allocation2 + $0xa] sm:$0xc] %vm475, %v473
    %v477 = vld [vmem:[#allocation3] sm:$0x30]
    %v478 = vld [vmem:[#allocation3 + $0x18] sm:$0xc]
    %v480 = vrot.slane %v478, 6
    %v482 = vsel %vm327, %v467, %v473
    %v484 = vrot.slane %v482, 2
    %v485 = vsel %vm185, %v484, 0
    %487 = vmatprep.subr.mxu0 0.0
    %488 = vmatpush1.msra.mxu0 0.0
    %489 = vmatprep.subr.mxu0 0.0
    %490 = vmatpush1.msra.mxu0 0.0
    %491 = vmatprep.subr.mxu0 0.0
    %492 = vmatpush1.msra.mxu0 0.0
    %493 = vmatprep.subr.mxu0 0.0
    %494 = vmatpush1.msra.mxu0 0.0
    %495 = vmatprep.subr.mxu0 0.0
    %496 = vmatpush1.msra.mxu0 0.0
    %497 = vmatprep.subr.mxu0 0.0
    %498 = vmatpush1.msra.mxu0 0.0
    %499 = vmatprep.subr.mxu0 0.0
    %500 = vmatpush1.msra.mxu0 0.0
    %501 = vmatprep.subr.mxu0 0.0
    %502 = vmatpush1.msra.mxu0 0.0
    %503 = vmatprep.subr.mxu0 %v179
    %504 = vmatpush1.msra.mxu0 %v178
    %505 = vmatprep.subr.mxu0 %v177
    %506 = vmatpush1.msra.mxu0 %v176
    %507 = vmatprep.subr.mxu0 %v175
    %508 = vmatpush1.msra.mxu0 %v174
    %509 = vmatprep.subr.mxu0 %v173
    %510 = vmatpush1.msra.mxu0 %v172
    %511 = vmatprep.subr.mxu0 %v171
    %512 = vmatpush1.msra.mxu0 %v170
    %513 = vmatprep.subr.mxu0 %v169
    %514 = vmatpush1.msra.mxu0 %v168
    %515 = vmatprep.subr.mxu0 %v167
    %516 = vmatpush1.msra.mxu0 %v166
    %517 = vmatprep.subr.mxu0 %v165
    %518 = vmatpush1.msra.mxu0 %v164
    %519 = vmatprep.subr.mxu0 0.0
    %520 = vmatpush2.msra.mxu0 0.0
    %521 = vmatprep.subr.mxu0 0.0
    %522 = vmatpush2.msra.mxu0 0.0
    %523 = vmatprep.subr.mxu0 0.0
    %524 = vmatpush2.msra.mxu0 0.0
    %525 = vmatprep.subr.mxu0 0.0
    %526 = vmatpush2.msra.mxu0 0.0
    %527 = vmatprep.subr.mxu0 0.0
    %528 = vmatpush2.msra.mxu0 0.0
    %529 = vmatprep.subr.mxu0 0.0
    %530 = vmatpush2.msra.mxu0 0.0
    %531 = vmatprep.subr.mxu0 0.0
    %532 = vmatpush2.msra.mxu0 0.0
    %533 = vmatprep.subr.mxu0 0.0
    %534 = vmatpush2.msra.mxu0 0.0
    %535 = vmatprep.subr.mxu0 0.0
    %536 = vmatpush2.msra.mxu0 0.0
    %537 = vmatprep.subr.mxu0 0.0
    %538 = vmatpush2.msra.mxu0 0.0
    %539 = vmatprep.subr.mxu0 0.0
    %540 = vmatpush2.msra.mxu0 0.0
    %541 = vmatprep.subr.mxu0 0.0
    %542 = vmatpush2.msra.mxu0 0.0
    %543 = vmatprep.subr.mxu0 0.0
    %544 = vmatpush2.msra.mxu0 0.0
    %545 = vmatprep.subr.mxu0 0.0
    %546 = vmatpush2.msra.mxu0 0.0
    %547 = vmatprep.subr.mxu0 0.0
    %548 = vmatpush2.msra.mxu0 0.0
    %549 = vmatprep.subr.mxu0 0.0
    %550 = vmatpush2.msra.mxu0 0.0
    %551 = vmatprep.mubr.f32.mxu0 0.0
    %552 = vmatmul.mubr.f32.gmra.mxu0 %v485
    %v553 = vpop.f32.mrf.mxu0
    %v554 = vadd.f32 0.0, %v553
    %v555 = vpop.f32.mrf.mxu0
    %v556 = vadd.f32 0.0, %v555
    %557 = vdwg.mxu0
    %v560 = vrot.slane %v554, 4
    %v561 = vrot.slane %v556, 4
    %v564 = vadd.f32 %v477, %v560
    %v565 = vadd.f32 %v480, %v561
    %v566 = vxor.u32 %v564, 2147483648
    %v567 = vmul.f32 %v566, 1.442695
    %v568 = vpow.pop %v567
    %v569 = vadd.f32 %v568, 1.0
    %v570 = vrcp.pop %v569
    %v571 = vmul.f32 1.0, %v570
    %v572 = vtanh.pop %v564
    %v574 = vrot.slane %v431, 6
    %v576 = vmul.f32 %v571, %v574
    %578 = vrot.lane.b32.xlu0 %v572, 32
    %v579 = vpop.permute.xlu0 %578
    %v581 = vmul.f32 %v571, %v579
    %583 = vrot.lane.b32.xlu0 %v581, 32
    %v584 = vpop.permute.xlu0 %583
    %v586 = vadd.f32 %v576, %v584
    %v587 = vtanh.pop %v586
    %589 = vrot.lane.b32.xlu0 %v587, 32
    %v590 = vpop.permute.xlu0 %589
    %v592 = vmul.f32 %v571, %v590
    %v593 = vxor.u32 %v565, 2147483648
    %v594 = vmul.f32 %v593, 1.442695
    %v595 = vpow.pop %v594
    %v596 = vadd.f32 %v595, 1.0
    %v597 = vrcp.pop %v596
    %v598 = vmul.f32 1.0, %v597
    %v599 = vtanh.pop %v565
    %v601 = vrot.slane %v458, 6
    %v603 = vmul.f32 %v598, %v601
    %605 = vrot.lane.b32.xlu0 %v599, 32
    %v606 = vpop.permute.xlu0 %605
    %v608 = vmul.f32 %v598, %v606
    %610 = vrot.lane.b32.xlu0 %v608, 32
    %v611 = vpop.permute.xlu0 %610
    %v613 = vadd.f32 %v603, %v611
    %v614 = vtanh.pop %v613
    %616 = vrot.lane.b32.xlu0 %v614, 32
    %v617 = vpop.permute.xlu0 %616
    %v619 = vmul.f32 %v598, %v617
    %621 = vrot.lane.b32.xlu0 %v592, 64
    %v622 = vpop.permute.xlu0 %621
    %vm624 = vcmask 259076
    %625 = vst.msk [vmem:[#allocation2] sm:$0x30] %vm624, %v622
    %627 = vrot.lane.b32.xlu0 %v619, 96
    %v628 = vpop.permute.xlu0 %627
    %vm630 = vcmask 521476
    %631 = vst.msk [vmem:[#allocation2 + $0x6] sm:$0x30] %vm630, %v628
    %v632 = vld [vmem:[#allocation3] sm:$0xc0]
    %v633 = vld [vmem:[#allocation3 + $0x18] sm:$0x3]
    %v635 = vrot.slane %v633, 2
    %v637 = vsel %vm327, %v622, %v628
    %v639 = vrot.slane %v637, 4
    %v640 = vsel %vm185, %v639, 0
    %642 = vmatprep.subr.mxu0 0.0
    %643 = vmatpush1.msra.mxu0 0.0
    %644 = vmatprep.subr.mxu0 0.0
    %645 = vmatpush1.msra.mxu0 0.0
    %646 = vmatprep.subr.mxu0 0.0
    %647 = vmatpush1.msra.mxu0 0.0
    %648 = vmatprep.subr.mxu0 0.0
    %649 = vmatpush1.msra.mxu0 0.0
    %650 = vmatprep.subr.mxu0 0.0
    %651 = vmatpush1.msra.mxu0 0.0
    %652 = vmatprep.subr.mxu0 0.0
    %653 = vmatpush1.msra.mxu0 0.0
    %654 = vmatprep.subr.mxu0 0.0
    %655 = vmatpush1.msra.mxu0 0.0
    %656 = vmatprep.subr.mxu0 0.0
    %657 = vmatpush1.msra.mxu0 0.0
    %658 = vmatprep.subr.mxu0 %v179
    %659 = vmatpush1.msra.mxu0 %v178
    %660 = vmatprep.subr.mxu0 %v177
    %661 = vmatpush1.msra.mxu0 %v176
    %662 = vmatprep.subr.mxu0 %v175
    %663 = vmatpush1.msra.mxu0 %v174
    %664 = vmatprep.subr.mxu0 %v173
    %665 = vmatpush1.msra.mxu0 %v172
    %666 = vmatprep.subr.mxu0 %v171
    %667 = vmatpush1.msra.mxu0 %v170
    %668 = vmatprep.subr.mxu0 %v169
    %669 = vmatpush1.msra.mxu0 %v168
    %670 = vmatprep.subr.mxu0 %v167
    %671 = vmatpush1.msra.mxu0 %v166
    %672 = vmatprep.subr.mxu0 %v165
    %673 = vmatpush1.msra.mxu0 %v164
    %674 = vmatprep.subr.mxu0 0.0
    %675 = vmatpush2.msra.mxu0 0.0
    %676 = vmatprep.subr.mxu0 0.0
    %677 = vmatpush2.msra.mxu0 0.0
    %678 = vmatprep.subr.mxu0 0.0
    %679 = vmatpush2.msra.mxu0 0.0
    %680 = vmatprep.subr.mxu0 0.0
    %681 = vmatpush2.msra.mxu0 0.0
    %682 = vmatprep.subr.mxu0 0.0
    %683 = vmatpush2.msra.mxu0 0.0
    %684 = vmatprep.subr.mxu0 0.0
    %685 = vmatpush2.msra.mxu0 0.0
    %686 = vmatprep.subr.mxu0 0.0
    %687 = vmatpush2.msra.mxu0 0.0
    %688 = vmatprep.subr.mxu0 0.0
    %689 = vmatpush2.msra.mxu0 0.0
    %690 = vmatprep.subr.mxu0 0.0
    %691 = vmatpush2.msra.mxu0 0.0
    %692 = vmatprep.subr.mxu0 0.0
    %693 = vmatpush2.msra.mxu0 0.0
    %694 = vmatprep.subr.mxu0 0.0
    %695 = vmatpush2.msra.mxu0 0.0
    %696 = vmatprep.subr.mxu0 0.0
    %697 = vmatpush2.msra.mxu0 0.0
    %698 = vmatprep.subr.mxu0 0.0
    %699 = vmatpush2.msra.mxu0 0.0
    %700 = vmatprep.subr.mxu0 0.0
    %701 = vmatpush2.msra.mxu0 0.0
    %702 = vmatprep.subr.mxu0 0.0
    %703 = vmatpush2.msra.mxu0 0.0
    %704 = vmatprep.subr.mxu0 0.0
    %705 = vmatpush2.msra.mxu0 0.0
    %706 = vmatprep.mubr.f32.mxu0 0.0
    %707 = vmatmul.mubr.f32.gmra.mxu0 %v640
    %v708 = vpop.f32.mrf.mxu0
    %v709 = vadd.f32 0.0, %v708
    %v710 = vpop.f32.mrf.mxu0
    %v711 = vadd.f32 0.0, %v710
    %712 = vdwg.mxu0
    %v715 = vrot.slane %v709, 2
    %v716 = vrot.slane %v711, 2
    %v719 = vadd.f32 %v632, %v715
    %v720 = vadd.f32 %v635, %v716
    %v721 = vxor.u32 %v719, 2147483648
    %v722 = vmul.f32 %v721, 1.442695
    %v723 = vpow.pop %v722
    %v724 = vadd.f32 %v723, 1.0
    %v725 = vrcp.pop %v724
    %v726 = vmul.f32 1.0, %v725
    %v727 = vtanh.pop %v719
    %v729 = vrot.slane %v586, 6
    %v731 = vmul.f32 %v726, %v729
    %733 = vrot.lane.b32.xlu0 %v727, 32
    %v734 = vpop.permute.xlu0 %733
    %v736 = vmul.f32 %v726, %v734
    %738 = vrot.lane.b32.xlu0 %v736, 32
    %v739 = vpop.permute.xlu0 %738
    %v741 = vadd.f32 %v731, %v739
    %v742 = vtanh.pop %v741
    %744 = vrot.lane.b32.xlu0 %v742, 32
    %v745 = vpop.permute.xlu0 %744
    %v747 = vmul.f32 %v726, %v745
    %v748 = vxor.u32 %v720, 2147483648
    %v749 = vmul.f32 %v748, 1.442695
    %v750 = vpow.pop %v749
    %v751 = vadd.f32 %v750, 1.0
    %v752 = vrcp.pop %v751
    %v753 = vmul.f32 1.0, %v752
    %v754 = vtanh.pop %v720
    %v756 = vrot.slane %v613, 6
    %v758 = vmul.f32 %v753, %v756
    %760 = vrot.lane.b32.xlu0 %v754, 32
    %v761 = vpop.permute.xlu0 %760
    %v763 = vmul.f32 %v753, %v761
    %765 = vrot.lane.b32.xlu0 %v763, 32
    %v766 = vpop.permute.xlu0 %765
    %v768 = vadd.f32 %v758, %v766
    %v769 = vtanh.pop %v768
    %771 = vrot.lane.b32.xlu0 %v769, 32
    %v772 = vpop.permute.xlu0 %771
    %v774 = vmul.f32 %v753, %v772
    %776 = vrot.lane.b32.xlu0 %v747, 64
    %v777 = vpop.permute.xlu0 %776
    %vm779 = vcmask 261126
    %780 = vst.msk [vmem:[#allocation2] sm:$0xc0] %vm779, %v777
    %782 = vrot.lane.b32.xlu0 %v774, 96
    %v783 = vpop.permute.xlu0 %782
    %vm785 = vcmask 523526
    %786 = vst.msk [vmem:[#allocation2 + $0x2] sm:$0xc0] %vm785, %v783
    %v787 = vld [vmem:[#allocation3 + $0x10] sm:$0x3]
    %v788 = vld [vmem:[#allocation3 + $0x8] sm:$0xc0]
    %v790 = vrot.slane %v788, 6
    %v792 = vsel %vm327, %v777, %v783
    %v794 = vrot.slane %v792, 6
    %v795 = vsel %vm185, %v794, 0
    %797 = vmatprep.subr.mxu0 0.0
    %798 = vmatpush1.msra.mxu0 0.0
    %799 = vmatprep.subr.mxu0 0.0
    %800 = vmatpush1.msra.mxu0 0.0
    %801 = vmatprep.subr.mxu0 0.0
    %802 = vmatpush1.msra.mxu0 0.0
    %803 = vmatprep.subr.mxu0 0.0
    %804 = vmatpush1.msra.mxu0 0.0
    %805 = vmatprep.subr.mxu0 0.0
    %806 = vmatpush1.msra.mxu0 0.0
    %807 = vmatprep.subr.mxu0 0.0
    %808 = vmatpush1.msra.mxu0 0.0
    %809 = vmatprep.subr.mxu0 0.0
    %810 = vmatpush1.msra.mxu0 0.0
    %811 = vmatprep.subr.mxu0 0.0
    %812 = vmatpush1.msra.mxu0 0.0
    %813 = vmatprep.subr.mxu0 %v179
    %814 = vmatpush1.msra.mxu0 %v178
    %815 = vmatprep.subr.mxu0 %v177
    %816 = vmatpush1.msra.mxu0 %v176
    %817 = vmatprep.subr.mxu0 %v175
    %818 = vmatpush1.msra.mxu0 %v174
    %819 = vmatprep.subr.mxu0 %v173
    %820 = vmatpush1.msra.mxu0 %v172
    %821 = vmatprep.subr.mxu0 %v171
    %822 = vmatpush1.msra.mxu0 %v170
    %823 = vmatprep.subr.mxu0 %v169
    %824 = vmatpush1.msra.mxu0 %v168
    %825 = vmatprep.subr.mxu0 %v167
    %826 = vmatpush1.msra.mxu0 %v166
    %827 = vmatprep.subr.mxu0 %v165
    %828 = vmatpush1.msra.mxu0 %v164
    %829 = vmatprep.subr.mxu0 0.0
    %830 = vmatpush2.msra.mxu0 0.0
    %831 = vmatprep.subr.mxu0 0.0
    %832 = vmatpush2.msra.mxu0 0.0
    %833 = vmatprep.subr.mxu0 0.0
    %834 = vmatpush2.msra.mxu0 0.0
    %835 = vmatprep.subr.mxu0 0.0
    %836 = vmatpush2.msra.mxu0 0.0
    %837 = vmatprep.subr.mxu0 0.0
    %838 = vmatpush2.msra.mxu0 0.0
    %839 = vmatprep.subr.mxu0 0.0
    %840 = vmatpush2.msra.mxu0 0.0
    %841 = vmatprep.subr.mxu0 0.0
    %842 = vmatpush2.msra.mxu0 0.0
    %843 = vmatprep.subr.mxu0 0.0
    %844 = vmatpush2.msra.mxu0 0.0
    %845 = vmatprep.subr.mxu0 0.0
    %846 = vmatpush2.msra.mxu0 0.0
    %847 = vmatprep.subr.mxu0 0.0
    %848 = vmatpush2.msra.mxu0 0.0
    %849 = vmatprep.subr.mxu0 0.0
    %850 = vmatpush2.msra.mxu0 0.0
    %851 = vmatprep.subr.mxu0 0.0
    %852 = vmatpush2.msra.mxu0 0.0
    %853 = vmatprep.subr.mxu0 0.0
    %854 = vmatpush2.msra.mxu0 0.0
    %855 = vmatprep.subr.mxu0 0.0
    %856 = vmatpush2.msra.mxu0 0.0
    %857 = vmatprep.subr.mxu0 0.0
    %858 = vmatpush2.msra.mxu0 0.0
    %859 = vmatprep.subr.mxu0 0.0
    %860 = vmatpush2.msra.mxu0 0.0
    %861 = vmatprep.mubr.f32.mxu0 0.0
    %862 = vmatmul.mubr.f32.gmra.mxu0 %v795
    %v863 = vpop.f32.mrf.mxu0
    %v864 = vadd.f32 0.0, %v863
    %v865 = vpop.f32.mrf.mxu0
    %v866 = vadd.f32 0.0, %v865
    %867 = vdwg.mxu0
    %v868 = vadd.f32 %v787, %v864
    %v869 = vadd.f32 %v790, %v866
    %v870 = vxor.u32 %v868, 2147483648
    %v871 = vmul.f32 %v870, 1.442695
    %v872 = vpow.pop %v871
    %v873 = vadd.f32 %v872, 1.0
    %v874 = vrcp.pop %v873
    %v875 = vmul.f32 1.0, %v874
    %v876 = vtanh.pop %v868
    %v878 = vrot.slane %v741, 6
    %v880 = vmul.f32 %v875, %v878
    %882 = vrot.lane.b32.xlu0 %v876, 32
    %v883 = vpop.permute.xlu0 %882
    %v885 = vmul.f32 %v875, %v883
    %887 = vrot.lane.b32.xlu0 %v885, 32
    %v888 = vpop.permute.xlu0 %887
    %v890 = vadd.f32 %v880, %v888
    %v891 = vtanh.pop %v890
    %893 = vrot.lane.b32.xlu0 %v891, 32
    %v894 = vpop.permute.xlu0 %893
    %v896 = vmul.f32 %v875, %v894
    %v897 = vxor.u32 %v869, 2147483648
    %v898 = vmul.f32 %v897, 1.442695
    %v899 = vpow.pop %v898
    %v900 = vadd.f32 %v899, 1.0
    %v901 = vrcp.pop %v900
    %v902 = vmul.f32 1.0, %v901
    %v903 = vtanh.pop %v869
    %v905 = vrot.slane %v768, 6
    %v907 = vmul.f32 %v902, %v905
    %909 = vrot.lane.b32.xlu0 %v903, 32
    %v910 = vpop.permute.xlu0 %909
    %v912 = vmul.f32 %v902, %v910
    %914 = vrot.lane.b32.xlu0 %v912, 32
    %v915 = vpop.permute.xlu0 %914
    %v917 = vadd.f32 %v907, %v915
    %v918 = vtanh.pop %v917
    %920 = vrot.lane.b32.xlu0 %v918, 32
    %v921 = vpop.permute.xlu0 %920
    %v923 = vmul.f32 %v902, %v921
    %925 = vrot.lane.b32.xlu0 %v896, 64
    %v926 = vpop.permute.xlu0 %925
    %928 = vst.msk [vmem:[#allocation2 + $0x8] sm:$0x3] %vm314, %v926
    %930 = vrot.lane.b32.xlu0 %v923, 96
    %v931 = vpop.permute.xlu0 %930
    %933 = vst.msk [vmem:[#allocation2 + $0x6] sm:$0x3] %vm320, %v931
    %v934 = vld [vmem:[#allocation3 + $0x10] sm:$0xc]
    %v935 = vld [vmem:[#allocation3 + $0x8] sm:$0x30]
    %v937 = vrot.slane %v935, 2
    %v939 = vsel %vm327, %v926, %v931
    %v941 = vsel %vm185, %v939, 0
    %943 = vmatprep.subr.mxu0 0.0
    %944 = vmatpush1.msra.mxu0 0.0
    %945 = vmatprep.subr.mxu0 0.0
    %946 = vmatpush1.msra.mxu0 0.0
    %947 = vmatprep.subr.mxu0 0.0
    %948 = vmatpush1.msra.mxu0 0.0
    %949 = vmatprep.subr.mxu0 0.0
    %950 = vmatpush1.msra.mxu0 0.0
    %951 = vmatprep.subr.mxu0 0.0
    %952 = vmatpush1.msra.mxu0 0.0
    %953 = vmatprep.subr.mxu0 0.0
    %954 = vmatpush1.msra.mxu0 0.0
    %955 = vmatprep.subr.mxu0 0.0
    %956 = vmatpush1.msra.mxu0 0.0
    %957 = vmatprep.subr.mxu0 0.0
    %958 = vmatpush1.msra.mxu0 0.0
    %959 = vmatprep.subr.mxu0 %v179
    %960 = vmatpush1.msra.mxu0 %v178
    %961 = vmatprep.subr.mxu0 %v177
    %962 = vmatpush1.msra.mxu0 %v176
    %963 = vmatprep.subr.mxu0 %v175
    %964 = vmatpush1.msra.mxu0 %v174
    %965 = vmatprep.subr.mxu0 %v173
    %966 = vmatpush1.msra.mxu0 %v172
    %967 = vmatprep.subr.mxu0 %v171
    %968 = vmatpush1.msra.mxu0 %v170
    %969 = vmatprep.subr.mxu0 %v169
    %970 = vmatpush1.msra.mxu0 %v168
    %971 = vmatprep.subr.mxu0 %v167
    %972 = vmatpush1.msra.mxu0 %v166
    %973 = vmatprep.subr.mxu0 %v165
    %974 = vmatpush1.msra.mxu0 %v164
    %975 = vmatprep.subr.mxu0 0.0
    %976 = vmatpush2.msra.mxu0 0.0
    %977 = vmatprep.subr.mxu0 0.0
    %978 = vmatpush2.msra.mxu0 0.0
    %979 = vmatprep.subr.mxu0 0.0
    %980 = vmatpush2.msra.mxu0 0.0
    %981 = vmatprep.subr.mxu0 0.0
    %982 = vmatpush2.msra.mxu0 0.0
    %983 = vmatprep.subr.mxu0 0.0
    %984 = vmatpush2.msra.mxu0 0.0
    %985 = vmatprep.subr.mxu0 0.0
    %986 = vmatpush2.msra.mxu0 0.0
    %987 = vmatprep.subr.mxu0 0.0
    %988 = vmatpush2.msra.mxu0 0.0
    %989 = vmatprep.subr.mxu0 0.0
    %990 = vmatpush2.msra.mxu0 0.0
    %991 = vmatprep.subr.mxu0 0.0
    %992 = vmatpush2.msra.mxu0 0.0
    %993 = vmatprep.subr.mxu0 0.0
    %994 = vmatpush2.msra.mxu0 0.0
    %995 = vmatprep.subr.mxu0 0.0
    %996 = vmatpush2.msra.mxu0 0.0
    %997 = vmatprep.subr.mxu0 0.0
    %998 = vmatpush2.msra.mxu0 0.0
    %999 = vmatprep.subr.mxu0 0.0
    %1000 = vmatpush2.msra.mxu0 0.0
    %1001 = vmatprep.subr.mxu0 0.0
    %1002 = vmatpush2.msra.mxu0 0.0
    %1003 = vmatprep.subr.mxu0 0.0
    %1004 = vmatpush2.msra.mxu0 0.0
    %1005 = vmatprep.subr.mxu0 0.0
    %1006 = vmatpush2.msra.mxu0 0.0
    %1007 = vmatprep.mubr.f32.mxu0 0.0
    %1008 = vmatmul.mubr.f32.gmra.mxu0 %v941
    %v1009 = vpop.f32.mrf.mxu0
    %v1010 = vadd.f32 0.0, %v1009
    %v1011 = vpop.f32.mrf.mxu0
    %v1012 = vadd.f32 0.0, %v1011
    %1013 = vdwg.mxu0
    %v1016 = vrot.slane %v1010, 6
    %v1017 = vrot.slane %v1012, 6
    %v1020 = vadd.f32 %v934, %v1016
    %v1021 = vadd.f32 %v937, %v1017
    %v1022 = vxor.u32 %v1020, 2147483648
    %v1023 = vmul.f32 %v1022, 1.442695
    %v1024 = vpow.pop %v1023
    %v1025 = vadd.f32 %v1024, 1.0
    %v1026 = vrcp.pop %v1025
    %v1027 = vmul.f32 1.0, %v1026
    %v1028 = vtanh.pop %v1020
    %v1030 = vrot.slane %v890, 6
    %v1032 = vmul.f32 %v1027, %v1030
    %1034 = vrot.lane.b32.xlu0 %v1028, 32
    %v1035 = vpop.permute.xlu0 %1034
    %v1037 = vmul.f32 %v1027, %v1035
    %1039 = vrot.lane.b32.xlu0 %v1037, 32
    %v1040 = vpop.permute.xlu0 %1039
    %v1042 = vadd.f32 %v1032, %v1040
    %v1043 = vtanh.pop %v1042
    %1045 = vrot.lane.b32.xlu0 %v1043, 32
    %v1046 = vpop.permute.xlu0 %1045
    %v1048 = vmul.f32 %v1027, %v1046
    %v1049 = vxor.u32 %v1021, 2147483648
    %v1050 = vmul.f32 %v1049, 1.442695
    %v1051 = vpow.pop %v1050
    %v1052 = vadd.f32 %v1051, 1.0
    %v1053 = vrcp.pop %v1052
    %v1054 = vmul.f32 1.0, %v1053
    %v1055 = vtanh.pop %v1021
    %v1057 = vrot.slane %v917, 6
    %v1059 = vmul.f32 %v1054, %v1057
    %1061 = vrot.lane.b32.xlu0 %v1055, 32
    %v1062 = vpop.permute.xlu0 %1061
    %v1064 = vmul.f32 %v1054, %v1062
    %1066 = vrot.lane.b32.xlu0 %v1064, 32
    %v1067 = vpop.permute.xlu0 %1066
    %v1069 = vadd.f32 %v1059, %v1067
    %v1070 = vtanh.pop %v1069
    %1072 = vrot.lane.b32.xlu0 %v1070, 32
    %v1073 = vpop.permute.xlu0 %1072
    %v1075 = vmul.f32 %v1054, %v1073
    %1077 = vrot.lane.b32.xlu0 %v1048, 64
    %v1078 = vpop.permute.xlu0 %1077
    %1080 = vst.msk [vmem:[#allocation2 + $0x8] sm:$0xc] %vm469, %v1078
    %1082 = vrot.lane.b32.xlu0 %v1075, 96
    %v1083 = vpop.permute.xlu0 %1082
    %1085 = vst.msk [vmem:[#allocation2 + $0x2] sm:$0xc] %vm475, %v1083
    %v1086 = vld [vmem:[#allocation3 + $0x10] sm:$0x30]
    %v1087 = vld [vmem:[#allocation3 + $0x8] sm:$0xc]
    %v1089 = vrot.slane %v1087, 6
    %v1091 = vsel %vm327, %v1078, %v1083
    %v1093 = vrot.slane %v1091, 2
    %v1094 = vsel %vm185, %v1093, 0
    %1096 = vmatprep.subr.mxu0 0.0
    %1097 = vmatpush1.msra.mxu0 0.0
    %1098 = vmatprep.subr.mxu0 0.0
    %1099 = vmatpush1.msra.mxu0 0.0
    %1100 = vmatprep.subr.mxu0 0.0
    %1101 = vmatpush1.msra.mxu0 0.0
    %1102 = vmatprep.subr.mxu0 0.0
    %1103 = vmatpush1.msra.mxu0 0.0
    %1104 = vmatprep.subr.mxu0 0.0
    %1105 = vmatpush1.msra.mxu0 0.0
    %1106 = vmatprep.subr.mxu0 0.0
    %1107 = vmatpush1.msra.mxu0 0.0
    %1108 = vmatprep.subr.mxu0 0.0
    %1109 = vmatpush1.msra.mxu0 0.0
    %1110 = vmatprep.subr.mxu0 0.0
    %1111 = vmatpush1.msra.mxu0 0.0
    %1112 = vmatprep.subr.mxu0 %v179
    %1113 = vmatpush1.msra.mxu0 %v178
    %1114 = vmatprep.subr.mxu0 %v177
    %1115 = vmatpush1.msra.mxu0 %v176
    %1116 = vmatprep.subr.mxu0 %v175
    %1117 = vmatpush1.msra.mxu0 %v174
    %1118 = vmatprep.subr.mxu0 %v173
    %1119 = vmatpush1.msra.mxu0 %v172
    %1120 = vmatprep.subr.mxu0 %v171
    %1121 = vmatpush1.msra.mxu0 %v170
    %1122 = vmatprep.subr.mxu0 %v169
    %1123 = vmatpush1.msra.mxu0 %v168
    %1124 = vmatprep.subr.mxu0 %v167
    %1125 = vmatpush1.msra.mxu0 %v166
    %1126 = vmatprep.subr.mxu0 %v165
    %1127 = vmatpush1.msra.mxu0 %v164
    %1128 = vmatprep.subr.mxu0 0.0
    %1129 = vmatpush2.msra.mxu0 0.0
    %1130 = vmatprep.subr.mxu0 0.0
    %1131 = vmatpush2.msra.mxu0 0.0
    %1132 = vmatprep.subr.mxu0 0.0
    %1133 = vmatpush2.msra.mxu0 0.0
    %1134 = vmatprep.subr.mxu0 0.0
    %1135 = vmatpush2.msra.mxu0 0.0
    %1136 = vmatprep.subr.mxu0 0.0
    %1137 = vmatpush2.msra.mxu0 0.0
    %1138 = vmatprep.subr.mxu0 0.0
    %1139 = vmatpush2.msra.mxu0 0.0
    %1140 = vmatprep.subr.mxu0 0.0
    %1141 = vmatpush2.msra.mxu0 0.0
    %1142 = vmatprep.subr.mxu0 0.0
    %1143 = vmatpush2.msra.mxu0 0.0
    %1144 = vmatprep.subr.mxu0 0.0
    %1145 = vmatpush2.msra.mxu0 0.0
    %1146 = vmatprep.subr.mxu0 0.0
    %1147 = vmatpush2.msra.mxu0 0.0
    %1148 = vmatprep.subr.mxu0 0.0
    %1149 = vmatpush2.msra.mxu0 0.0
    %1150 = vmatprep.subr.mxu0 0.0
    %1151 = vmatpush2.msra.mxu0 0.0
    %1152 = vmatprep.subr.mxu0 0.0
    %1153 = vmatpush2.msra.mxu0 0.0
    %1154 = vmatprep.subr.mxu0 0.0
    %1155 = vmatpush2.msra.mxu0 0.0
    %1156 = vmatprep.subr.mxu0 0.0
    %1157 = vmatpush2.msra.mxu0 0.0
    %1158 = vmatprep.subr.mxu0 0.0
    %1159 = vmatpush2.msra.mxu0 0.0
    %1160 = vmatprep.mubr.f32.mxu0 0.0
    %1161 = vmatmul.mubr.f32.gmra.mxu0 %v1094
    %v1162 = vpop.f32.mrf.mxu0
    %v1163 = vadd.f32 0.0, %v1162
    %v1164 = vpop.f32.mrf.mxu0
    %v1165 = vadd.f32 0.0, %v1164
    %1166 = vdwg.mxu0
    %v1169 = vrot.slane %v1163, 4
    %v1170 = vrot.slane %v1165, 4
    %v1173 = vadd.f32 %v1086, %v1169
    %v1174 = vadd.f32 %v1089, %v1170
    %v1175 = vxor.u32 %v1173, 2147483648
    %v1176 = vmul.f32 %v1175, 1.442695
    %v1177 = vpow.pop %v1176
    %v1178 = vadd.f32 %v1177, 1.0
    %v1179 = vrcp.pop %v1178
    %v1180 = vmul.f32 1.0, %v1179
    %v1181 = vtanh.pop %v1173
    %v1183 = vrot.slane %v1042, 6
    %v1185 = vmul.f32 %v1180, %v1183
    %1187 = vrot.lane.b32.xlu0 %v1181, 32
    %v1188 = vpop.permute.xlu0 %1187
    %v1190 = vmul.f32 %v1180, %v1188
    %1192 = vrot.lane.b32.xlu0 %v1190, 32
    %v1193 = vpop.permute.xlu0 %1192
    %v1195 = vadd.f32 %v1185, %v1193
    %v1196 = vtanh.pop %v1195
    %1198 = vrot.lane.b32.xlu0 %v1196, 32
    %v1199 = vpop.permute.xlu0 %1198
    %v1201 = vmul.f32 %v1180, %v1199
    %v1202 = vxor.u32 %v1174, 2147483648
    %v1203 = vmul.f32 %v1202, 1.442695
    %v1204 = vpow.pop %v1203
    %v1205 = vadd.f32 %v1204, 1.0
    %v1206 = vrcp.pop %v1205
    %v1207 = vmul.f32 1.0, %v1206
    %v1208 = vtanh.pop %v1174
    %v1210 = vrot.slane %v1069, 6
    %v1212 = vmul.f32 %v1207, %v1210
    %1214 = vrot.lane.b32.xlu0 %v1208, 32
    %v1215 = vpop.permute.xlu0 %1214
    %v1217 = vmul.f32 %v1207, %v1215
    %1219 = vrot.lane.b32.xlu0 %v1217, 32
    %v1220 = vpop.permute.xlu0 %1219
    %v1222 = vadd.f32 %v1212, %v1220
    %v1223 = vtanh.pop %v1222
    %1225 = vrot.lane.b32.xlu0 %v1223, 32
    %v1226 = vpop.permute.xlu0 %1225
    %v1228 = vmul.f32 %v1207, %v1226
    %1230 = vrot.lane.b32.xlu0 %v1201, 64
    %v1231 = vpop.permute.xlu0 %1230
    %1233 = vst.msk [vmem:[#allocation2 + $0x8] sm:$0x30] %vm624, %v1231
    %1235 = vrot.lane.b32.xlu0 %v1228, 96
    %v1236 = vpop.permute.xlu0 %1235
    %1238 = vst.msk [vmem:[#allocation2 - $0x2] sm:$0x30] %vm630, %v1236
    %v1239 = vld [vmem:[#allocation3 + $0x10] sm:$0xc0]
    %v1240 = vld [vmem:[#allocation3 + $0x8] sm:$0x3]
    %v1242 = vrot.slane %v1240, 2
    %v1244 = vsel %vm327, %v1231, %v1236
    %v1246 = vrot.slane %v1244, 4
    %v1247 = vsel %vm185, %v1246, 0
    %1249 = vmatprep.subr.mxu0 0.0
    %1250 = vmatpush1.msra.mxu0 0.0
    %1251 = vmatprep.subr.mxu0 0.0
    %1252 = vmatpush1.msra.mxu0 0.0
    %1253 = vmatprep.subr.mxu0 0.0
    %1254 = vmatpush1.msra.mxu0 0.0
    %1255 = vmatprep.subr.mxu0 0.0
    %1256 = vmatpush1.msra.mxu0 0.0
    %1257 = vmatprep.subr.mxu0 0.0
    %1258 = vmatpush1.msra.mxu0 0.0
    %1259 = vmatprep.subr.mxu0 0.0
    %1260 = vmatpush1.msra.mxu0 0.0
    %1261 = vmatprep.subr.mxu0 0.0
    %1262 = vmatpush1.msra.mxu0 0.0
    %1263 = vmatprep.subr.mxu0 0.0
    %1264 = vmatpush1.msra.mxu0 0.0
    %1265 = vmatprep.subr.mxu0 %v179
    %1266 = vmatpush1.msra.mxu0 %v178
    %1267 = vmatprep.subr.mxu0 %v177
    %1268 = vmatpush1.msra.mxu0 %v176
    %1269 = vmatprep.subr.mxu0 %v175
    %1270 = vmatpush1.msra.mxu0 %v174
    %1271 = vmatprep.subr.mxu0 %v173
    %1272 = vmatpush1.msra.mxu0 %v172
    %1273 = vmatprep.subr.mxu0 %v171
    %1274 = vmatpush1.msra.mxu0 %v170
    %1275 = vmatprep.subr.mxu0 %v169
    %1276 = vmatpush1.msra.mxu0 %v168
    %1277 = vmatprep.subr.mxu0 %v167
    %1278 = vmatpush1.msra.mxu0 %v166
    %1279 = vmatprep.subr.mxu0 %v165
    %1280 = vmatpush1.msra.mxu0 %v164
    %1281 = vmatprep.subr.mxu0 0.0
    %1282 = vmatpush2.msra.mxu0 0.0
    %1283 = vmatprep.subr.mxu0 0.0
    %1284 = vmatpush2.msra.mxu0 0.0
    %1285 = vmatprep.subr.mxu0 0.0
    %1286 = vmatpush2.msra.mxu0 0.0
    %1287 = vmatprep.subr.mxu0 0.0
    %1288 = vmatpush2.msra.mxu0 0.0
    %1289 = vmatprep.subr.mxu0 0.0
    %1290 = vmatpush2.msra.mxu0 0.0
    %1291 = vmatprep.subr.mxu0 0.0
    %1292 = vmatpush2.msra.mxu0 0.0
    %1293 = vmatprep.subr.mxu0 0.0
    %1294 = vmatpush2.msra.mxu0 0.0
    %1295 = vmatprep.subr.mxu0 0.0
    %1296 = vmatpush2.msra.mxu0 0.0
    %1297 = vmatprep.subr.mxu0 0.0
    %1298 = vmatpush2.msra.mxu0 0.0
    %1299 = vmatprep.subr.mxu0 0.0
    %1300 = vmatpush2.msra.mxu0 0.0
    %1301 = vmatprep.subr.mxu0 0.0
    %1302 = vmatpush2.msra.mxu0 0.0
    %1303 = vmatprep.subr.mxu0 0.0
    %1304 = vmatpush2.msra.mxu0 0.0
    %1305 = vmatprep.subr.mxu0 0.0
    %1306 = vmatpush2.msra.mxu0 0.0
    %1307 = vmatprep.subr.mxu0 0.0
    %1308 = vmatpush2.msra.mxu0 0.0
    %1309 = vmatprep.subr.mxu0 0.0
    %1310 = vmatpush2.msra.mxu0 0.0
    %1311 = vmatprep.subr.mxu0 0.0
    %1312 = vmatpush2.msra.mxu0 0.0
    %1313 = vmatprep.mubr.f32.mxu0 0.0
    %1314 = vmatmul.mubr.f32.gmra.mxu0 %v1247
    %v1315 = vpop.f32.mrf.mxu0
    %v1316 = vadd.f32 0.0, %v1315
    %v1317 = vpop.f32.mrf.mxu0
    %v1318 = vadd.f32 0.0, %v1317
    %1319 = vdwg.mxu0
    %v1322 = vrot.slane %v1316, 2
    %v1323 = vrot.slane %v1318, 2
    %v1326 = vadd.f32 %v1239, %v1322
    %v1327 = vadd.f32 %v1242, %v1323
    %v1328 = vxor.u32 %v1326, 2147483648
    %v1329 = vmul.f32 %v1328, 1.442695
    %v1330 = vpow.pop %v1329
    %v1331 = vadd.f32 %v1330, 1.0
    %v1332 = vrcp.pop %v1331
    %v1333 = vmul.f32 1.0, %v1332
    %v1334 = vtanh.pop %v1326
    %v1336 = vrot.slane %v1195, 6
    %v1338 = vmul.f32 %v1333, %v1336
    %1340 = vrot.lane.b32.xlu0 %v1334, 32
    %v1341 = vpop.permute.xlu0 %1340
    %v1343 = vmul.f32 %v1333, %v1341
    %1345 = vrot.lane.b32.xlu0 %v1343, 32
    %v1346 = vpop.permute.xlu0 %1345
    %v1348 = vadd.f32 %v1338, %v1346
    %v1349 = vtanh.pop %v1348
    %1351 = vrot.lane.b32.xlu0 %v1349, 32
    %v1352 = vpop.permute.xlu0 %1351
    %v1354 = vmul.f32 %v1333, %v1352
    %v1355 = vxor.u32 %v1327, 2147483648
    %v1356 = vmul.f32 %v1355, 1.442695
    %v1357 = vpow.pop %v1356
    %v1358 = vadd.f32 %v1357, 1.0
    %v1359 = vrcp.pop %v1358
    %v1360 = vmul.f32 1.0, %v1359
    %v1361 = vtanh.pop %v1327
    %v1363 = vrot.slane %v1222, 6
    %v1365 = vmul.f32 %v1360, %v1363
    %1367 = vrot.lane.b32.xlu0 %v1361, 32
    %v1368 = vpop.permute.xlu0 %1367
    %v1370 = vmul.f32 %v1360, %v1368
    %1372 = vrot.lane.b32.xlu0 %v1370, 32
    %v1373 = vpop.permute.xlu0 %1372
    %v1375 = vadd.f32 %v1365, %v1373
    %v1376 = vtanh.pop %v1375
    %1378 = vrot.lane.b32.xlu0 %v1376, 32
    %v1379 = vpop.permute.xlu0 %1378
    %v1381 = vmul.f32 %v1360, %v1379
    %1383 = vrot.lane.b32.xlu0 %v1354, 64
    %v1384 = vpop.permute.xlu0 %1383
    %1386 = vst.msk [vmem:[#allocation2 + $0x8] sm:$0xc0] %vm779, %v1384
    %1388 = vrot.lane.b32.xlu0 %v1381, 96
    %v1389 = vpop.permute.xlu0 %1388
    %1391 = vst.msk [vmem:[#allocation2 - $0x6] sm:$0xc0] %vm785, %v1389
    %v1392 = vld [vmem:[#allocation2] sm:$0xff]
    %v1393 = vld [vmem:[#allocation2 + $0x8] sm:$0xff]
    %v1394 = vld [vmem:[#allocation4] sm:$0xff]
    %v1395 = vld [vmem:[#allocation4 + $0x8] sm:$0xff]
    %v1396 = vld [vmem:[#allocation4 + $0x10] sm:$0xff]
    %v1397 = vld [vmem:[#allocation4 + $0x18] sm:$0xff]
    %v1398 = vld [vmem:[#allocation4 + $0x20] sm:$0xff]
    %v1399 = vld [vmem:[#allocation4 + $0x28] sm:$0xff]
    %v1400 = vld [vmem:[#allocation4 + $0x30] sm:$0xff]
    %v1401 = vld [vmem:[#allocation4 + $0x38] sm:$0xff]
    %v1402 = vld [vmem:[#allocation4 + $0x40] sm:$0xff]
    %v1403 = vld [vmem:[#allocation4 + $0x48] sm:$0xff]
    %v1404 = vld [vmem:[#allocation4 + $0x50] sm:$0xff]
    %v1405 = vld [vmem:[#allocation4 + $0x58] sm:$0xff]
    %v1406 = vld [vmem:[#allocation4 + $0x60] sm:$0xff]
    %v1407 = vld [vmem:[#allocation4 + $0x68] sm:$0xff]
    %v1408 = vld [vmem:[#allocation4 + $0x70] sm:$0xff]
    %v1409 = vld [vmem:[#allocation4 + $0x78] sm:$0xff]
    %v1410 = vld [vmem:[%s4] sm:$0x3]
    %v1412 = vlaneseq
    %v1413 = vshrl.u32 %v1412, 7
    %v1414 = vsub.s32 0, %v1413
    %v1415 = vrot.slane %v1410, %v1414
    %v1416 = vlaneseq
    %v1417 = vshrl.u32 %v1416, 7
    %v1418 = vsub.s32 1, %v1417
    %v1419 = vrot.slane %v1410, %v1418
    %v1423 = vsel %vm185, %v1392, 0
    %v1426 = vsel %vm185, %v1393, 0
    %1428 = vmatprep.subr.mxu0 0.0
    %1429 = vmatpush1.msra.mxu0 0.0
    %1430 = vmatprep.subr.mxu0 0.0
    %1431 = vmatpush1.msra.mxu0 0.0
    %1432 = vmatprep.subr.mxu0 0.0
    %1433 = vmatpush1.msra.mxu0 0.0
    %1434 = vmatprep.subr.mxu0 0.0
    %1435 = vmatpush1.msra.mxu0 0.0
    %1436 = vmatprep.subr.mxu0 0.0
    %1437 = vmatpush1.msra.mxu0 0.0
    %1438 = vmatprep.subr.mxu0 0.0
    %1439 = vmatpush1.msra.mxu0 0.0
    %1440 = vmatprep.subr.mxu0 0.0
    %1441 = vmatpush1.msra.mxu0 0.0
    %1442 = vmatprep.subr.mxu0 0.0
    %1443 = vmatpush1.msra.mxu0 0.0
    %1444 = vmatprep.subr.mxu0 %v1409
    %1445 = vmatpush1.msra.mxu0 %v1408
    %1446 = vmatprep.subr.mxu0 %v1407
    %1447 = vmatpush1.msra.mxu0 %v1406
    %1448 = vmatprep.subr.mxu0 %v1405
    %1449 = vmatpush1.msra.mxu0 %v1404
    %1450 = vmatprep.subr.mxu0 %v1403
    %1451 = vmatpush1.msra.mxu0 %v1402
    %1452 = vmatprep.subr.mxu0 %v1401
    %1453 = vmatpush1.msra.mxu0 %v1400
    %1454 = vmatprep.subr.mxu0 %v1399
    %1455 = vmatpush1.msra.mxu0 %v1398
    %1456 = vmatprep.subr.mxu0 %v1397
    %1457 = vmatpush1.msra.mxu0 %v1396
    %1458 = vmatprep.subr.mxu0 %v1395
    %1459 = vmatpush1.msra.mxu0 %v1394
    %1460 = vmatprep.subr.mxu0 0.0
    %1461 = vmatpush2.msra.mxu0 0.0
    %1462 = vmatprep.subr.mxu0 0.0
    %1463 = vmatpush2.msra.mxu0 0.0
    %1464 = vmatprep.subr.mxu0 0.0
    %1465 = vmatpush2.msra.mxu0 0.0
    %1466 = vmatprep.subr.mxu0 0.0
    %1467 = vmatpush2.msra.mxu0 0.0
    %1468 = vmatprep.subr.mxu0 0.0
    %1469 = vmatpush2.msra.mxu0 0.0
    %1470 = vmatprep.subr.mxu0 0.0
    %1471 = vmatpush2.msra.mxu0 0.0
    %1472 = vmatprep.subr.mxu0 0.0
    %1473 = vmatpush2.msra.mxu0 0.0
    %1474 = vmatprep.subr.mxu0 0.0
    %1475 = vmatpush2.msra.mxu0 0.0
    %1476 = vmatprep.subr.mxu0 0.0
    %1477 = vmatpush2.msra.mxu0 0.0
    %1478 = vmatprep.subr.mxu0 0.0
    %1479 = vmatpush2.msra.mxu0 0.0
    %1480 = vmatprep.subr.mxu0 0.0
    %1481 = vmatpush2.msra.mxu0 0.0
    %1482 = vmatprep.subr.mxu0 0.0
    %1483 = vmatpush2.msra.mxu0 0.0
    %1484 = vmatprep.subr.mxu0 0.0
    %1485 = vmatpush2.msra.mxu0 0.0
    %1486 = vmatprep.subr.mxu0 0.0
    %1487 = vmatpush2.msra.mxu0 0.0
    %1488 = vmatprep.subr.mxu0 0.0
    %1489 = vmatpush2.msra.mxu0 0.0
    %1490 = vmatprep.subr.mxu0 0.0
    %1491 = vmatpush2.msra.mxu0 0.0
    %1492 = vmatprep.mubr.f32.mxu0 0.0
    %1493 = vmatmul.mubr.f32.gmra.mxu0 %v1423
    %v1494 = vpop.f32.mrf.mxu0
    %v1495 = vadd.f32 %v1415, %v1494
    %v1496 = vpop.f32.mrf.mxu0
    %v1497 = vadd.f32 %v1419, %v1496
    %1498 = vmatprep.mubr.f32.mxu0 0.0
    %1499 = vmatmul.mubr.f32.gmra.mxu0 %v1426
    %v1500 = vpop.f32.mrf.mxu0
    %v1501 = vadd.f32 %v1415, %v1500
    %v1502 = vpop.f32.mrf.mxu0
    %v1503 = vadd.f32 %v1419, %v1502
    %1504 = vdwg.mxu0
    %1505 = vst [vmem:[#allocation3] sm:$0xff] %v1495
    %1506 = vst [vmem:[#allocation3 + $0x8] sm:$0xff] %v1497
    %1507 = vst [vmem:[#allocation3 + $0x10] sm:$0xff] %v1501
    %1508 = vst [vmem:[#allocation3 + $0x18] sm:$0xff] %v1503
    %s1509 = scalar_lea.vmem [#allocation7], 128
    %v1510 = vld [vmem:[%s1509] sm:$0xff]
    %v1511 = vld [vmem:[%s1509 + $0x8] sm:$0xff]
    %v1512 = vld [vmem:[%s1509 + $0x10] sm:$0xff]
    %v1513 = vld [vmem:[%s1509 + $0x18] sm:$0xff]
    %v1514 = vld [vmem:[%s1509 + $0x20] sm:$0xff]
    %v1515 = vld [vmem:[%s1509 + $0x28] sm:$0xff]
    %v1516 = vld [vmem:[%s1509 + $0x30] sm:$0xff]
    %v1517 = vld [vmem:[%s1509 + $0x38] sm:$0xff]
    %v1518 = vld [vmem:[%s1509 + $0x40] sm:$0xff]
    %v1519 = vld [vmem:[%s1509 + $0x48] sm:$0xff]
    %v1520 = vld [vmem:[%s1509 + $0x50] sm:$0xff]
    %v1521 = vld [vmem:[%s1509 + $0x58] sm:$0xff]
    %v1522 = vld [vmem:[%s1509 + $0x60] sm:$0xff]
    %v1523 = vld [vmem:[%s1509 + $0x68] sm:$0xff]
    %v1524 = vld [vmem:[%s1509 + $0x70] sm:$0xff]
    %v1525 = vld [vmem:[%s1509 + $0x78] sm:$0xff]
    %v1526 = vld [vmem:[#allocation3] sm:$0x3]
    %v1527 = vld [vmem:[#allocation3 + $0x18] sm:$0xc0]
    %v1529 = vrot.slane %v1527, 6
    %1531 = vmatprep.subr.mxu0 0.0
    %1532 = vmatpush1.msra.mxu0 0.0
    %1533 = vmatprep.subr.mxu0 0.0
    %1534 = vmatpush1.msra.mxu0 0.0
    %1535 = vmatprep.subr.mxu0 0.0
    %1536 = vmatpush1.msra.mxu0 0.0
    %1537 = vmatprep.subr.mxu0 0.0
    %1538 = vmatpush1.msra.mxu0 0.0
    %1539 = vmatprep.subr.mxu0 0.0
    %1540 = vmatpush1.msra.mxu0 0.0
    %1541 = vmatprep.subr.mxu0 0.0
    %1542 = vmatpush1.msra.mxu0 0.0
    %1543 = vmatprep.subr.mxu0 0.0
    %1544 = vmatpush1.msra.mxu0 0.0
    %1545 = vmatprep.subr.mxu0 0.0
    %1546 = vmatpush1.msra.mxu0 0.0
    %1547 = vmatprep.subr.mxu0 %v1525
    %1548 = vmatpush1.msra.mxu0 %v1524
    %1549 = vmatprep.subr.mxu0 %v1523
    %1550 = vmatpush1.msra.mxu0 %v1522
    %1551 = vmatprep.subr.mxu0 %v1521
    %1552 = vmatpush1.msra.mxu0 %v1520
    %1553 = vmatprep.subr.mxu0 %v1519
    %1554 = vmatpush1.msra.mxu0 %v1518
    %1555 = vmatprep.subr.mxu0 %v1517
    %1556 = vmatpush1.msra.mxu0 %v1516
    %1557 = vmatprep.subr.mxu0 %v1515
    %1558 = vmatpush1.msra.mxu0 %v1514
    %1559 = vmatprep.subr.mxu0 %v1513
    %1560 = vmatpush1.msra.mxu0 %v1512
    %1561 = vmatprep.subr.mxu0 %v1511
    %1562 = vmatpush1.msra.mxu0 %v1510
    %1563 = vmatprep.subr.mxu0 0.0
    %1564 = vmatpush2.msra.mxu0 0.0
    %1565 = vmatprep.subr.mxu0 0.0
    %1566 = vmatpush2.msra.mxu0 0.0
    %1567 = vmatprep.subr.mxu0 0.0
    %1568 = vmatpush2.msra.mxu0 0.0
    %1569 = vmatprep.subr.mxu0 0.0
    %1570 = vmatpush2.msra.mxu0 0.0
    %1571 = vmatprep.subr.mxu0 0.0
    %1572 = vmatpush2.msra.mxu0 0.0
    %1573 = vmatprep.subr.mxu0 0.0
    %1574 = vmatpush2.msra.mxu0 0.0
    %1575 = vmatprep.subr.mxu0 0.0
    %1576 = vmatpush2.msra.mxu0 0.0
    %1577 = vmatprep.subr.mxu0 0.0
    %1578 = vmatpush2.msra.mxu0 0.0
    %1579 = vmatprep.subr.mxu0 0.0
    %1580 = vmatpush2.msra.mxu0 0.0
    %1581 = vmatprep.subr.mxu0 0.0
    %1582 = vmatpush2.msra.mxu0 0.0
    %1583 = vmatprep.subr.mxu0 0.0
    %1584 = vmatpush2.msra.mxu0 0.0
    %1585 = vmatprep.subr.mxu0 0.0
    %1586 = vmatpush2.msra.mxu0 0.0
    %1587 = vmatprep.subr.mxu0 0.0
    %1588 = vmatpush2.msra.mxu0 0.0
    %1589 = vmatprep.subr.mxu0 0.0
    %1590 = vmatpush2.msra.mxu0 0.0
    %1591 = vmatprep.subr.mxu0 0.0
    %1592 = vmatpush2.msra.mxu0 0.0
    %1593 = vmatprep.subr.mxu0 0.0
    %1594 = vmatpush2.msra.mxu0 0.0
    %1595 = vmatprep.mubr.f32.mxu0 0.0
    %1596 = vmatmul.mubr.f32.gmra.mxu0 %v187
    %v1597 = vpop.f32.mrf.mxu0
    %v1598 = vadd.f32 0.0, %v1597
    %v1599 = vpop.f32.mrf.mxu0
    %v1600 = vadd.f32 0.0, %v1599
    %1601 = vdwg.mxu0
    %v1602 = vadd.f32 %v1526, %v1598
    %v1603 = vadd.f32 %v1529, %v1600
    %v1604 = vxor.u32 %v1602, 2147483648
    %v1605 = vmul.f32 %v1604, 1.442695
    %v1606 = vpow.pop %v1605
    %v1607 = vadd.f32 %v1606, 1.0
    %v1608 = vrcp.pop %v1607
    %v1609 = vmul.f32 1.0, %v1608
    %v1610 = vtanh.pop %v1602
    %v1611 = vmul.f32 %v1609, 0.0
    %1613 = vrot.lane.b32.xlu0 %v1610, 32
    %v1614 = vpop.permute.xlu0 %1613
    %v1616 = vmul.f32 %v1609, %v1614
    %1618 = vrot.lane.b32.xlu0 %v1616, 32
    %v1619 = vpop.permute.xlu0 %1618
    %v1621 = vadd.f32 %v1611, %v1619
    %v1622 = vtanh.pop %v1621
    %1624 = vrot.lane.b32.xlu0 %v1622, 32
    %v1625 = vpop.permute.xlu0 %1624
    %v1627 = vmul.f32 %v1609, %v1625
    %v1628 = vxor.u32 %v1603, 2147483648
    %v1629 = vmul.f32 %v1628, 1.442695
    %v1630 = vpow.pop %v1629
    %v1631 = vadd.f32 %v1630, 1.0
    %v1632 = vrcp.pop %v1631
    %v1633 = vmul.f32 1.0, %v1632
    %v1634 = vtanh.pop %v1603
    %v1635 = vmul.f32 %v1633, 0.0
    %1637 = vrot.lane.b32.xlu0 %v1634, 32
    %v1638 = vpop.permute.xlu0 %1637
    %v1640 = vmul.f32 %v1633, %v1638
    %1642 = vrot.lane.b32.xlu0 %v1640, 32
    %v1643 = vpop.permute.xlu0 %1642
    %v1645 = vadd.f32 %v1635, %v1643
    %v1646 = vtanh.pop %v1645
    %1648 = vrot.lane.b32.xlu0 %v1646, 32
    %v1649 = vpop.permute.xlu0 %1648
    %v1651 = vmul.f32 %v1633, %v1649
    %1653 = vrot.lane.b32.xlu0 %v1627, 64
    %v1654 = vpop.permute.xlu0 %1653
    %1656 = vst.msk [vmem:[#allocation2] sm:$0x3] %vm314, %v1654
    %1658 = vrot.lane.b32.xlu0 %v1651, 96
    %v1659 = vpop.permute.xlu0 %1658
    %1661 = vst.msk [vmem:[#allocation2 + $0xe] sm:$0x3] %vm320, %v1659
    %v1662 = vld [vmem:[#allocation3] sm:$0xc]
    %v1663 = vld [vmem:[#allocation3 + $0x18] sm:$0x30]
    %v1665 = vrot.slane %v1663, 2
    %v1667 = vsel %vm327, %v1654, %v1659
    %v1669 = vsel %vm185, %v1667, 0
    %1671 = vmatprep.subr.mxu0 0.0
    %1672 = vmatpush1.msra.mxu0 0.0
    %1673 = vmatprep.subr.mxu0 0.0
    %1674 = vmatpush1.msra.mxu0 0.0
    %1675 = vmatprep.subr.mxu0 0.0
    %1676 = vmatpush1.msra.mxu0 0.0
    %1677 = vmatprep.subr.mxu0 0.0
    %1678 = vmatpush1.msra.mxu0 0.0
    %1679 = vmatprep.subr.mxu0 0.0
    %1680 = vmatpush1.msra.mxu0 0.0
    %1681 = vmatprep.subr.mxu0 0.0
    %1682 = vmatpush1.msra.mxu0 0.0
    %1683 = vmatprep.subr.mxu0 0.0
    %1684 = vmatpush1.msra.mxu0 0.0
    %1685 = vmatprep.subr.mxu0 0.0
    %1686 = vmatpush1.msra.mxu0 0.0
    %1687 = vmatprep.subr.mxu0 %v1525
    %1688 = vmatpush1.msra.mxu0 %v1524
    %1689 = vmatprep.subr.mxu0 %v1523
    %1690 = vmatpush1.msra.mxu0 %v1522
    %1691 = vmatprep.subr.mxu0 %v1521
    %1692 = vmatpush1.msra.mxu0 %v1520
    %1693 = vmatprep.subr.mxu0 %v1519
    %1694 = vmatpush1.msra.mxu0 %v1518
    %1695 = vmatprep.subr.mxu0 %v1517
    %1696 = vmatpush1.msra.mxu0 %v1516
    %1697 = vmatprep.subr.mxu0 %v1515
    %1698 = vmatpush1.msra.mxu0 %v1514
    %1699 = vmatprep.subr.mxu0 %v1513
    %1700 = vmatpush1.msra.mxu0 %v1512
    %1701 = vmatprep.subr.mxu0 %v1511
    %1702 = vmatpush1.msra.mxu0 %v1510
    %1703 = vmatprep.subr.mxu0 0.0
    %1704 = vmatpush2.msra.mxu0 0.0
    %1705 = vmatprep.subr.mxu0 0.0
    %1706 = vmatpush2.msra.mxu0 0.0
    %1707 = vmatprep.subr.mxu0 0.0
    %1708 = vmatpush2.msra.mxu0 0.0
    %1709 = vmatprep.subr.mxu0 0.0
    %1710 = vmatpush2.msra.mxu0 0.0
    %1711 = vmatprep.subr.mxu0 0.0
    %1712 = vmatpush2.msra.mxu0 0.0
    %1713 = vmatprep.subr.mxu0 0.0
    %1714 = vmatpush2.msra.mxu0 0.0
    %1715 = vmatprep.subr.mxu0 0.0
    %1716 = vmatpush2.msra.mxu0 0.0
    %1717 = vmatprep.subr.mxu0 0.0
    %1718 = vmatpush2.msra.mxu0 0.0
    %1719 = vmatprep.subr.mxu0 0.0
    %1720 = vmatpush2.msra.mxu0 0.0
    %1721 = vmatprep.subr.mxu0 0.0
    %1722 = vmatpush2.msra.mxu0 0.0
    %1723 = vmatprep.subr.mxu0 0.0
    %1724 = vmatpush2.msra.mxu0 0.0
    %1725 = vmatprep.subr.mxu0 0.0
    %1726 = vmatpush2.msra.mxu0 0.0
    %1727 = vmatprep.subr.mxu0 0.0
    %1728 = vmatpush2.msra.mxu0 0.0
    %1729 = vmatprep.subr.mxu0 0.0
    %1730 = vmatpush2.msra.mxu0 0.0
    %1731 = vmatprep.subr.mxu0 0.0
    %1732 = vmatpush2.msra.mxu0 0.0
    %1733 = vmatprep.subr.mxu0 0.0
    %1734 = vmatpush2.msra.mxu0 0.0
    %1735 = vmatprep.mubr.f32.mxu0 0.0
    %1736 = vmatmul.mubr.f32.gmra.mxu0 %v1669
    %v1737 = vpop.f32.mrf.mxu0
    %v1738 = vadd.f32 0.0, %v1737
    %v1739 = vpop.f32.mrf.mxu0
    %v1740 = vadd.f32 0.0, %v1739
    %1741 = vdwg.mxu0
    %v1744 = vrot.slane %v1738, 6
    %v1745 = vrot.slane %v1740, 6
    %v1748 = vadd.f32 %v1662, %v1744
    %v1749 = vadd.f32 %v1665, %v1745
    %v1750 = vxor.u32 %v1748, 2147483648
    %v1751 = vmul.f32 %v1750, 1.442695
    %v1752 = vpow.pop %v1751
    %v1753 = vadd.f32 %v1752, 1.0
    %v1754 = vrcp.pop %v1753
    %v1755 = vmul.f32 1.0, %v1754
    %v1756 = vtanh.pop %v1748
    %v1758 = vrot.slane %v1621, 6
    %v1760 = vmul.f32 %v1755, %v1758
    %1762 = vrot.lane.b32.xlu0 %v1756, 32
    %v1763 = vpop.permute.xlu0 %1762
    %v1765 = vmul.f32 %v1755, %v1763
    %1767 = vrot.lane.b32.xlu0 %v1765, 32
    %v1768 = vpop.permute.xlu0 %1767
    %v1770 = vadd.f32 %v1760, %v1768
    %v1771 = vtanh.pop %v1770
    %1773 = vrot.lane.b32.xlu0 %v1771, 32
    %v1774 = vpop.permute.xlu0 %1773
    %v1776 = vmul.f32 %v1755, %v1774
    %v1777 = vxor.u32 %v1749, 2147483648
    %v1778 = vmul.f32 %v1777, 1.442695
    %v1779 = vpow.pop %v1778
    %v1780 = vadd.f32 %v1779, 1.0
    %v1781 = vrcp.pop %v1780
    %v1782 = vmul.f32 1.0, %v1781
    %v1783 = vtanh.pop %v1749
    %v1785 = vrot.slane %v1645, 6
    %v1787 = vmul.f32 %v1782, %v1785
    %1789 = vrot.lane.b32.xlu0 %v1783, 32
    %v1790 = vpop.permute.xlu0 %1789
    %v1792 = vmul.f32 %v1782, %v1790
    %1794 = vrot.lane.b32.xlu0 %v1792, 32
    %v1795 = vpop.permute.xlu0 %1794
    %v1797 = vadd.f32 %v1787, %v1795
    %v1798 = vtanh.pop %v1797
    %1800 = vrot.lane.b32.xlu0 %v1798, 32
    %v1801 = vpop.permute.xlu0 %1800
    %v1803 = vmul.f32 %v1782, %v1801
    %1805 = vrot.lane.b32.xlu0 %v1776, 64
    %v1806 = vpop.permute.xlu0 %1805
    %1808 = vst.msk [vmem:[#allocation2] sm:$0xc] %vm469, %v1806
    %1810 = vrot.lane.b32.xlu0 %v1803, 96
    %v1811 = vpop.permute.xlu0 %1810
    %1813 = vst.msk [vmem:[#allocation2 + $0xa] sm:$0xc] %vm475, %v1811
    %v1814 = vld [vmem:[#allocation3] sm:$0x30]
    %v1815 = vld [vmem:[#allocation3 + $0x18] sm:$0xc]
    %v1817 = vrot.slane %v1815, 6
    %v1819 = vsel %vm327, %v1806, %v1811
    %v1821 = vrot.slane %v1819, 2
    %v1822 = vsel %vm185, %v1821, 0
    %1824 = vmatprep.subr.mxu0 0.0
    %1825 = vmatpush1.msra.mxu0 0.0
    %1826 = vmatprep.subr.mxu0 0.0
    %1827 = vmatpush1.msra.mxu0 0.0
    %1828 = vmatprep.subr.mxu0 0.0
    %1829 = vmatpush1.msra.mxu0 0.0
    %1830 = vmatprep.subr.mxu0 0.0
    %1831 = vmatpush1.msra.mxu0 0.0
    %1832 = vmatprep.subr.mxu0 0.0
    %1833 = vmatpush1.msra.mxu0 0.0
    %1834 = vmatprep.subr.mxu0 0.0
    %1835 = vmatpush1.msra.mxu0 0.0
    %1836 = vmatprep.subr.mxu0 0.0
    %1837 = vmatpush1.msra.mxu0 0.0
    %1838 = vmatprep.subr.mxu0 0.0
    %1839 = vmatpush1.msra.mxu0 0.0
    %1840 = vmatprep.subr.mxu0 %v1525
    %1841 = vmatpush1.msra.mxu0 %v1524
    %1842 = vmatprep.subr.mxu0 %v1523
    %1843 = vmatpush1.msra.mxu0 %v1522
    %1844 = vmatprep.subr.mxu0 %v1521
    %1845 = vmatpush1.msra.mxu0 %v1520
    %1846 = vmatprep.subr.mxu0 %v1519
    %1847 = vmatpush1.msra.mxu0 %v1518
    %1848 = vmatprep.subr.mxu0 %v1517
    %1849 = vmatpush1.msra.mxu0 %v1516
    %1850 = vmatprep.subr.mxu0 %v1515
    %1851 = vmatpush1.msra.mxu0 %v1514
    %1852 = vmatprep.subr.mxu0 %v1513
    %1853 = vmatpush1.msra.mxu0 %v1512
    %1854 = vmatprep.subr.mxu0 %v1511
    %1855 = vmatpush1.msra.mxu0 %v1510
    %1856 = vmatprep.subr.mxu0 0.0
    %1857 = vmatpush2.msra.mxu0 0.0
    %1858 = vmatprep.subr.mxu0 0.0
    %1859 = vmatpush2.msra.mxu0 0.0
    %1860 = vmatprep.subr.mxu0 0.0
    %1861 = vmatpush2.msra.mxu0 0.0
    %1862 = vmatprep.subr.mxu0 0.0
    %1863 = vmatpush2.msra.mxu0 0.0
    %1864 = vmatprep.subr.mxu0 0.0
    %1865 = vmatpush2.msra.mxu0 0.0
    %1866 = vmatprep.subr.mxu0 0.0
    %1867 = vmatpush2.msra.mxu0 0.0
    %1868 = vmatprep.subr.mxu0 0.0
    %1869 = vmatpush2.msra.mxu0 0.0
    %1870 = vmatprep.subr.mxu0 0.0
    %1871 = vmatpush2.msra.mxu0 0.0
    %1872 = vmatprep.subr.mxu0 0.0
    %1873 = vmatpush2.msra.mxu0 0.0
    %1874 = vmatprep.subr.mxu0 0.0
    %1875 = vmatpush2.msra.mxu0 0.0
    %1876 = vmatprep.subr.mxu0 0.0
    %1877 = vmatpush2.msra.mxu0 0.0
    %1878 = vmatprep.subr.mxu0 0.0
    %1879 = vmatpush2.msra.mxu0 0.0
    %1880 = vmatprep.subr.mxu0 0.0
    %1881 = vmatpush2.msra.mxu0 0.0
    %1882 = vmatprep.subr.mxu0 0.0
    %1883 = vmatpush2.msra.mxu0 0.0
    %1884 = vmatprep.subr.mxu0 0.0
    %1885 = vmatpush2.msra.mxu0 0.0
    %1886 = vmatprep.subr.mxu0 0.0
    %1887 = vmatpush2.msra.mxu0 0.0
    %1888 = vmatprep.mubr.f32.mxu0 0.0
    %1889 = vmatmul.mubr.f32.gmra.mxu0 %v1822
    %v1890 = vpop.f32.mrf.mxu0
    %v1891 = vadd.f32 0.0, %v1890
    %v1892 = vpop.f32.mrf.mxu0
    %v1893 = vadd.f32 0.0, %v1892
    %1894 = vdwg.mxu0
    %v1897 = vrot.slane %v1891, 4
    %v1898 = vrot.slane %v1893, 4
    %v1901 = vadd.f32 %v1814, %v1897
    %v1902 = vadd.f32 %v1817, %v1898
    %v1903 = vxor.u32 %v1901, 2147483648
    %v1904 = vmul.f32 %v1903, 1.442695
    %v1905 = vpow.pop %v1904
    %v1906 = vadd.f32 %v1905, 1.0
    %v1907 = vrcp.pop %v1906
    %v1908 = vmul.f32 1.0, %v1907
    %v1909 = vtanh.pop %v1901
    %v1911 = vrot.slane %v1770, 6
    %v1913 = vmul.f32 %v1908, %v1911
    %1915 = vrot.lane.b32.xlu0 %v1909, 32
    %v1916 = vpop.permute.xlu0 %1915
    %v1918 = vmul.f32 %v1908, %v1916
    %1920 = vrot.lane.b32.xlu0 %v1918, 32
    %v1921 = vpop.permute.xlu0 %1920
    %v1923 = vadd.f32 %v1913, %v1921
    %v1924 = vtanh.pop %v1923
    %1926 = vrot.lane.b32.xlu0 %v1924, 32
    %v1927 = vpop.permute.xlu0 %1926
    %v1929 = vmul.f32 %v1908, %v1927
    %v1930 = vxor.u32 %v1902, 2147483648
    %v1931 = vmul.f32 %v1930, 1.442695
    %v1932 = vpow.pop %v1931
    %v1933 = vadd.f32 %v1932, 1.0
    %v1934 = vrcp.pop %v1933
    %v1935 = vmul.f32 1.0, %v1934
    %v1936 = vtanh.pop %v1902
    %v1938 = vrot.slane %v1797, 6
    %v1940 = vmul.f32 %v1935, %v1938
    %1942 = vrot.lane.b32.xlu0 %v1936, 32
    %v1943 = vpop.permute.xlu0 %1942
    %v1945 = vmul.f32 %v1935, %v1943
    %1947 = vrot.lane.b32.xlu0 %v1945, 32
    %v1948 = vpop.permute.xlu0 %1947
    %v1950 = vadd.f32 %v1940, %v1948
    %v1951 = vtanh.pop %v1950
    %1953 = vrot.lane.b32.xlu0 %v1951, 32
    %v1954 = vpop.permute.xlu0 %1953
    %v1956 = vmul.f32 %v1935, %v1954
    %1958 = vrot.lane.b32.xlu0 %v1929, 64
    %v1959 = vpop.permute.xlu0 %1958
    %1961 = vst.msk [vmem:[#allocation2] sm:$0x30] %vm624, %v1959
    %1963 = vrot.lane.b32.xlu0 %v1956, 96
    %v1964 = vpop.permute.xlu0 %1963
    %1966 = vst.msk [vmem:[#allocation2 + $0x6] sm:$0x30] %vm630, %v1964
    %v1967 = vld [vmem:[#allocation3] sm:$0xc0]
    %v1968 = vld [vmem:[#allocation3 + $0x18] sm:$0x3]
    %v1970 = vrot.slane %v1968, 2
    %v1972 = vsel %vm327, %v1959, %v1964
    %v1974 = vrot.slane %v1972, 4
    %v1975 = vsel %vm185, %v1974, 0
    %1977 = vmatprep.subr.mxu0 0.0
    %1978 = vmatpush1.msra.mxu0 0.0
    %1979 = vmatprep.subr.mxu0 0.0
    %1980 = vmatpush1.msra.mxu0 0.0
    %1981 = vmatprep.subr.mxu0 0.0
    %1982 = vmatpush1.msra.mxu0 0.0
    %1983 = vmatprep.subr.mxu0 0.0
    %1984 = vmatpush1.msra.mxu0 0.0
    %1985 = vmatprep.subr.mxu0 0.0
    %1986 = vmatpush1.msra.mxu0 0.0
    %1987 = vmatprep.subr.mxu0 0.0
    %1988 = vmatpush1.msra.mxu0 0.0
    %1989 = vmatprep.subr.mxu0 0.0
    %1990 = vmatpush1.msra.mxu0 0.0
    %1991 = vmatprep.subr.mxu0 0.0
    %1992 = vmatpush1.msra.mxu0 0.0
    %1993 = vmatprep.subr.mxu0 %v1525
    %1994 = vmatpush1.msra.mxu0 %v1524
    %1995 = vmatprep.subr.mxu0 %v1523
    %1996 = vmatpush1.msra.mxu0 %v1522
    %1997 = vmatprep.subr.mxu0 %v1521
    %1998 = vmatpush1.msra.mxu0 %v1520
    %1999 = vmatprep.subr.mxu0 %v1519
    %2000 = vmatpush1.msra.mxu0 %v1518
    %2001 = vmatprep.subr.mxu0 %v1517
    %2002 = vmatpush1.msra.mxu0 %v1516
    %2003 = vmatprep.subr.mxu0 %v1515
    %2004 = vmatpush1.msra.mxu0 %v1514
    %2005 = vmatprep.subr.mxu0 %v1513
    %2006 = vmatpush1.msra.mxu0 %v1512
    %2007 = vmatprep.subr.mxu0 %v1511
    %2008 = vmatpush1.msra.mxu0 %v1510
    %2009 = vmatprep.subr.mxu0 0.0
    %2010 = vmatpush2.msra.mxu0 0.0
    %2011 = vmatprep.subr.mxu0 0.0
    %2012 = vmatpush2.msra.mxu0 0.0
    %2013 = vmatprep.subr.mxu0 0.0
    %2014 = vmatpush2.msra.mxu0 0.0
    %2015 = vmatprep.subr.mxu0 0.0
    %2016 = vmatpush2.msra.mxu0 0.0
    %2017 = vmatprep.subr.mxu0 0.0
    %2018 = vmatpush2.msra.mxu0 0.0
    %2019 = vmatprep.subr.mxu0 0.0
    %2020 = vmatpush2.msra.mxu0 0.0
    %2021 = vmatprep.subr.mxu0 0.0
    %2022 = vmatpush2.msra.mxu0 0.0
    %2023 = vmatprep.subr.mxu0 0.0
    %2024 = vmatpush2.msra.mxu0 0.0
    %2025 = vmatprep.subr.mxu0 0.0
    %2026 = vmatpush2.msra.mxu0 0.0
    %2027 = vmatprep.subr.mxu0 0.0
    %2028 = vmatpush2.msra.mxu0 0.0
    %2029 = vmatprep.subr.mxu0 0.0
    %2030 = vmatpush2.msra.mxu0 0.0
    %2031 = vmatprep.subr.mxu0 0.0
    %2032 = vmatpush2.msra.mxu0 0.0
    %2033 = vmatprep.subr.mxu0 0.0
    %2034 = vmatpush2.msra.mxu0 0.0
    %2035 = vmatprep.subr.mxu0 0.0
    %2036 = vmatpush2.msra.mxu0 0.0
    %2037 = vmatprep.subr.mxu0 0.0
    %2038 = vmatpush2.msra.mxu0 0.0
    %2039 = vmatprep.subr.mxu0 0.0
    %2040 = vmatpush2.msra.mxu0 0.0
    %2041 = vmatprep.mubr.f32.mxu0 0.0
    %2042 = vmatmul.mubr.f32.gmra.mxu0 %v1975
    %v2043 = vpop.f32.mrf.mxu0
    %v2044 = vadd.f32 0.0, %v2043
    %v2045 = vpop.f32.mrf.mxu0
    %v2046 = vadd.f32 0.0, %v2045
    %2047 = vdwg.mxu0
    %v2050 = vrot.slane %v2044, 2
    %v2051 = vrot.slane %v2046, 2
    %v2054 = vadd.f32 %v1967, %v2050
    %v2055 = vadd.f32 %v1970, %v2051
    %v2056 = vxor.u32 %v2054, 2147483648
    %v2057 = vmul.f32 %v2056, 1.442695
    %v2058 = vpow.pop %v2057
    %v2059 = vadd.f32 %v2058, 1.0
    %v2060 = vrcp.pop %v2059
    %v2061 = vmul.f32 1.0, %v2060
    %v2062 = vtanh.pop %v2054
    %v2064 = vrot.slane %v1923, 6
    %v2066 = vmul.f32 %v2061, %v2064
    %2068 = vrot.lane.b32.xlu0 %v2062, 32
    %v2069 = vpop.permute.xlu0 %2068
    %v2071 = vmul.f32 %v2061, %v2069
    %2073 = vrot.lane.b32.xlu0 %v2071, 32
    %v2074 = vpop.permute.xlu0 %2073
    %v2076 = vadd.f32 %v2066, %v2074
    %v2077 = vtanh.pop %v2076
    %2079 = vrot.lane.b32.xlu0 %v2077, 32
    %v2080 = vpop.permute.xlu0 %2079
    %v2082 = vmul.f32 %v2061, %v2080
    %v2083 = vxor.u32 %v2055, 2147483648
    %v2084 = vmul.f32 %v2083, 1.442695
    %v2085 = vpow.pop %v2084
    %v2086 = vadd.f32 %v2085, 1.0
    %v2087 = vrcp.pop %v2086
    %v2088 = vmul.f32 1.0, %v2087
    %v2089 = vtanh.pop %v2055
    %v2091 = vrot.slane %v1950, 6
    %v2093 = vmul.f32 %v2088, %v2091
    %2095 = vrot.lane.b32.xlu0 %v2089, 32
    %v2096 = vpop.permute.xlu0 %2095
    %v2098 = vmul.f32 %v2088, %v2096
    %2100 = vrot.lane.b32.xlu0 %v2098, 32
    %v2101 = vpop.permute.xlu0 %2100
    %v2103 = vadd.f32 %v2093, %v2101
    %v2104 = vtanh.pop %v2103
    %2106 = vrot.lane.b32.xlu0 %v2104, 32
    %v2107 = vpop.permute.xlu0 %2106
    %v2109 = vmul.f32 %v2088, %v2107
    %2111 = vrot.lane.b32.xlu0 %v2082, 64
    %v2112 = vpop.permute.xlu0 %2111
    %2114 = vst.msk [vmem:[#allocation2] sm:$0xc0] %vm779, %v2112
    %2116 = vrot.lane.b32.xlu0 %v2109, 96
    %v2117 = vpop.permute.xlu0 %2116
    %2119 = vst.msk [vmem:[#allocation2 + $0x2] sm:$0xc0] %vm785, %v2117
    %v2120 = vld [vmem:[#allocation3 + $0x10] sm:$0x3]
    %v2121 = vld [vmem:[#allocation3 + $0x8] sm:$0xc0]
    %v2123 = vrot.slane %v2121, 6
    %v2125 = vsel %vm327, %v2112, %v2117
    %v2127 = vrot.slane %v2125, 6
    %v2128 = vsel %vm185, %v2127, 0
    %2130 = vmatprep.subr.mxu0 0.0
    %2131 = vmatpush1.msra.mxu0 0.0
    %2132 = vmatprep.subr.mxu0 0.0
    %2133 = vmatpush1.msra.mxu0 0.0
    %2134 = vmatprep.subr.mxu0 0.0
    %2135 = vmatpush1.msra.mxu0 0.0
    %2136 = vmatprep.subr.mxu0 0.0
    %2137 = vmatpush1.msra.mxu0 0.0
    %2138 = vmatprep.subr.mxu0 0.0
    %2139 = vmatpush1.msra.mxu0 0.0
    %2140 = vmatprep.subr.mxu0 0.0
    %2141 = vmatpush1.msra.mxu0 0.0
    %2142 = vmatprep.subr.mxu0 0.0
    %2143 = vmatpush1.msra.mxu0 0.0
    %2144 = vmatprep.subr.mxu0 0.0
    %2145 = vmatpush1.msra.mxu0 0.0
    %2146 = vmatprep.subr.mxu0 %v1525
    %2147 = vmatpush1.msra.mxu0 %v1524
    %2148 = vmatprep.subr.mxu0 %v1523
    %2149 = vmatpush1.msra.mxu0 %v1522
    %2150 = vmatprep.subr.mxu0 %v1521
    %2151 = vmatpush1.msra.mxu0 %v1520
    %2152 = vmatprep.subr.mxu0 %v1519
    %2153 = vmatpush1.msra.mxu0 %v1518
    %2154 = vmatprep.subr.mxu0 %v1517
    %2155 = vmatpush1.msra.mxu0 %v1516
    %2156 = vmatprep.subr.mxu0 %v1515
    %2157 = vmatpush1.msra.mxu0 %v1514
    %2158 = vmatprep.subr.mxu0 %v1513
    %2159 = vmatpush1.msra.mxu0 %v1512
    %2160 = vmatprep.subr.mxu0 %v1511
    %2161 = vmatpush1.msra.mxu0 %v1510
    %2162 = vmatprep.subr.mxu0 0.0
    %2163 = vmatpush2.msra.mxu0 0.0
    %2164 = vmatprep.subr.mxu0 0.0
    %2165 = vmatpush2.msra.mxu0 0.0
    %2166 = vmatprep.subr.mxu0 0.0
    %2167 = vmatpush2.msra.mxu0 0.0
    %2168 = vmatprep.subr.mxu0 0.0
    %2169 = vmatpush2.msra.mxu0 0.0
    %2170 = vmatprep.subr.mxu0 0.0
    %2171 = vmatpush2.msra.mxu0 0.0
    %2172 = vmatprep.subr.mxu0 0.0
    %2173 = vmatpush2.msra.mxu0 0.0
    %2174 = vmatprep.subr.mxu0 0.0
    %2175 = vmatpush2.msra.mxu0 0.0
    %2176 = vmatprep.subr.mxu0 0.0
    %2177 = vmatpush2.msra.mxu0 0.0
    %2178 = vmatprep.subr.mxu0 0.0
    %2179 = vmatpush2.msra.mxu0 0.0
    %2180 = vmatprep.subr.mxu0 0.0
    %2181 = vmatpush2.msra.mxu0 0.0
    %2182 = vmatprep.subr.mxu0 0.0
    %2183 = vmatpush2.msra.mxu0 0.0
    %2184 = vmatprep.subr.mxu0 0.0
    %2185 = vmatpush2.msra.mxu0 0.0
    %2186 = vmatprep.subr.mxu0 0.0
    %2187 = vmatpush2.msra.mxu0 0.0
    %2188 = vmatprep.subr.mxu0 0.0
    %2189 = vmatpush2.msra.mxu0 0.0
    %2190 = vmatprep.subr.mxu0 0.0
    %2191 = vmatpush2.msra.mxu0 0.0
    %2192 = vmatprep.subr.mxu0 0.0
    %2193 = vmatpush2.msra.mxu0 0.0
    %2194 = vmatprep.mubr.f32.mxu0 0.0
    %2195 = vmatmul.mubr.f32.gmra.mxu0 %v2128
    %v2196 = vpop.f32.mrf.mxu0
    %v2197 = vadd.f32 0.0, %v2196
    %v2198 = vpop.f32.mrf.mxu0
    %v2199 = vadd.f32 0.0, %v2198
    %2200 = vdwg.mxu0
    %v2201 = vadd.f32 %v2120, %v2197
    %v2202 = vadd.f32 %v2123, %v2199
    %v2203 = vxor.u32 %v2201, 2147483648
    %v2204 = vmul.f32 %v2203, 1.442695
    %v2205 = vpow.pop %v2204
    %v2206 = vadd.f32 %v2205, 1.0
    %v2207 = vrcp.pop %v2206
    %v2208 = vmul.f32 1.0, %v2207
    %v2209 = vtanh.pop %v2201
    %v2211 = vrot.slane %v2076, 6
    %v2213 = vmul.f32 %v2208, %v2211
    %2215 = vrot.lane.b32.xlu0 %v2209, 32
    %v2216 = vpop.permute.xlu0 %2215
    %v2218 = vmul.f32 %v2208, %v2216
    %2220 = vrot.lane.b32.xlu0 %v2218, 32
    %v2221 = vpop.permute.xlu0 %2220
    %v2223 = vadd.f32 %v2213, %v2221
    %v2224 = vtanh.pop %v2223
    %2226 = vrot.lane.b32.xlu0 %v2224, 32
    %v2227 = vpop.permute.xlu0 %2226
    %v2229 = vmul.f32 %v2208, %v2227
    %v2230 = vxor.u32 %v2202, 2147483648
    %v2231 = vmul.f32 %v2230, 1.442695
    %v2232 = vpow.pop %v2231
    %v2233 = vadd.f32 %v2232, 1.0
    %v2234 = vrcp.pop %v2233
    %v2235 = vmul.f32 1.0, %v2234
    %v2236 = vtanh.pop %v2202
    %v2238 = vrot.slane %v2103, 6
    %v2240 = vmul.f32 %v2235, %v2238
    %2242 = vrot.lane.b32.xlu0 %v2236, 32
    %v2243 = vpop.permute.xlu0 %2242
    %v2245 = vmul.f32 %v2235, %v2243
    %2247 = vrot.lane.b32.xlu0 %v2245, 32
    %v2248 = vpop.permute.xlu0 %2247
    %v2250 = vadd.f32 %v2240, %v2248
    %v2251 = vtanh.pop %v2250
    %2253 = vrot.lane.b32.xlu0 %v2251, 32
    %v2254 = vpop.permute.xlu0 %2253
    %v2256 = vmul.f32 %v2235, %v2254
    %2258 = vrot.lane.b32.xlu0 %v2229, 64
    %v2259 = vpop.permute.xlu0 %2258
    %2261 = vst.msk [vmem:[#allocation2 + $0x8] sm:$0x3] %vm314, %v2259
    %2263 = vrot.lane.b32.xlu0 %v2256, 96
    %v2264 = vpop.permute.xlu0 %2263
    %2266 = vst.msk [vmem:[#allocation2 + $0x6] sm:$0x3] %vm320, %v2264
    %v2267 = vld [vmem:[#allocation3 + $0x10] sm:$0xc]
    %v2268 = vld [vmem:[#allocation3 + $0x8] sm:$0x30]
    %v2270 = vrot.slane %v2268, 2
    %v2272 = vsel %vm327, %v2259, %v2264
    %v2274 = vsel %vm185, %v2272, 0
    %2276 = vmatprep.subr.mxu0 0.0
    %2277 = vmatpush1.msra.mxu0 0.0
    %2278 = vmatprep.subr.mxu0 0.0
    %2279 = vmatpush1.msra.mxu0 0.0
    %2280 = vmatprep.subr.mxu0 0.0
    %2281 = vmatpush1.msra.mxu0 0.0
    %2282 = vmatprep.subr.mxu0 0.0
    %2283 = vmatpush1.msra.mxu0 0.0
    %2284 = vmatprep.subr.mxu0 0.0
    %2285 = vmatpush1.msra.mxu0 0.0
    %2286 = vmatprep.subr.mxu0 0.0
    %2287 = vmatpush1.msra.mxu0 0.0
    %2288 = vmatprep.subr.mxu0 0.0
    %2289 = vmatpush1.msra.mxu0 0.0
    %2290 = vmatprep.subr.mxu0 0.0
    %2291 = vmatpush1.msra.mxu0 0.0
    %2292 = vmatprep.subr.mxu0 %v1525
    %2293 = vmatpush1.msra.mxu0 %v1524
    %2294 = vmatprep.subr.mxu0 %v1523
    %2295 = vmatpush1.msra.mxu0 %v1522
    %2296 = vmatprep.subr.mxu0 %v1521
    %2297 = vmatpush1.msra.mxu0 %v1520
    %2298 = vmatprep.subr.mxu0 %v1519
    %2299 = vmatpush1.msra.mxu0 %v1518
    %2300 = vmatprep.subr.mxu0 %v1517
    %2301 = vmatpush1.msra.mxu0 %v1516
    %2302 = vmatprep.subr.mxu0 %v1515
    %2303 = vmatpush1.msra.mxu0 %v1514
    %2304 = vmatprep.subr.mxu0 %v1513
    %2305 = vmatpush1.msra.mxu0 %v1512
    %2306 = vmatprep.subr.mxu0 %v1511
    %2307 = vmatpush1.msra.mxu0 %v1510
    %2308 = vmatprep.subr.mxu0 0.0
    %2309 = vmatpush2.msra.mxu0 0.0
    %2310 = vmatprep.subr.mxu0 0.0
    %2311 = vmatpush2.msra.mxu0 0.0
    %2312 = vmatprep.subr.mxu0 0.0
    %2313 = vmatpush2.msra.mxu0 0.0
    %2314 = vmatprep.subr.mxu0 0.0
    %2315 = vmatpush2.msra.mxu0 0.0
    %2316 = vmatprep.subr.mxu0 0.0
    %2317 = vmatpush2.msra.mxu0 0.0
    %2318 = vmatprep.subr.mxu0 0.0
    %2319 = vmatpush2.msra.mxu0 0.0
    %2320 = vmatprep.subr.mxu0 0.0
    %2321 = vmatpush2.msra.mxu0 0.0
    %2322 = vmatprep.subr.mxu0 0.0
    %2323 = vmatpush2.msra.mxu0 0.0
    %2324 = vmatprep.subr.mxu0 0.0
    %2325 = vmatpush2.msra.mxu0 0.0
    %2326 = vmatprep.subr.mxu0 0.0
    %2327 = vmatpush2.msra.mxu0 0.0
    %2328 = vmatprep.subr.mxu0 0.0
    %2329 = vmatpush2.msra.mxu0 0.0
    %2330 = vmatprep.subr.mxu0 0.0
    %2331 = vmatpush2.msra.mxu0 0.0
    %2332 = vmatprep.subr.mxu0 0.0
    %2333 = vmatpush2.msra.mxu0 0.0
    %2334 = vmatprep.subr.mxu0 0.0
    %2335 = vmatpush2.msra.mxu0 0.0
    %2336 = vmatprep.subr.mxu0 0.0
    %2337 = vmatpush2.msra.mxu0 0.0
    %2338 = vmatprep.subr.mxu0 0.0
    %2339 = vmatpush2.msra.mxu0 0.0
    %2340 = vmatprep.mubr.f32.mxu0 0.0
    %2341 = vmatmul.mubr.f32.gmra.mxu0 %v2274
    %v2342 = vpop.f32.mrf.mxu0
    %v2343 = vadd.f32 0.0, %v2342
    %v2344 = vpop.f32.mrf.mxu0
    %v2345 = vadd.f32 0.0, %v2344
    %2346 = vdwg.mxu0
    %v2349 = vrot.slane %v2343, 6
    %v2350 = vrot.slane %v2345, 6
    %v2353 = vadd.f32 %v2267, %v2349
    %v2354 = vadd.f32 %v2270, %v2350
    %v2355 = vxor.u32 %v2353, 2147483648
    %v2356 = vmul.f32 %v2355, 1.442695
    %v2357 = vpow.pop %v2356
    %v2358 = vadd.f32 %v2357, 1.0
    %v2359 = vrcp.pop %v2358
    %v2360 = vmul.f32 1.0, %v2359
    %v2361 = vtanh.pop %v2353
    %v2363 = vrot.slane %v2223, 6
    %v2365 = vmul.f32 %v2360, %v2363
    %2367 = vrot.lane.b32.xlu0 %v2361, 32
    %v2368 = vpop.permute.xlu0 %2367
    %v2370 = vmul.f32 %v2360, %v2368
    %2372 = vrot.lane.b32.xlu0 %v2370, 32
    %v2373 = vpop.permute.xlu0 %2372
    %v2375 = vadd.f32 %v2365, %v2373
    %v2376 = vtanh.pop %v2375
    %2378 = vrot.lane.b32.xlu0 %v2376, 32
    %v2379 = vpop.permute.xlu0 %2378
    %v2381 = vmul.f32 %v2360, %v2379
    %v2382 = vxor.u32 %v2354, 2147483648
    %v2383 = vmul.f32 %v2382, 1.442695
    %v2384 = vpow.pop %v2383
    %v2385 = vadd.f32 %v2384, 1.0
    %v2386 = vrcp.pop %v2385
    %v2387 = vmul.f32 1.0, %v2386
    %v2388 = vtanh.pop %v2354
    %v2390 = vrot.slane %v2250, 6
    %v2392 = vmul.f32 %v2387, %v2390
    %2394 = vrot.lane.b32.xlu0 %v2388, 32
    %v2395 = vpop.permute.xlu0 %2394
    %v2397 = vmul.f32 %v2387, %v2395
    %2399 = vrot.lane.b32.xlu0 %v2397, 32
    %v2400 = vpop.permute.xlu0 %2399
    %v2402 = vadd.f32 %v2392, %v2400
    %v2403 = vtanh.pop %v2402
    %2405 = vrot.lane.b32.xlu0 %v2403, 32
    %v2406 = vpop.permute.xlu0 %2405
    %v2408 = vmul.f32 %v2387, %v2406
    %2410 = vrot.lane.b32.xlu0 %v2381, 64
    %v2411 = vpop.permute.xlu0 %2410
    %2413 = vst.msk [vmem:[#allocation2 + $0x8] sm:$0xc] %vm469, %v2411
    %2415 = vrot.lane.b32.xlu0 %v2408, 96
    %v2416 = vpop.permute.xlu0 %2415
    %2418 = vst.msk [vmem:[#allocation2 + $0x2] sm:$0xc] %vm475, %v2416
    %v2419 = vld [vmem:[#allocation3 + $0x10] sm:$0x30]
    %v2420 = vld [vmem:[#allocation3 + $0x8] sm:$0xc]
    %v2422 = vrot.slane %v2420, 6
    %v2424 = vsel %vm327, %v2411, %v2416
    %v2426 = vrot.slane %v2424, 2
    %v2427 = vsel %vm185, %v2426, 0
    %2429 = vmatprep.subr.mxu0 0.0
    %2430 = vmatpush1.msra.mxu0 0.0
    %2431 = vmatprep.subr.mxu0 0.0
    %2432 = vmatpush1.msra.mxu0 0.0
    %2433 = vmatprep.subr.mxu0 0.0
    %2434 = vmatpush1.msra.mxu0 0.0
    %2435 = vmatprep.subr.mxu0 0.0
    %2436 = vmatpush1.msra.mxu0 0.0
    %2437 = vmatprep.subr.mxu0 0.0
    %2438 = vmatpush1.msra.mxu0 0.0
    %2439 = vmatprep.subr.mxu0 0.0
    %2440 = vmatpush1.msra.mxu0 0.0
    %2441 = vmatprep.subr.mxu0 0.0
    %2442 = vmatpush1.msra.mxu0 0.0
    %2443 = vmatprep.subr.mxu0 0.0
    %2444 = vmatpush1.msra.mxu0 0.0
    %2445 = vmatprep.subr.mxu0 %v1525
    %2446 = vmatpush1.msra.mxu0 %v1524
    %2447 = vmatprep.subr.mxu0 %v1523
    %2448 = vmatpush1.msra.mxu0 %v1522
    %2449 = vmatprep.subr.mxu0 %v1521
    %2450 = vmatpush1.msra.mxu0 %v1520
    %2451 = vmatprep.subr.mxu0 %v1519
    %2452 = vmatpush1.msra.mxu0 %v1518
    %2453 = vmatprep.subr.mxu0 %v1517
    %2454 = vmatpush1.msra.mxu0 %v1516
    %2455 = vmatprep.subr.mxu0 %v1515
    %2456 = vmatpush1.msra.mxu0 %v1514
    %2457 = vmatprep.subr.mxu0 %v1513
    %2458 = vmatpush1.msra.mxu0 %v1512
    %2459 = vmatprep.subr.mxu0 %v1511
    %2460 = vmatpush1.msra.mxu0 %v1510
    %2461 = vmatprep.subr.mxu0 0.0
    %2462 = vmatpush2.msra.mxu0 0.0
    %2463 = vmatprep.subr.mxu0 0.0
    %2464 = vmatpush2.msra.mxu0 0.0
    %2465 = vmatprep.subr.mxu0 0.0
    %2466 = vmatpush2.msra.mxu0 0.0
    %2467 = vmatprep.subr.mxu0 0.0
    %2468 = vmatpush2.msra.mxu0 0.0
    %2469 = vmatprep.subr.mxu0 0.0
    %2470 = vmatpush2.msra.mxu0 0.0
    %2471 = vmatprep.subr.mxu0 0.0
    %2472 = vmatpush2.msra.mxu0 0.0
    %2473 = vmatprep.subr.mxu0 0.0
    %2474 = vmatpush2.msra.mxu0 0.0
    %2475 = vmatprep.subr.mxu0 0.0
    %2476 = vmatpush2.msra.mxu0 0.0
    %2477 = vmatprep.subr.mxu0 0.0
    %2478 = vmatpush2.msra.mxu0 0.0
    %2479 = vmatprep.subr.mxu0 0.0
    %2480 = vmatpush2.msra.mxu0 0.0
    %2481 = vmatprep.subr.mxu0 0.0
    %2482 = vmatpush2.msra.mxu0 0.0
    %2483 = vmatprep.subr.mxu0 0.0
    %2484 = vmatpush2.msra.mxu0 0.0
    %2485 = vmatprep.subr.mxu0 0.0
    %2486 = vmatpush2.msra.mxu0 0.0
    %2487 = vmatprep.subr.mxu0 0.0
    %2488 = vmatpush2.msra.mxu0 0.0
    %2489 = vmatprep.subr.mxu0 0.0
    %2490 = vmatpush2.msra.mxu0 0.0
    %2491 = vmatprep.subr.mxu0 0.0
    %2492 = vmatpush2.msra.mxu0 0.0
    %2493 = vmatprep.mubr.f32.mxu0 0.0
    %2494 = vmatmul.mubr.f32.gmra.mxu0 %v2427
    %v2495 = vpop.f32.mrf.mxu0
    %v2496 = vadd.f32 0.0, %v2495
    %v2497 = vpop.f32.mrf.mxu0
    %v2498 = vadd.f32 0.0, %v2497
    %2499 = vdwg.mxu0
    %v2502 = vrot.slane %v2496, 4
    %v2503 = vrot.slane %v2498, 4
    %v2506 = vadd.f32 %v2419, %v2502
    %v2507 = vadd.f32 %v2422, %v2503
    %v2508 = vxor.u32 %v2506, 2147483648
    %v2509 = vmul.f32 %v2508, 1.442695
    %v2510 = vpow.pop %v2509
    %v2511 = vadd.f32 %v2510, 1.0
    %v2512 = vrcp.pop %v2511
    %v2513 = vmul.f32 1.0, %v2512
    %v2514 = vtanh.pop %v2506
    %v2516 = vrot.slane %v2375, 6
    %v2518 = vmul.f32 %v2513, %v2516
    %2520 = vrot.lane.b32.xlu0 %v2514, 32
    %v2521 = vpop.permute.xlu0 %2520
    %v2523 = vmul.f32 %v2513, %v2521
    %2525 = vrot.lane.b32.xlu0 %v2523, 32
    %v2526 = vpop.permute.xlu0 %2525
    %v2528 = vadd.f32 %v2518, %v2526
    %v2529 = vtanh.pop %v2528
    %2531 = vrot.lane.b32.xlu0 %v2529, 32
    %v2532 = vpop.permute.xlu0 %2531
    %v2534 = vmul.f32 %v2513, %v2532
    %v2535 = vxor.u32 %v2507, 2147483648
    %v2536 = vmul.f32 %v2535, 1.442695
    %v2537 = vpow.pop %v2536
    %v2538 = vadd.f32 %v2537, 1.0
    %v2539 = vrcp.pop %v2538
    %v2540 = vmul.f32 1.0, %v2539
    %v2541 = vtanh.pop %v2507
    %v2543 = vrot.slane %v2402, 6
    %v2545 = vmul.f32 %v2540, %v2543
    %2547 = vrot.lane.b32.xlu0 %v2541, 32
    %v2548 = vpop.permute.xlu0 %2547
    %v2550 = vmul.f32 %v2540, %v2548
    %2552 = vrot.lane.b32.xlu0 %v2550, 32
    %v2553 = vpop.permute.xlu0 %2552
    %v2555 = vadd.f32 %v2545, %v2553
    %v2556 = vtanh.pop %v2555
    %2558 = vrot.lane.b32.xlu0 %v2556, 32
    %v2559 = vpop.permute.xlu0 %2558
    %v2561 = vmul.f32 %v2540, %v2559
    %2563 = vrot.lane.b32.xlu0 %v2534, 64
    %v2564 = vpop.permute.xlu0 %2563
    %2566 = vst.msk [vmem:[#allocation2 + $0x8] sm:$0x30] %vm624, %v2564
    %2568 = vrot.lane.b32.xlu0 %v2561, 96
    %v2569 = vpop.permute.xlu0 %2568
    %2571 = vst.msk [vmem:[#allocation2 - $0x2] sm:$0x30] %vm630, %v2569
    %v2572 = vld [vmem:[#allocation3 + $0x10] sm:$0xc0]
    %v2573 = vld [vmem:[#allocation3 + $0x8] sm:$0x3]
    %v2575 = vrot.slane %v2573, 2
    %v2577 = vsel %vm327, %v2564, %v2569
    %v2579 = vrot.slane %v2577, 4
    %v2580 = vsel %vm185, %v2579, 0
    %2582 = vmatprep.subr.mxu0 0.0
    %2583 = vmatpush1.msra.mxu0 0.0
    %2584 = vmatprep.subr.mxu0 0.0
    %2585 = vmatpush1.msra.mxu0 0.0
    %2586 = vmatprep.subr.mxu0 0.0
    %2587 = vmatpush1.msra.mxu0 0.0
    %2588 = vmatprep.subr.mxu0 0.0
    %2589 = vmatpush1.msra.mxu0 0.0
    %2590 = vmatprep.subr.mxu0 0.0
    %2591 = vmatpush1.msra.mxu0 0.0
    %2592 = vmatprep.subr.mxu0 0.0
    %2593 = vmatpush1.msra.mxu0 0.0
    %2594 = vmatprep.subr.mxu0 0.0
    %2595 = vmatpush1.msra.mxu0 0.0
    %2596 = vmatprep.subr.mxu0 0.0
    %2597 = vmatpush1.msra.mxu0 0.0
    %2598 = vmatprep.subr.mxu0 %v1525
    %2599 = vmatpush1.msra.mxu0 %v1524
    %2600 = vmatprep.subr.mxu0 %v1523
    %2601 = vmatpush1.msra.mxu0 %v1522
    %2602 = vmatprep.subr.mxu0 %v1521
    %2603 = vmatpush1.msra.mxu0 %v1520
    %2604 = vmatprep.subr.mxu0 %v1519
    %2605 = vmatpush1.msra.mxu0 %v1518
    %2606 = vmatprep.subr.mxu0 %v1517
    %2607 = vmatpush1.msra.mxu0 %v1516
    %2608 = vmatprep.subr.mxu0 %v1515
    %2609 = vmatpush1.msra.mxu0 %v1514
    %2610 = vmatprep.subr.mxu0 %v1513
    %2611 = vmatpush1.msra.mxu0 %v1512
    %2612 = vmatprep.subr.mxu0 %v1511
    %2613 = vmatpush1.msra.mxu0 %v1510
    %2614 = vmatprep.subr.mxu0 0.0
    %2615 = vmatpush2.msra.mxu0 0.0
    %2616 = vmatprep.subr.mxu0 0.0
    %2617 = vmatpush2.msra.mxu0 0.0
    %2618 = vmatprep.subr.mxu0 0.0
    %2619 = vmatpush2.msra.mxu0 0.0
    %2620 = vmatprep.subr.mxu0 0.0
    %2621 = vmatpush2.msra.mxu0 0.0
    %2622 = vmatprep.subr.mxu0 0.0
    %2623 = vmatpush2.msra.mxu0 0.0
    %2624 = vmatprep.subr.mxu0 0.0
    %2625 = vmatpush2.msra.mxu0 0.0
    %2626 = vmatprep.subr.mxu0 0.0
    %2627 = vmatpush2.msra.mxu0 0.0
    %2628 = vmatprep.subr.mxu0 0.0
    %2629 = vmatpush2.msra.mxu0 0.0
    %2630 = vmatprep.subr.mxu0 0.0
    %2631 = vmatpush2.msra.mxu0 0.0
    %2632 = vmatprep.subr.mxu0 0.0
    %2633 = vmatpush2.msra.mxu0 0.0
    %2634 = vmatprep.subr.mxu0 0.0
    %2635 = vmatpush2.msra.mxu0 0.0
    %2636 = vmatprep.subr.mxu0 0.0
    %2637 = vmatpush2.msra.mxu0 0.0
    %2638 = vmatprep.subr.mxu0 0.0
    %2639 = vmatpush2.msra.mxu0 0.0
    %2640 = vmatprep.subr.mxu0 0.0
    %2641 = vmatpush2.msra.mxu0 0.0
    %2642 = vmatprep.subr.mxu0 0.0
    %2643 = vmatpush2.msra.mxu0 0.0
    %2644 = vmatprep.subr.mxu0 0.0
    %2645 = vmatpush2.msra.mxu0 0.0
    %2646 = vmatprep.mubr.f32.mxu0 0.0
    %2647 = vmatmul.mubr.f32.gmra.mxu0 %v2580
    %v2648 = vpop.f32.mrf.mxu0
    %v2649 = vadd.f32 0.0, %v2648
    %v2650 = vpop.f32.mrf.mxu0
    %v2651 = vadd.f32 0.0, %v2650
    %2652 = vdwg.mxu0
    %v2655 = vrot.slane %v2649, 2
    %v2656 = vrot.slane %v2651, 2
    %v2659 = vadd.f32 %v2572, %v2655
    %v2660 = vadd.f32 %v2575, %v2656
    %v2661 = vxor.u32 %v2659, 2147483648
    %v2662 = vmul.f32 %v2661, 1.442695
    %v2663 = vpow.pop %v2662
    %v2664 = vadd.f32 %v2663, 1.0
    %v2665 = vrcp.pop %v2664
    %v2666 = vmul.f32 1.0, %v2665
    %v2667 = vtanh.pop %v2659
    %v2669 = vrot.slane %v2528, 6
    %v2671 = vmul.f32 %v2666, %v2669
    %2673 = vrot.lane.b32.xlu0 %v2667, 32
    %v2674 = vpop.permute.xlu0 %2673
    %v2676 = vmul.f32 %v2666, %v2674
    %2678 = vrot.lane.b32.xlu0 %v2676, 32
    %v2679 = vpop.permute.xlu0 %2678
    %v2681 = vadd.f32 %v2671, %v2679
    %v2682 = vtanh.pop %v2681
    %2684 = vrot.lane.b32.xlu0 %v2682, 32
    %v2685 = vpop.permute.xlu0 %2684
    %v2687 = vmul.f32 %v2666, %v2685
    %v2688 = vxor.u32 %v2660, 2147483648
    %v2689 = vmul.f32 %v2688, 1.442695
    %v2690 = vpow.pop %v2689
    %v2691 = vadd.f32 %v2690, 1.0
    %v2692 = vrcp.pop %v2691
    %v2693 = vmul.f32 1.0, %v2692
    %v2694 = vtanh.pop %v2660
    %v2696 = vrot.slane %v2555, 6
    %v2698 = vmul.f32 %v2693, %v2696
    %2700 = vrot.lane.b32.xlu0 %v2694, 32
    %v2701 = vpop.permute.xlu0 %2700
    %v2703 = vmul.f32 %v2693, %v2701
    %2705 = vrot.lane.b32.xlu0 %v2703, 32
    %v2706 = vpop.permute.xlu0 %2705
    %v2708 = vadd.f32 %v2698, %v2706
    %v2709 = vtanh.pop %v2708
    %2711 = vrot.lane.b32.xlu0 %v2709, 32
    %v2712 = vpop.permute.xlu0 %2711
    %v2714 = vmul.f32 %v2693, %v2712
    %2716 = vrot.lane.b32.xlu0 %v2687, 64
    %v2717 = vpop.permute.xlu0 %2716
    %2719 = vst.msk [vmem:[#allocation2 + $0x8] sm:$0xc0] %vm779, %v2717
    %2721 = vrot.lane.b32.xlu0 %v2714, 96
    %v2722 = vpop.permute.xlu0 %2721
    %2724 = vst.msk [vmem:[#allocation2 - $0x6] sm:$0xc0] %vm785, %v2722
    %v2725 = vld [vmem:[#allocation2 + $0xe] sm:$0x3]
    %v2726 = vld [vmem:[%s6] sm:$0xff]
    %v2727 = vld [vmem:[%s6 + $0x8] sm:$0xff]
    %v2728 = vld [vmem:[%s6 + $0x10] sm:$0xff]
    %v2729 = vld [vmem:[%s6 + $0x18] sm:$0xff]
    %v2730 = vld [vmem:[%s6 + $0x20] sm:$0xff]
    %v2731 = vld [vmem:[%s6 + $0x28] sm:$0xff]
    %v2732 = vld [vmem:[%s6 + $0x30] sm:$0xff]
    %v2733 = vld [vmem:[%s6 + $0x38] sm:$0xff]
    %v2734 = vld [vmem:[%s7] sm:$0x1]
    %v2736 = vlaneseq
    %v2737 = vshrl.u32 %v2736, 7
    %v2738 = vsub.s32 0, %v2737
    %v2739 = vrot.slane %v2734, %v2738
    %v2742 = vsel %vm185, %v2725, 0
    %2744 = vmatprep.subr.mxu0 0.0
    %2745 = vmatpush1.msra.mxu0 0.0
    %2746 = vmatprep.subr.mxu0 0.0
    %2747 = vmatpush1.msra.mxu0 0.0
    %2748 = vmatprep.subr.mxu0 0.0
    %2749 = vmatpush1.msra.mxu0 0.0
    %2750 = vmatprep.subr.mxu0 0.0
    %2751 = vmatpush1.msra.mxu0 0.0
    %2752 = vmatprep.subr.mxu0 0.0
    %2753 = vmatpush1.msra.mxu0 0.0
    %2754 = vmatprep.subr.mxu0 0.0
    %2755 = vmatpush1.msra.mxu0 0.0
    %2756 = vmatprep.subr.mxu0 0.0
    %2757 = vmatpush1.msra.mxu0 0.0
    %2758 = vmatprep.subr.mxu0 0.0
    %2759 = vmatpush1.msra.mxu0 0.0
    %2760 = vmatprep.subr.mxu0 0.0
    %2761 = vmatpush1.msra.mxu0 %v2733
    %2762 = vmatprep.subr.mxu0 0.0
    %2763 = vmatpush1.msra.mxu0 %v2732
    %2764 = vmatprep.subr.mxu0 0.0
    %2765 = vmatpush1.msra.mxu0 %v2731
    %2766 = vmatprep.subr.mxu0 0.0
    %2767 = vmatpush1.msra.mxu0 %v2730
    %2768 = vmatprep.subr.mxu0 0.0
    %2769 = vmatpush1.msra.mxu0 %v2729
    %2770 = vmatprep.subr.mxu0 0.0
    %2771 = vmatpush1.msra.mxu0 %v2728
    %2772 = vmatprep.subr.mxu0 0.0
    %2773 = vmatpush1.msra.mxu0 %v2727
    %2774 = vmatprep.subr.mxu0 0.0
    %2775 = vmatpush1.msra.mxu0 %v2726
    %2776 = vmatprep.subr.mxu0 0.0
    %2777 = vmatpush2.msra.mxu0 0.0
    %2778 = vmatprep.subr.mxu0 0.0
    %2779 = vmatpush2.msra.mxu0 0.0
    %2780 = vmatprep.subr.mxu0 0.0
    %2781 = vmatpush2.msra.mxu0 0.0
    %2782 = vmatprep.subr.mxu0 0.0
    %2783 = vmatpush2.msra.mxu0 0.0
    %2784 = vmatprep.subr.mxu0 0.0
    %2785 = vmatpush2.msra.mxu0 0.0
    %2786 = vmatprep.subr.mxu0 0.0
    %2787 = vmatpush2.msra.mxu0 0.0
    %2788 = vmatprep.subr.mxu0 0.0
    %2789 = vmatpush2.msra.mxu0 0.0
    %2790 = vmatprep.subr.mxu0 0.0
    %2791 = vmatpush2.msra.mxu0 0.0
    %2792 = vmatprep.subr.mxu0 0.0
    %2793 = vmatpush2.msra.mxu0 0.0
    %2794 = vmatprep.subr.mxu0 0.0
    %2795 = vmatpush2.msra.mxu0 0.0
    %2796 = vmatprep.subr.mxu0 0.0
    %2797 = vmatpush2.msra.mxu0 0.0
    %2798 = vmatprep.subr.mxu0 0.0
    %2799 = vmatpush2.msra.mxu0 0.0
    %2800 = vmatprep.subr.mxu0 0.0
    %2801 = vmatpush2.msra.mxu0 0.0
    %2802 = vmatprep.subr.mxu0 0.0
    %2803 = vmatpush2.msra.mxu0 0.0
    %2804 = vmatprep.subr.mxu0 0.0
    %2805 = vmatpush2.msra.mxu0 0.0
    %2806 = vmatprep.subr.mxu0 0.0
    %2807 = vmatpush2.msra.mxu0 0.0
    %2808 = vmatprep.mubr.f32.mxu0 0.0
    %2809 = vmatmul.mubr.f32.gmra.mxu0 %v2742
    %v2810 = vpop.f32.mrf.mxu0
    %v2811 = vadd.f32 %v2739, %v2810
    %v2812 = vpop.f32.mrf.mxu0
    %2813 = vdwg.mxu0
    %vm2814 = vcmask 58368
    %2815 = vst.msk [vmem:[#allocation9] sm:$0x3] %vm2814, %v2811
    // Predicated region
    $region42: #{emonet_forward.1} parent=1 // pred_check
      _
    $region43: #{emonet_forward.1} parent=1 // pred_check_branch
      %2817 = sbr.rel (0) target = $region45
    $region44: #{emonet_forward.1} parent=1 // pred_region
      %s2819 = ssub.s32 32, 32
      %2820 = vsyncadd [#allocation6], %s2819
      %s2822 = sshll.u32 [#allocation9], 4
      %s2823 = int_to_ptr.vmem [resolvable:$true] %s2822
      %2825 = dma.vmem_to_hbm [thread:$0]  %s2823, 32, %s8, [#allocation6]
    $region45: #{emonet_forward.1} parent=1 // pred_fallthru
      _
    // Predicated region
    $region46: #{emonet_forward.1} parent=1 // pred_check
      _
    $region47: #{emonet_forward.1} parent=1 // pred_check_branch
      %2827 = sbr.rel (0) target = $region49
    $region48: #{emonet_forward.1} parent=1 // pred_region
      %2828 = dma.done [#allocation6], 32
    $region49: #{emonet_forward.1} parent=1 // pred_fallthru
      _
    %2829 = vsyncpa [#allocation5], 1
    %2830 = vsyncpa [#allocation8], 1
    %2831 = vsyncpa [#allocation6], 1

</llo_original>
